<compile_context>
chip_gen: v7x
topology: tpu7x:2x2x1
jax: 0.10.0
libtpu: 0.0.40
codegen_flags: <defaults>
</compile_context>

<pallas_src>
import math

import jax
import jax.numpy as jnp
from jax.experimental import pallas as pl
from jax.experimental.pallas import tpu as pltpu

D = 8             # feature dimension
H = 32            # hidden dim of the s/t coupling MLPs
K = 6             # number of coupling layers
NEG_SLOPE = 0.01  # nn.LeakyReLU default negative_slope
LOG_2PI = math.log(2.0 * math.pi)


def _leaky_relu(x):
    # max-form: 2 VALU ops/element instead of cmp+mul+select (exact for slope<1)
    return jnp.maximum(x, NEG_SLOPE * x)


# ---------------------------------------------------------------------------
# Kernel: one batch tile (D, TB) in, (1, TB) log-prob out.
# Masks are already folded into W1/W3/b3, so there is no masking code at all.
# ---------------------------------------------------------------------------
def realnvp_kernel(x_ref, w1_ref, b1_ref, w2_ref, b2_ref, w3_ref, b3_ref, out_ref):
    z = x_ref[...].astype(jnp.float32)                # (D, TB), batch on lanes
    tb = z.shape[1]
    log_det_j = jnp.zeros((1, tb), jnp.float32)

    # backward_p: reversed coupling layers.  K is small & static -> unrolled.
    for i in reversed(range(K)):
        # Fused s||t MLP: W1 (2H,D) [masked input cols], W2 block-diag (2H,2H),
        # W3 block-diag (2D,2H) [masked output rows], b3 masked.
        h = _leaky_relu(jnp.dot(w1_ref[i], z, preferred_element_type=jnp.float32)
                        + b1_ref[i])                  # (2H, TB)
        h = _leaky_relu(jnp.dot(w2_ref[i], h, preferred_element_type=jnp.float32)
                        + b2_ref[i])                  # (2H, TB)
        st = jnp.dot(w3_ref[i], h, preferred_element_type=jnp.float32) + b3_ref[i]  # (2D, TB)

        s = jnp.tanh(st[:D, :])                       # (D, TB); exactly 0 on masked rows
        t = st[D:, :]                                 # (D, TB); exactly 0 on masked rows

        # masked rows: s=t=0 -> (z-0)*exp(0) = z, identical to "+ m*z" in the ref
        z = (z - t) * jnp.exp(-s)
        log_det_j = log_det_j - jnp.sum(s, axis=0, keepdims=True)

    # prior.log_prob(z) for MultivariateNormal(0, I_D)
    log_prior = -0.5 * jnp.sum(z * z, axis=0, keepdims=True) - 0.5 * D * LOG_2PI
    out_ref[...] = jax.nn.sigmoid(log_prior) + log_det_j   # (1, TB) lane-dense store


# ---------------------------------------------------------------------------
# Wrapper: batch grid, resident fused weights, lane-dense output.
# ---------------------------------------------------------------------------
def realnvp_forward(x, fused, block_b=8192):
    """x: (B, D) features-last.  Returns (B,) log-prob-like output.

    NOTE: for best end-to-end perf the producer should emit x already in
    (D, B) layout (and B a multiple of 128) so the transpose/pad below fuse
    away; they are kept here so the entry point matches the PyTorch module.
    """
    B = x.shape[0]

    # Pick the batch tile: multiple of 128, large enough to amortize the
    # ~0.35us per-grid-step overhead, but never fewer than 2 tiles when B
    # allows it (v7x has 2 TensorCores sharded over the "parallel" axis).
    desired = max(128, pl.cdiv(int(block_b), 128) * 128)
    two_tile = max(128, pl.cdiv(B, 2 * 128) * 128)        # tile size giving ~2 tiles
    block_b = min(desired, two_tile)
    b_pad = pl.cdiv(B, block_b) * block_b

    x_t = jnp.transpose(x.astype(jnp.float32))            # (D, B): layout plumbing only
    if b_pad != B:
        x_t = jnp.pad(x_t, ((0, 0), (0, b_pad - B)))      # zero cols are benign, sliced off

    grid = (b_pad // block_b,)
    const3 = lambda i: (0, 0, 0)                          # weights: VMEM-resident
    weight_specs = [
        pl.BlockSpec((K, 2 * H, D), const3),              # W1 (input-masked)
        pl.BlockSpec((K, 2 * H, 1), const3),              # b1
        pl.BlockSpec((K, 2 * H, 2 * H), const3),          # W2 (block-diag)
        pl.BlockSpec((K, 2 * H, 1), const3),              # b2
        pl.BlockSpec((K, 2 * D, 2 * H), const3),          # W3 (block-diag, output-masked)
        pl.BlockSpec((K, 2 * D, 1), const3),              # b3 (output-masked)
    ]

    weight_bytes = sum(int(v.size) * 4 for v in fused.values())
    cost = pl.CostEstimate(
        flops=2 * K * b_pad * (2 * H * D + (2 * H) * (2 * H) + 2 * D * 2 * H),
        transcendentals=K * b_pad * 2 * D + b_pad,        # tanh + exp per layer, sigmoid
        bytes_accessed=4 * (D + 1) * b_pad + weight_bytes,
    )

    out = pl.pallas_call(
        realnvp_kernel,
        out_shape=jax.ShapeDtypeStruct((1, b_pad), jnp.float32),
        grid=grid,
        in_specs=[pl.BlockSpec((D, block_b), lambda i: (0, i))] + weight_specs,
        out_specs=pl.BlockSpec((1, block_b), lambda i: (0, i)),
        compiler_params=pltpu.CompilerParams(
            dimension_semantics=("parallel",),            # shard batch tiles across TCs (v7x)
            vmem_limit_bytes=48 * 1024 * 1024,            # > v5e 16MiB default, < v7x 64MiB cap
        ),
        cost_estimate=cost,
    )(x_t, fused["W1"], fused["b1"], fused["W2"], fused["b2"], fused["W3"], fused["b3"])
    return out[0, :B]


# ---------------------------------------------------------------------------
# Deterministic parameter construction (xavier_uniform with gain=0.01, matching
# RealNVP._init; biases use the PyTorch Linear default uniform init).
# ---------------------------------------------------------------------------
def _xavier_uniform(key, fan_in, fan_out, gain=0.01):
    bound = gain * math.sqrt(6.0 / (fan_in + fan_out))
    return jax.random.uniform(key, (fan_in, fan_out), jnp.float32, -bound, bound)


def _bias(key, fan_in, fan_out):
    bound = 1.0 / math.sqrt(fan_in)
    return jax.random.uniform(key, (1, fan_out), jnp.float32, -bound, bound)


def _block_diag(a, b):
    za = jnp.zeros((a.shape[0], b.shape[1]), a.dtype)
    zb = jnp.zeros((b.shape[0], a.shape[1]), b.dtype)
    return jnp.concatenate([jnp.concatenate([a, za], 1), jnp.concatenate([zb, b], 1)], 0)


def fuse_params(raw):
    """Fuse s/t weights into (out, in)-layout block-diagonal stacks and fold the
    checkerboard masks into W1 (input columns) and W3/b3 (output rows)."""
    m = raw["mask"]                                                             # (K, 1, D)
    one_m = 1.0 - m

    W1 = jnp.concatenate([jnp.swapaxes(raw["sW1"], 1, 2),
                          jnp.swapaxes(raw["tW1"], 1, 2)], axis=1)              # (K, 2H, D)
    W1 = W1 * m                                   # zero masked-out input columns (== z_ = m*z)
    b1 = jnp.concatenate([raw["sb1"], raw["tb1"]], axis=2).transpose(0, 2, 1)   # (K, 2H, 1)
    W2 = jnp.stack([_block_diag(raw["sW2"][i].T, raw["tW2"][i].T) for i in range(K)])  # (K,2H,2H)
    b2 = jnp.concatenate([raw["sb2"], raw["tb2"]], axis=2).transpose(0, 2, 1)   # (K, 2H, 1)
    W3 = jnp.stack([_block_diag(raw["sW3"][i].T, raw["tW3"][i].T) for i in range(K)])  # (K,2D,2H)
    b3 = jnp.concatenate([raw["sb3"], raw["tb3"]], axis=2).transpose(0, 2, 1)   # (K, 2D, 1)
    out_mask = jnp.concatenate([one_m, one_m], axis=2).transpose(0, 2, 1)       # (K, 2D, 1)
    W3 = W3 * out_mask                            # zero masked output rows (== s,t *= (1-m))
    b3 = b3 * out_mask
    return {"W1": W1, "b1": b1, "W2": W2, "b2": b2, "W3": W3, "b3": b3}


def make_params(key):
    raw = {}
    for prefix in ("s", "t"):
        for name, (fi, fo) in (("1", (D, H)), ("2", (H, H)), ("3", (H, D))):
            ws, bs = [], []
            for _ in range(K):
                kw, kb, key = jax.random.split(key, 3)
                ws.append(_xavier_uniform(kw, fi, fo))
                bs.append(_bias(kb, fi, fo))
            raw[prefix + "W" + name] = jnp.stack(ws)
            raw[prefix + "b" + name] = jnp.stack(bs)

    # alternating checkerboard masks, shape (K, 1, D): mask[i, d] = (d + i) % 2
    lane = jnp.arange(D)
    raw["mask"] = jnp.stack([((lane + i) % 2).astype(jnp.float32)[None, :] for i in range(K)])
    return raw, fuse_params(raw)


# ---------------------------------------------------------------------------
# Pure-JAX reference (mirrors the PyTorch backward_p + log_prob exactly,
# using the UNFUSED per-layer weights and explicit masks).
# ---------------------------------------------------------------------------
def realnvp_reference(x, p):
    z = x.astype(jnp.float32)
    log_det_j = jnp.zeros((x.shape[0],), jnp.float32)

    def lrelu(v):
        return jnp.where(v >= 0, v, NEG_SLOPE * v)

    def mlp(i, h, pre, tanh_out):
        h = lrelu(h @ p[pre + "W1"][i] + p[pre + "b1"][i])
        h = lrelu(h @ p[pre + "W2"][i] + p[pre + "b2"][i])
        h = h @ p[pre + "W3"][i] + p[pre + "b3"][i]
        return jnp.tanh(h) if tanh_out else h

    for i in reversed(range(K)):
        m = p["mask"][i]
        z_ = m * z
        s = mlp(i, z_, "s", True) * (1.0 - m)
        t = mlp(i, z_, "t", False) * (1.0 - m)
        z = (1.0 - m) * (z - t) * jnp.exp(-s) + z_
        log_det_j = log_det_j - jnp.sum(s, axis=1)

    log_prior = -0.5 * jnp.sum(z * z, axis=1) - 0.5 * D * LOG_2PI
    return jax.nn.sigmoid(log_prior) + log_det_j


if __name__ == "__main__":
    key = jax.random.PRNGKey(0)
    kx, kp = jax.random.split(key)
    B = 256                                   # small test: 2 x 128-lane tiles (fills vregs,
                                              # grid of 2 so v7x megacore still shards)
    x = jax.random.normal(kx, (B, D), jnp.float32)
    raw_params, fused_params = make_params(kp)

    out = realnvp_forward(x, fused_params)    # default block_b target 8192, auto-capped
    out = jax.block_until_ready(out)

    ref = realnvp_reference(x, raw_params)
    if not jnp.allclose(out, ref, atol=1e-5, rtol=1e-5):
        err = float(jnp.max(jnp.abs(out - ref)))
        raise AssertionError(f"mismatch: max abs err={err}")

    print("KERNEL_OK")
</pallas_src>

<mosaic_0001>
module attributes {stable_mosaic.version = 11 : i64} {
  func.func @realnvp_kernel(%arg0: i32, %arg1: memref<8x128xf32, #tpu.memory_space<vmem>>, %arg2: memref<6x64x8xf32, #tpu.memory_space<vmem>>, %arg3: memref<6x64x1xf32, #tpu.memory_space<vmem>>, %arg4: memref<6x64x64xf32, #tpu.memory_space<vmem>>, %arg5: memref<6x64x1xf32, #tpu.memory_space<vmem>>, %arg6: memref<6x16x64xf32, #tpu.memory_space<vmem>>, %arg7: memref<6x16x1xf32, #tpu.memory_space<vmem>>, %arg8: memref<1x128xf32, #tpu.memory_space<vmem>>) attributes {dimension_semantics = [#tpu.dimension_semantics<parallel>], iteration_bounds = array<i64: 2>, scalar_prefetch = 0 : i64, scratch_operands = 0 : i64, tpu.core_type = #tpu.core_type<tc>, window_params = [{transform_indices = @transform_0, window_bounds = array<i64: 8, 128>}, {pipeline_mode = #tpu.pipeline_mode<synchronous>, transform_indices = @transform_1, window_bounds = array<i64: 6, 64, 8>}, {pipeline_mode = #tpu.pipeline_mode<synchronous>, transform_indices = @transform_2, window_bounds = array<i64: 6, 64, 1>}, {pipeline_mode = #tpu.pipeline_mode<synchronous>, transform_indices = @transform_3, window_bounds = array<i64: 6, 64, 64>}, {pipeline_mode = #tpu.pipeline_mode<synchronous>, transform_indices = @transform_4, window_bounds = array<i64: 6, 64, 1>}, {pipeline_mode = #tpu.pipeline_mode<synchronous>, transform_indices = @transform_5, window_bounds = array<i64: 6, 16, 64>}, {pipeline_mode = #tpu.pipeline_mode<synchronous>, transform_indices = @transform_6, window_bounds = array<i64: 6, 16, 1>}, {transform_indices = @transform_7, window_bounds = array<i64: 1, 128>}]} {
    %c0 = arith.constant 0 : index
    %c0_0 = arith.constant 0 : index
    %0 = vector.load %arg1[%c0, %c0_0] : memref<8x128xf32, #tpu.memory_space<vmem>>, vector<8x128xf32>
    %cst = arith.constant 0.000000e+00 : f32
    %1 = vector.broadcast %cst : f32 to vector<1x128xf32>
    %c5 = arith.constant 5 : index
    %c0_1 = arith.constant 0 : index
    %c0_2 = arith.constant 0 : index
    %2 = vector.load %arg2[%c5, %c0_1, %c0_2] : memref<6x64x8xf32, #tpu.memory_space<vmem>>, vector<1x64x8xf32>
    %3 = vector.shape_cast %2 : vector<1x64x8xf32> to vector<64x8xf32>
    %cst_3 = arith.constant dense<0.000000e+00> : vector<64x128xf32>
    %4 = tpu.matmul %3, %0, %cst_3 {dimension_numbers = #tpu.dot_dimension_numbers<[1], [0], [0], [1], [0, 0, 1, 1], [], []>} : vector<64x8xf32>, vector<8x128xf32>, vector<64x128xf32> -> vector<64x128xf32>
    %c5_4 = arith.constant 5 : index
    %c0_5 = arith.constant 0 : index
    %c0_6 = arith.constant 0 : index
    %5 = vector.load %arg3[%c5_4, %c0_5, %c0_6] : memref<6x64x1xf32, #tpu.memory_space<vmem>>, vector<1x64x1xf32>
    %6 = vector.shape_cast %5 : vector<1x64x1xf32> to vector<64x1xf32>
    %7 = vector.broadcast %6 : vector<64x1xf32> to vector<64x128xf32>
    %8 = arith.addf %4, %7 : vector<64x128xf32>
    %cst_7 = arith.constant 0.00999999977 : f32
    %9 = vector.broadcast %cst_7 : f32 to vector<64x128xf32>
    %10 = arith.mulf %9, %8 : vector<64x128xf32>
    %11 = arith.maximumf %8, %10 : vector<64x128xf32>
    %c5_8 = arith.constant 5 : index
    %c0_9 = arith.constant 0 : index
    %c0_10 = arith.constant 0 : index
    %12 = vector.load %arg4[%c5_8, %c0_9, %c0_10] : memref<6x64x64xf32, #tpu.memory_space<vmem>>, vector<1x64x64xf32>
    %13 = vector.shape_cast %12 : vector<1x64x64xf32> to vector<64x64xf32>
    %cst_11 = arith.constant dense<0.000000e+00> : vector<64x128xf32>
    %14 = tpu.matmul %13, %11, %cst_11 {dimension_numbers = #tpu.dot_dimension_numbers<[1], [0], [0], [1], [0, 0, 1, 1], [], []>} : vector<64x64xf32>, vector<64x128xf32>, vector<64x128xf32> -> vector<64x128xf32>
    %c5_12 = arith.constant 5 : index
    %c0_13 = arith.constant 0 : index
    %c0_14 = arith.constant 0 : index
    %15 = vector.load %arg5[%c5_12, %c0_13, %c0_14] : memref<6x64x1xf32, #tpu.memory_space<vmem>>, vector<1x64x1xf32>
    %16 = vector.shape_cast %15 : vector<1x64x1xf32> to vector<64x1xf32>
    %17 = vector.broadcast %16 : vector<64x1xf32> to vector<64x128xf32>
    %18 = arith.addf %14, %17 : vector<64x128xf32>
    %cst_15 = arith.constant 0.00999999977 : f32
    %19 = vector.broadcast %cst_15 : f32 to vector<64x128xf32>
    %20 = arith.mulf %19, %18 : vector<64x128xf32>
    %21 = arith.maximumf %18, %20 : vector<64x128xf32>
    %c5_16 = arith.constant 5 : index
    %c0_17 = arith.constant 0 : index
    %c0_18 = arith.constant 0 : index
    %22 = vector.load %arg6[%c5_16, %c0_17, %c0_18] : memref<6x16x64xf32, #tpu.memory_space<vmem>>, vector<1x16x64xf32>
    %23 = vector.shape_cast %22 : vector<1x16x64xf32> to vector<16x64xf32>
    %cst_19 = arith.constant dense<0.000000e+00> : vector<16x128xf32>
    %24 = tpu.matmul %23, %21, %cst_19 {dimension_numbers = #tpu.dot_dimension_numbers<[1], [0], [0], [1], [0, 0, 1, 1], [], []>} : vector<16x64xf32>, vector<64x128xf32>, vector<16x128xf32> -> vector<16x128xf32>
    %c5_20 = arith.constant 5 : index
    %c0_21 = arith.constant 0 : index
    %c0_22 = arith.constant 0 : index
    %25 = vector.load %arg7[%c5_20, %c0_21, %c0_22] : memref<6x16x1xf32, #tpu.memory_space<vmem>>, vector<1x16x1xf32>
    %26 = vector.shape_cast %25 : vector<1x16x1xf32> to vector<16x1xf32>
    %27 = vector.broadcast %26 : vector<16x1xf32> to vector<16x128xf32>
    %28 = arith.addf %24, %27 : vector<16x128xf32>
    %29 = vector.extract_strided_slice %28 {offsets = [0, 0], sizes = [8, 128], strides = [1, 1]} : vector<16x128xf32> to vector<8x128xf32>
    %30 = math.tanh %29 : vector<8x128xf32>
    %31 = vector.extract_strided_slice %28 {offsets = [8, 0], sizes = [8, 128], strides = [1, 1]} : vector<16x128xf32> to vector<8x128xf32>
    %32 = arith.subf %0, %31 : vector<8x128xf32>
    %cst_23 = arith.constant 0.000000e+00 : f32
    %33 = vector.broadcast %cst_23 : f32 to vector<8x128xf32>
    %34 = arith.subf %33, %30 : vector<8x128xf32>
    %35 = math.exp %34 : vector<8x128xf32>
    %36 = arith.mulf %32, %35 : vector<8x128xf32>
    %cst_24 = arith.constant dense<0.000000e+00> : vector<128xf32>
    %37 = vector.multi_reduction <add>, %30, %cst_24 [0] : vector<8x128xf32> to vector<128xf32>
    %38 = vector.shape_cast %37 : vector<128xf32> to vector<1x128xf32>
    %39 = arith.subf %1, %38 : vector<1x128xf32>
    %c4 = arith.constant 4 : index
    %c0_25 = arith.constant 0 : index
    %c0_26 = arith.constant 0 : index
    %40 = vector.load %arg2[%c4, %c0_25, %c0_26] : memref<6x64x8xf32, #tpu.memory_space<vmem>>, vector<1x64x8xf32>
    %41 = vector.shape_cast %40 : vector<1x64x8xf32> to vector<64x8xf32>
    %cst_27 = arith.constant dense<0.000000e+00> : vector<64x128xf32>
    %42 = tpu.matmul %41, %36, %cst_27 {dimension_numbers = #tpu.dot_dimension_numbers<[1], [0], [0], [1], [0, 0, 1, 1], [], []>} : vector<64x8xf32>, vector<8x128xf32>, vector<64x128xf32> -> vector<64x128xf32>
    %c4_28 = arith.constant 4 : index
    %c0_29 = arith.constant 0 : index
    %c0_30 = arith.constant 0 : index
    %43 = vector.load %arg3[%c4_28, %c0_29, %c0_30] : memref<6x64x1xf32, #tpu.memory_space<vmem>>, vector<1x64x1xf32>
    %44 = vector.shape_cast %43 : vector<1x64x1xf32> to vector<64x1xf32>
    %45 = vector.broadcast %44 : vector<64x1xf32> to vector<64x128xf32>
    %46 = arith.addf %42, %45 : vector<64x128xf32>
    %cst_31 = arith.constant 0.00999999977 : f32
    %47 = vector.broadcast %cst_31 : f32 to vector<64x128xf32>
    %48 = arith.mulf %47, %46 : vector<64x128xf32>
    %49 = arith.maximumf %46, %48 : vector<64x128xf32>
    %c4_32 = arith.constant 4 : index
    %c0_33 = arith.constant 0 : index
    %c0_34 = arith.constant 0 : index
    %50 = vector.load %arg4[%c4_32, %c0_33, %c0_34] : memref<6x64x64xf32, #tpu.memory_space<vmem>>, vector<1x64x64xf32>
    %51 = vector.shape_cast %50 : vector<1x64x64xf32> to vector<64x64xf32>
    %cst_35 = arith.constant dense<0.000000e+00> : vector<64x128xf32>
    %52 = tpu.matmul %51, %49, %cst_35 {dimension_numbers = #tpu.dot_dimension_numbers<[1], [0], [0], [1], [0, 0, 1, 1], [], []>} : vector<64x64xf32>, vector<64x128xf32>, vector<64x128xf32> -> vector<64x128xf32>
    %c4_36 = arith.constant 4 : index
    %c0_37 = arith.constant 0 : index
    %c0_38 = arith.constant 0 : index
    %53 = vector.load %arg5[%c4_36, %c0_37, %c0_38] : memref<6x64x1xf32, #tpu.memory_space<vmem>>, vector<1x64x1xf32>
    %54 = vector.shape_cast %53 : vector<1x64x1xf32> to vector<64x1xf32>
    %55 = vector.broadcast %54 : vector<64x1xf32> to vector<64x128xf32>
    %56 = arith.addf %52, %55 : vector<64x128xf32>
    %cst_39 = arith.constant 0.00999999977 : f32
    %57 = vector.broadcast %cst_39 : f32 to vector<64x128xf32>
    %58 = arith.mulf %57, %56 : vector<64x128xf32>
    %59 = arith.maximumf %56, %58 : vector<64x128xf32>
    %c4_40 = arith.constant 4 : index
    %c0_41 = arith.constant 0 : index
    %c0_42 = arith.constant 0 : index
    %60 = vector.load %arg6[%c4_40, %c0_41, %c0_42] : memref<6x16x64xf32, #tpu.memory_space<vmem>>, vector<1x16x64xf32>
    %61 = vector.shape_cast %60 : vector<1x16x64xf32> to vector<16x64xf32>
    %cst_43 = arith.constant dense<0.000000e+00> : vector<16x128xf32>
    %62 = tpu.matmul %61, %59, %cst_43 {dimension_numbers = #tpu.dot_dimension_numbers<[1], [0], [0], [1], [0, 0, 1, 1], [], []>} : vector<16x64xf32>, vector<64x128xf32>, vector<16x128xf32> -> vector<16x128xf32>
    %c4_44 = arith.constant 4 : index
    %c0_45 = arith.constant 0 : index
    %c0_46 = arith.constant 0 : index
    %63 = vector.load %arg7[%c4_44, %c0_45, %c0_46] : memref<6x16x1xf32, #tpu.memory_space<vmem>>, vector<1x16x1xf32>
    %64 = vector.shape_cast %63 : vector<1x16x1xf32> to vector<16x1xf32>
    %65 = vector.broadcast %64 : vector<16x1xf32> to vector<16x128xf32>
    %66 = arith.addf %62, %65 : vector<16x128xf32>
    %67 = vector.extract_strided_slice %66 {offsets = [0, 0], sizes = [8, 128], strides = [1, 1]} : vector<16x128xf32> to vector<8x128xf32>
    %68 = math.tanh %67 : vector<8x128xf32>
    %69 = vector.extract_strided_slice %66 {offsets = [8, 0], sizes = [8, 128], strides = [1, 1]} : vector<16x128xf32> to vector<8x128xf32>
    %70 = arith.subf %36, %69 : vector<8x128xf32>
    %cst_47 = arith.constant 0.000000e+00 : f32
    %71 = vector.broadcast %cst_47 : f32 to vector<8x128xf32>
    %72 = arith.subf %71, %68 : vector<8x128xf32>
    %73 = math.exp %72 : vector<8x128xf32>
    %74 = arith.mulf %70, %73 : vector<8x128xf32>
    %cst_48 = arith.constant dense<0.000000e+00> : vector<128xf32>
    %75 = vector.multi_reduction <add>, %68, %cst_48 [0] : vector<8x128xf32> to vector<128xf32>
    %76 = vector.shape_cast %75 : vector<128xf32> to vector<1x128xf32>
    %77 = arith.subf %39, %76 : vector<1x128xf32>
    %c3 = arith.constant 3 : index
    %c0_49 = arith.constant 0 : index
    %c0_50 = arith.constant 0 : index
    %78 = vector.load %arg2[%c3, %c0_49, %c0_50] : memref<6x64x8xf32, #tpu.memory_space<vmem>>, vector<1x64x8xf32>
    %79 = vector.shape_cast %78 : vector<1x64x8xf32> to vector<64x8xf32>
    %cst_51 = arith.constant dense<0.000000e+00> : vector<64x128xf32>
    %80 = tpu.matmul %79, %74, %cst_51 {dimension_numbers = #tpu.dot_dimension_numbers<[1], [0], [0], [1], [0, 0, 1, 1], [], []>} : vector<64x8xf32>, vector<8x128xf32>, vector<64x128xf32> -> vector<64x128xf32>
    %c3_52 = arith.constant 3 : index
    %c0_53 = arith.constant 0 : index
    %c0_54 = arith.constant 0 : index
    %81 = vector.load %arg3[%c3_52, %c0_53, %c0_54] : memref<6x64x1xf32, #tpu.memory_space<vmem>>, vector<1x64x1xf32>
    %82 = vector.shape_cast %81 : vector<1x64x1xf32> to vector<64x1xf32>
    %83 = vector.broadcast %82 : vector<64x1xf32> to vector<64x128xf32>
    %84 = arith.addf %80, %83 : vector<64x128xf32>
    %cst_55 = arith.constant 0.00999999977 : f32
    %85 = vector.broadcast %cst_55 : f32 to vector<64x128xf32>
    %86 = arith.mulf %85, %84 : vector<64x128xf32>
    %87 = arith.maximumf %84, %86 : vector<64x128xf32>
    %c3_56 = arith.constant 3 : index
    %c0_57 = arith.constant 0 : index
    %c0_58 = arith.constant 0 : index
    %88 = vector.load %arg4[%c3_56, %c0_57, %c0_58] : memref<6x64x64xf32, #tpu.memory_space<vmem>>, vector<1x64x64xf32>
    %89 = vector.shape_cast %88 : vector<1x64x64xf32> to vector<64x64xf32>
    %cst_59 = arith.constant dense<0.000000e+00> : vector<64x128xf32>
    %90 = tpu.matmul %89, %87, %cst_59 {dimension_numbers = #tpu.dot_dimension_numbers<[1], [0], [0], [1], [0, 0, 1, 1], [], []>} : vector<64x64xf32>, vector<64x128xf32>, vector<64x128xf32> -> vector<64x128xf32>
    %c3_60 = arith.constant 3 : index
    %c0_61 = arith.constant 0 : index
    %c0_62 = arith.constant 0 : index
    %91 = vector.load %arg5[%c3_60, %c0_61, %c0_62] : memref<6x64x1xf32, #tpu.memory_space<vmem>>, vector<1x64x1xf32>
    %92 = vector.shape_cast %91 : vector<1x64x1xf32> to vector<64x1xf32>
    %93 = vector.broadcast %92 : vector<64x1xf32> to vector<64x128xf32>
    %94 = arith.addf %90, %93 : vector<64x128xf32>
    %cst_63 = arith.constant 0.00999999977 : f32
    %95 = vector.broadcast %cst_63 : f32 to vector<64x128xf32>
    %96 = arith.mulf %95, %94 : vector<64x128xf32>
    %97 = arith.maximumf %94, %96 : vector<64x128xf32>
    %c3_64 = arith.constant 3 : index
    %c0_65 = arith.constant 0 : index
    %c0_66 = arith.constant 0 : index
    %98 = vector.load %arg6[%c3_64, %c0_65, %c0_66] : memref<6x16x64xf32, #tpu.memory_space<vmem>>, vector<1x16x64xf32>
    %99 = vector.shape_cast %98 : vector<1x16x64xf32> to vector<16x64xf32>
    %cst_67 = arith.constant dense<0.000000e+00> : vector<16x128xf32>
    %100 = tpu.matmul %99, %97, %cst_67 {dimension_numbers = #tpu.dot_dimension_numbers<[1], [0], [0], [1], [0, 0, 1, 1], [], []>} : vector<16x64xf32>, vector<64x128xf32>, vector<16x128xf32> -> vector<16x128xf32>
    %c3_68 = arith.constant 3 : index
    %c0_69 = arith.constant 0 : index
    %c0_70 = arith.constant 0 : index
    %101 = vector.load %arg7[%c3_68, %c0_69, %c0_70] : memref<6x16x1xf32, #tpu.memory_space<vmem>>, vector<1x16x1xf32>
    %102 = vector.shape_cast %101 : vector<1x16x1xf32> to vector<16x1xf32>
    %103 = vector.broadcast %102 : vector<16x1xf32> to vector<16x128xf32>
    %104 = arith.addf %100, %103 : vector<16x128xf32>
    %105 = vector.extract_strided_slice %104 {offsets = [0, 0], sizes = [8, 128], strides = [1, 1]} : vector<16x128xf32> to vector<8x128xf32>
    %106 = math.tanh %105 : vector<8x128xf32>
    %107 = vector.extract_strided_slice %104 {offsets = [8, 0], sizes = [8, 128], strides = [1, 1]} : vector<16x128xf32> to vector<8x128xf32>
    %108 = arith.subf %74, %107 : vector<8x128xf32>
    %cst_71 = arith.constant 0.000000e+00 : f32
    %109 = vector.broadcast %cst_71 : f32 to vector<8x128xf32>
    %110 = arith.subf %109, %106 : vector<8x128xf32>
    %111 = math.exp %110 : vector<8x128xf32>
    %112 = arith.mulf %108, %111 : vector<8x128xf32>
    %cst_72 = arith.constant dense<0.000000e+00> : vector<128xf32>
    %113 = vector.multi_reduction <add>, %106, %cst_72 [0] : vector<8x128xf32> to vector<128xf32>
    %114 = vector.shape_cast %113 : vector<128xf32> to vector<1x128xf32>
    %115 = arith.subf %77, %114 : vector<1x128xf32>
    %c2 = arith.constant 2 : index
    %c0_73 = arith.constant 0 : index
    %c0_74 = arith.constant 0 : index
    %116 = vector.load %arg2[%c2, %c0_73, %c0_74] : memref<6x64x8xf32, #tpu.memory_space<vmem>>, vector<1x64x8xf32>
    %117 = vector.shape_cast %116 : vector<1x64x8xf32> to vector<64x8xf32>
    %cst_75 = arith.constant dense<0.000000e+00> : vector<64x128xf32>
    %118 = tpu.matmul %117, %112, %cst_75 {dimension_numbers = #tpu.dot_dimension_numbers<[1], [0], [0], [1], [0, 0, 1, 1], [], []>} : vector<64x8xf32>, vector<8x128xf32>, vector<64x128xf32> -> vector<64x128xf32>
    %c2_76 = arith.constant 2 : index
    %c0_77 = arith.constant 0 : index
    %c0_78 = arith.constant 0 : index
    %119 = vector.load %arg3[%c2_76, %c0_77, %c0_78] : memref<6x64x1xf32, #tpu.memory_space<vmem>>, vector<1x64x1xf32>
    %120 = vector.shape_cast %119 : vector<1x64x1xf32> to vector<64x1xf32>
    %121 = vector.broadcast %120 : vector<64x1xf32> to vector<64x128xf32>
    %122 = arith.addf %118, %121 : vector<64x128xf32>
    %cst_79 = arith.constant 0.00999999977 : f32
    %123 = vector.broadcast %cst_79 : f32 to vector<64x128xf32>
    %124 = arith.mulf %123, %122 : vector<64x128xf32>
    %125 = arith.maximumf %122, %124 : vector<64x128xf32>
    %c2_80 = arith.constant 2 : index
    %c0_81 = arith.constant 0 : index
    %c0_82 = arith.constant 0 : index
    %126 = vector.load %arg4[%c2_80, %c0_81, %c0_82] : memref<6x64x64xf32, #tpu.memory_space<vmem>>, vector<1x64x64xf32>
    %127 = vector.shape_cast %126 : vector<1x64x64xf32> to vector<64x64xf32>
    %cst_83 = arith.constant dense<0.000000e+00> : vector<64x128xf32>
    %128 = tpu.matmul %127, %125, %cst_83 {dimension_numbers = #tpu.dot_dimension_numbers<[1], [0], [0], [1], [0, 0, 1, 1], [], []>} : vector<64x64xf32>, vector<64x128xf32>, vector<64x128xf32> -> vector<64x128xf32>
    %c2_84 = arith.constant 2 : index
    %c0_85 = arith.constant 0 : index
    %c0_86 = arith.constant 0 : index
    %129 = vector.load %arg5[%c2_84, %c0_85, %c0_86] : memref<6x64x1xf32, #tpu.memory_space<vmem>>, vector<1x64x1xf32>
    %130 = vector.shape_cast %129 : vector<1x64x1xf32> to vector<64x1xf32>
    %131 = vector.broadcast %130 : vector<64x1xf32> to vector<64x128xf32>
    %132 = arith.addf %128, %131 : vector<64x128xf32>
    %cst_87 = arith.constant 0.00999999977 : f32
    %133 = vector.broadcast %cst_87 : f32 to vector<64x128xf32>
    %134 = arith.mulf %133, %132 : vector<64x128xf32>
    %135 = arith.maximumf %132, %134 : vector<64x128xf32>
    %c2_88 = arith.constant 2 : index
    %c0_89 = arith.constant 0 : index
    %c0_90 = arith.constant 0 : index
    %136 = vector.load %arg6[%c2_88, %c0_89, %c0_90] : memref<6x16x64xf32, #tpu.memory_space<vmem>>, vector<1x16x64xf32>
    %137 = vector.shape_cast %136 : vector<1x16x64xf32> to vector<16x64xf32>
    %cst_91 = arith.constant dense<0.000000e+00> : vector<16x128xf32>
    %138 = tpu.matmul %137, %135, %cst_91 {dimension_numbers = #tpu.dot_dimension_numbers<[1], [0], [0], [1], [0, 0, 1, 1], [], []>} : vector<16x64xf32>, vector<64x128xf32>, vector<16x128xf32> -> vector<16x128xf32>
    %c2_92 = arith.constant 2 : index
    %c0_93 = arith.constant 0 : index
    %c0_94 = arith.constant 0 : index
    %139 = vector.load %arg7[%c2_92, %c0_93, %c0_94] : memref<6x16x1xf32, #tpu.memory_space<vmem>>, vector<1x16x1xf32>
    %140 = vector.shape_cast %139 : vector<1x16x1xf32> to vector<16x1xf32>
    %141 = vector.broadcast %140 : vector<16x1xf32> to vector<16x128xf32>
    %142 = arith.addf %138, %141 : vector<16x128xf32>
    %143 = vector.extract_strided_slice %142 {offsets = [0, 0], sizes = [8, 128], strides = [1, 1]} : vector<16x128xf32> to vector<8x128xf32>
    %144 = math.tanh %143 : vector<8x128xf32>
    %145 = vector.extract_strided_slice %142 {offsets = [8, 0], sizes = [8, 128], strides = [1, 1]} : vector<16x128xf32> to vector<8x128xf32>
    %146 = arith.subf %112, %145 : vector<8x128xf32>
    %cst_95 = arith.constant 0.000000e+00 : f32
    %147 = vector.broadcast %cst_95 : f32 to vector<8x128xf32>
    %148 = arith.subf %147, %144 : vector<8x128xf32>
    %149 = math.exp %148 : vector<8x128xf32>
    %150 = arith.mulf %146, %149 : vector<8x128xf32>
    %cst_96 = arith.constant dense<0.000000e+00> : vector<128xf32>
    %151 = vector.multi_reduction <add>, %144, %cst_96 [0] : vector<8x128xf32> to vector<128xf32>
    %152 = vector.shape_cast %151 : vector<128xf32> to vector<1x128xf32>
    %153 = arith.subf %115, %152 : vector<1x128xf32>
    %c1 = arith.constant 1 : index
    %c0_97 = arith.constant 0 : index
    %c0_98 = arith.constant 0 : index
    %154 = vector.load %arg2[%c1, %c0_97, %c0_98] : memref<6x64x8xf32, #tpu.memory_space<vmem>>, vector<1x64x8xf32>
    %155 = vector.shape_cast %154 : vector<1x64x8xf32> to vector<64x8xf32>
    %cst_99 = arith.constant dense<0.000000e+00> : vector<64x128xf32>
    %156 = tpu.matmul %155, %150, %cst_99 {dimension_numbers = #tpu.dot_dimension_numbers<[1], [0], [0], [1], [0, 0, 1, 1], [], []>} : vector<64x8xf32>, vector<8x128xf32>, vector<64x128xf32> -> vector<64x128xf32>
    %c1_100 = arith.constant 1 : index
    %c0_101 = arith.constant 0 : index
    %c0_102 = arith.constant 0 : index
    %157 = vector.load %arg3[%c1_100, %c0_101, %c0_102] : memref<6x64x1xf32, #tpu.memory_space<vmem>>, vector<1x64x1xf32>
    %158 = vector.shape_cast %157 : vector<1x64x1xf32> to vector<64x1xf32>
    %159 = vector.broadcast %158 : vector<64x1xf32> to vector<64x128xf32>
    %160 = arith.addf %156, %159 : vector<64x128xf32>
    %cst_103 = arith.constant 0.00999999977 : f32
    %161 = vector.broadcast %cst_103 : f32 to vector<64x128xf32>
    %162 = arith.mulf %161, %160 : vector<64x128xf32>
    %163 = arith.maximumf %160, %162 : vector<64x128xf32>
    %c1_104 = arith.constant 1 : index
    %c0_105 = arith.constant 0 : index
    %c0_106 = arith.constant 0 : index
    %164 = vector.load %arg4[%c1_104, %c0_105, %c0_106] : memref<6x64x64xf32, #tpu.memory_space<vmem>>, vector<1x64x64xf32>
    %165 = vector.shape_cast %164 : vector<1x64x64xf32> to vector<64x64xf32>
    %cst_107 = arith.constant dense<0.000000e+00> : vector<64x128xf32>
    %166 = tpu.matmul %165, %163, %cst_107 {dimension_numbers = #tpu.dot_dimension_numbers<[1], [0], [0], [1], [0, 0, 1, 1], [], []>} : vector<64x64xf32>, vector<64x128xf32>, vector<64x128xf32> -> vector<64x128xf32>
    %c1_108 = arith.constant 1 : index
    %c0_109 = arith.constant 0 : index
    %c0_110 = arith.constant 0 : index
    %167 = vector.load %arg5[%c1_108, %c0_109, %c0_110] : memref<6x64x1xf32, #tpu.memory_space<vmem>>, vector<1x64x1xf32>
    %168 = vector.shape_cast %167 : vector<1x64x1xf32> to vector<64x1xf32>
    %169 = vector.broadcast %168 : vector<64x1xf32> to vector<64x128xf32>
    %170 = arith.addf %166, %169 : vector<64x128xf32>
    %cst_111 = arith.constant 0.00999999977 : f32
    %171 = vector.broadcast %cst_111 : f32 to vector<64x128xf32>
    %172 = arith.mulf %171, %170 : vector<64x128xf32>
    %173 = arith.maximumf %170, %172 : vector<64x128xf32>
    %c1_112 = arith.constant 1 : index
    %c0_113 = arith.constant 0 : index
    %c0_114 = arith.constant 0 : index
    %174 = vector.load %arg6[%c1_112, %c0_113, %c0_114] : memref<6x16x64xf32, #tpu.memory_space<vmem>>, vector<1x16x64xf32>
    %175 = vector.shape_cast %174 : vector<1x16x64xf32> to vector<16x64xf32>
    %cst_115 = arith.constant dense<0.000000e+00> : vector<16x128xf32>
    %176 = tpu.matmul %175, %173, %cst_115 {dimension_numbers = #tpu.dot_dimension_numbers<[1], [0], [0], [1], [0, 0, 1, 1], [], []>} : vector<16x64xf32>, vector<64x128xf32>, vector<16x128xf32> -> vector<16x128xf32>
    %c1_116 = arith.constant 1 : index
    %c0_117 = arith.constant 0 : index
    %c0_118 = arith.constant 0 : index
    %177 = vector.load %arg7[%c1_116, %c0_117, %c0_118] : memref<6x16x1xf32, #tpu.memory_space<vmem>>, vector<1x16x1xf32>
    %178 = vector.shape_cast %177 : vector<1x16x1xf32> to vector<16x1xf32>
    %179 = vector.broadcast %178 : vector<16x1xf32> to vector<16x128xf32>
    %180 = arith.addf %176, %179 : vector<16x128xf32>
    %181 = vector.extract_strided_slice %180 {offsets = [0, 0], sizes = [8, 128], strides = [1, 1]} : vector<16x128xf32> to vector<8x128xf32>
    %182 = math.tanh %181 : vector<8x128xf32>
    %183 = vector.extract_strided_slice %180 {offsets = [8, 0], sizes = [8, 128], strides = [1, 1]} : vector<16x128xf32> to vector<8x128xf32>
    %184 = arith.subf %150, %183 : vector<8x128xf32>
    %cst_119 = arith.constant 0.000000e+00 : f32
    %185 = vector.broadcast %cst_119 : f32 to vector<8x128xf32>
    %186 = arith.subf %185, %182 : vector<8x128xf32>
    %187 = math.exp %186 : vector<8x128xf32>
    %188 = arith.mulf %184, %187 : vector<8x128xf32>
    %cst_120 = arith.constant dense<0.000000e+00> : vector<128xf32>
    %189 = vector.multi_reduction <add>, %182, %cst_120 [0] : vector<8x128xf32> to vector<128xf32>
    %190 = vector.shape_cast %189 : vector<128xf32> to vector<1x128xf32>
    %191 = arith.subf %153, %190 : vector<1x128xf32>
    %c0_121 = arith.constant 0 : index
    %c0_122 = arith.constant 0 : index
    %c0_123 = arith.constant 0 : index
    %192 = vector.load %arg2[%c0_121, %c0_122, %c0_123] : memref<6x64x8xf32, #tpu.memory_space<vmem>>, vector<1x64x8xf32>
    %193 = vector.shape_cast %192 : vector<1x64x8xf32> to vector<64x8xf32>
    %cst_124 = arith.constant dense<0.000000e+00> : vector<64x128xf32>
    %194 = tpu.matmul %193, %188, %cst_124 {dimension_numbers = #tpu.dot_dimension_numbers<[1], [0], [0], [1], [0, 0, 1, 1], [], []>} : vector<64x8xf32>, vector<8x128xf32>, vector<64x128xf32> -> vector<64x128xf32>
    %c0_125 = arith.constant 0 : index
    %c0_126 = arith.constant 0 : index
    %c0_127 = arith.constant 0 : index
    %195 = vector.load %arg3[%c0_125, %c0_126, %c0_127] : memref<6x64x1xf32, #tpu.memory_space<vmem>>, vector<1x64x1xf32>
    %196 = vector.shape_cast %195 : vector<1x64x1xf32> to vector<64x1xf32>
    %197 = vector.broadcast %196 : vector<64x1xf32> to vector<64x128xf32>
    %198 = arith.addf %194, %197 : vector<64x128xf32>
    %cst_128 = arith.constant 0.00999999977 : f32
    %199 = vector.broadcast %cst_128 : f32 to vector<64x128xf32>
    %200 = arith.mulf %199, %198 : vector<64x128xf32>
    %201 = arith.maximumf %198, %200 : vector<64x128xf32>
    %c0_129 = arith.constant 0 : index
    %c0_130 = arith.constant 0 : index
    %c0_131 = arith.constant 0 : index
    %202 = vector.load %arg4[%c0_129, %c0_130, %c0_131] : memref<6x64x64xf32, #tpu.memory_space<vmem>>, vector<1x64x64xf32>
    %203 = vector.shape_cast %202 : vector<1x64x64xf32> to vector<64x64xf32>
    %cst_132 = arith.constant dense<0.000000e+00> : vector<64x128xf32>
    %204 = tpu.matmul %203, %201, %cst_132 {dimension_numbers = #tpu.dot_dimension_numbers<[1], [0], [0], [1], [0, 0, 1, 1], [], []>} : vector<64x64xf32>, vector<64x128xf32>, vector<64x128xf32> -> vector<64x128xf32>
    %c0_133 = arith.constant 0 : index
    %c0_134 = arith.constant 0 : index
    %c0_135 = arith.constant 0 : index
    %205 = vector.load %arg5[%c0_133, %c0_134, %c0_135] : memref<6x64x1xf32, #tpu.memory_space<vmem>>, vector<1x64x1xf32>
    %206 = vector.shape_cast %205 : vector<1x64x1xf32> to vector<64x1xf32>
    %207 = vector.broadcast %206 : vector<64x1xf32> to vector<64x128xf32>
    %208 = arith.addf %204, %207 : vector<64x128xf32>
    %cst_136 = arith.constant 0.00999999977 : f32
    %209 = vector.broadcast %cst_136 : f32 to vector<64x128xf32>
    %210 = arith.mulf %209, %208 : vector<64x128xf32>
    %211 = arith.maximumf %208, %210 : vector<64x128xf32>
    %c0_137 = arith.constant 0 : index
    %c0_138 = arith.constant 0 : index
    %c0_139 = arith.constant 0 : index
    %212 = vector.load %arg6[%c0_137, %c0_138, %c0_139] : memref<6x16x64xf32, #tpu.memory_space<vmem>>, vector<1x16x64xf32>
    %213 = vector.shape_cast %212 : vector<1x16x64xf32> to vector<16x64xf32>
    %cst_140 = arith.constant dense<0.000000e+00> : vector<16x128xf32>
    %214 = tpu.matmul %213, %211, %cst_140 {dimension_numbers = #tpu.dot_dimension_numbers<[1], [0], [0], [1], [0, 0, 1, 1], [], []>} : vector<16x64xf32>, vector<64x128xf32>, vector<16x128xf32> -> vector<16x128xf32>
    %c0_141 = arith.constant 0 : index
    %c0_142 = arith.constant 0 : index
    %c0_143 = arith.constant 0 : index
    %215 = vector.load %arg7[%c0_141, %c0_142, %c0_143] : memref<6x16x1xf32, #tpu.memory_space<vmem>>, vector<1x16x1xf32>
    %216 = vector.shape_cast %215 : vector<1x16x1xf32> to vector<16x1xf32>
    %217 = vector.broadcast %216 : vector<16x1xf32> to vector<16x128xf32>
    %218 = arith.addf %214, %217 : vector<16x128xf32>
    %219 = vector.extract_strided_slice %218 {offsets = [0, 0], sizes = [8, 128], strides = [1, 1]} : vector<16x128xf32> to vector<8x128xf32>
    %220 = math.tanh %219 : vector<8x128xf32>
    %221 = vector.extract_strided_slice %218 {offsets = [8, 0], sizes = [8, 128], strides = [1, 1]} : vector<16x128xf32> to vector<8x128xf32>
    %222 = arith.subf %188, %221 : vector<8x128xf32>
    %cst_144 = arith.constant 0.000000e+00 : f32
    %223 = vector.broadcast %cst_144 : f32 to vector<8x128xf32>
    %224 = arith.subf %223, %220 : vector<8x128xf32>
    %225 = math.exp %224 : vector<8x128xf32>
    %226 = arith.mulf %222, %225 : vector<8x128xf32>
    %cst_145 = arith.constant dense<0.000000e+00> : vector<128xf32>
    %227 = vector.multi_reduction <add>, %220, %cst_145 [0] : vector<8x128xf32> to vector<128xf32>
    %228 = vector.shape_cast %227 : vector<128xf32> to vector<1x128xf32>
    %229 = arith.subf %191, %228 : vector<1x128xf32>
    %230 = arith.mulf %226, %226 : vector<8x128xf32>
    %cst_146 = arith.constant dense<0.000000e+00> : vector<128xf32>
    %231 = vector.multi_reduction <add>, %230, %cst_146 [0] : vector<8x128xf32> to vector<128xf32>
    %232 = vector.shape_cast %231 : vector<128xf32> to vector<1x128xf32>
    %cst_147 = arith.constant -5.000000e-01 : f32
    %233 = vector.broadcast %cst_147 : f32 to vector<1x128xf32>
    %234 = arith.mulf %233, %232 : vector<1x128xf32>
    %cst_148 = arith.constant 7.35150814 : f32
    %235 = vector.broadcast %cst_148 : f32 to vector<1x128xf32>
    %236 = arith.subf %234, %235 : vector<1x128xf32>
    %237 = arith.negf %236 : vector<1x128xf32>
    %238 = math.exp %237 : vector<1x128xf32>
    %cst_149 = arith.constant 1.000000e+00 : f32
    %239 = vector.broadcast %cst_149 : f32 to vector<1x128xf32>
    %240 = arith.addf %239, %238 : vector<1x128xf32>
    %241 = arith.divf %239, %240 : vector<1x128xf32>
    %242 = arith.addf %241, %229 : vector<1x128xf32>
    %c0_150 = arith.constant 0 : index
    %c0_151 = arith.constant 0 : index
    %243 = vector.load %arg8[%c0_150, %c0_151] : memref<1x128xf32, #tpu.memory_space<vmem>>, vector<1x128xf32>
    tpu.vector_store %arg8[%c0_150, %c0_151], %242 {strides = array<i32>} : memref<1x128xf32, #tpu.memory_space<vmem>>, vector<1x128xf32>,
    return
  }
  func.func @transform_0(%arg0: i32) -> (i32, i32) {
    %c0_i32 = arith.constant 0 : i32
    %c0_i32_0 = arith.constant 0 : i32
    return %c0_i32, %arg0 : i32, i32
  }
  func.func @transform_1(%arg0: i32) -> (i32, i32, i32) {
    %c0_i32 = arith.constant 0 : i32
    %c0_i32_0 = arith.constant 0 : i32
    %c0_i32_1 = arith.constant 0 : i32
    %c0_i32_2 = arith.constant 0 : i32
    return %c0_i32, %c0_i32_0, %c0_i32_1 : i32, i32, i32
  }
  func.func @transform_2(%arg0: i32) -> (i32, i32, i32) {
    %c0_i32 = arith.constant 0 : i32
    %c0_i32_0 = arith.constant 0 : i32
    %c0_i32_1 = arith.constant 0 : i32
    %c0_i32_2 = arith.constant 0 : i32
    return %c0_i32, %c0_i32_0, %c0_i32_1 : i32, i32, i32
  }
  func.func @transform_3(%arg0: i32) -> (i32, i32, i32) {
    %c0_i32 = arith.constant 0 : i32
    %c0_i32_0 = arith.constant 0 : i32
    %c0_i32_1 = arith.constant 0 : i32
    %c0_i32_2 = arith.constant 0 : i32
    return %c0_i32, %c0_i32_0, %c0_i32_1 : i32, i32, i32
  }
  func.func @transform_4(%arg0: i32) -> (i32, i32, i32) {
    %c0_i32 = arith.constant 0 : i32
    %c0_i32_0 = arith.constant 0 : i32
    %c0_i32_1 = arith.constant 0 : i32
    %c0_i32_2 = arith.constant 0 : i32
    return %c0_i32, %c0_i32_0, %c0_i32_1 : i32, i32, i32
  }
  func.func @transform_5(%arg0: i32) -> (i32, i32, i32) {
    %c0_i32 = arith.constant 0 : i32
    %c0_i32_0 = arith.constant 0 : i32
    %c0_i32_1 = arith.constant 0 : i32
    %c0_i32_2 = arith.constant 0 : i32
    return %c0_i32, %c0_i32_0, %c0_i32_1 : i32, i32, i32
  }
  func.func @transform_6(%arg0: i32) -> (i32, i32, i32) {
    %c0_i32 = arith.constant 0 : i32
    %c0_i32_0 = arith.constant 0 : i32
    %c0_i32_1 = arith.constant 0 : i32
    %c0_i32_2 = arith.constant 0 : i32
    return %c0_i32, %c0_i32_0, %c0_i32_1 : i32, i32, i32
  }
  func.func @transform_7(%arg0: i32) -> (i32, i32) {
    %c0_i32 = arith.constant 0 : i32
    %c0_i32_0 = arith.constant 0 : i32
    return %c0_i32, %arg0 : i32, i32
  }
}

</mosaic_0001>

<llo_original>
// kernel: tpu_custom_call.1
$region0: #{tpu_custom_call.1}
  #allocation0 [shape = 'u32[]', space=smem, size = 0x4, offset = 0x4, fixed_abs, tag = 'smem constant byte address 0x4 - core index']
  #allocation1 [shape = 'u32[144,128]{1,0:T(1,128)}', space=vmem, size = 0x12000, scoped, tag = 'internal scratch']
  %s0 = inlined_call_operand.vmem [shape: f32[8,256], index: 0, kind: input, shape index: {}]
  %s1 = inlined_call_operand.vmem [shape: f32[6,64,8], index: 1, kind: input, shape index: {}]
  %s2 = inlined_call_operand.vmem [shape: f32[6,64,1], index: 2, kind: input, shape index: {}]
  %s3 = inlined_call_operand.vmem [shape: f32[6,64,64], index: 3, kind: input, shape index: {}]
  %s4 = inlined_call_operand.vmem [shape: f32[6,64,1], index: 4, kind: input, shape index: {}]
  %s5 = inlined_call_operand.vmem [shape: f32[6,16,64], index: 5, kind: input, shape index: {}]
  %s6 = inlined_call_operand.vmem [shape: f32[6,16,1], index: 6, kind: input, shape index: {}]
  %s7 = inlined_call_operand.hbm [shape: f32[1,256], index: 7, kind: output, shape index: {}]
  %s8 = sld [smem:[#allocation0]]
  $region61: #{tpu_custom_call.1} parent=0
    _
  %s10 = ssub.s32 1, %s8
  %s11 = scalar_select 0, %s10, %s8
  $region1: #{tpu_custom_call.1} parent=0
    #allocation2 [shape = 'u8[1024]{0}', space=vmem, size = 0x400, scoped, tag = 'output window, operand 0']
    #allocation3 [shape = 's32[2]{0}', space=sflag, size = 0x8, scoped, tag = 'scoped memory for tpu_custom_call.1']
    %12 = vsyncpa [#allocation3], 0
    %s13 = scalar_lea.sflag [#allocation3], 1
    %14 = vsyncpa %s13, 0
    loop: start=0, step=1, limit=4
    $region2: #{tpu_custom_call.1} parent=1 // loop_pre_header
      _
    $region3: #{tpu_custom_call.1} parent=1 // loop_header
      %s16 = sphi 0, %s20
      %p17 = scmp.ge.s32.totalorder %s16, 4
      %s26 = sphi 0, %s28
      %s29 = sphi 0, %s26
      %s30 = sphi 0, %s29
      %s46 = sphi 0, %s30
      %s50 = sphi 0, %s50
      %s52 = sphi 0, %s50
      %s53 = sphi 0, %s52
      %s67 = sphi 0, %s53
      %s71 = sphi 0, %s71
      %s73 = sphi 0, %s71
      %s74 = sphi 0, %s73
      %s88 = sphi 0, %s74
      %s92 = sphi 0, %s92
      %s94 = sphi 0, %s92
      %s95 = sphi 0, %s94
      %s109 = sphi 0, %s95
      %s113 = sphi 0, %s113
      %s115 = sphi 0, %s113
      %s116 = sphi 0, %s115
      %s130 = sphi 0, %s116
      %s134 = sphi 0, %s134
      %s136 = sphi 0, %s134
      %s137 = sphi 0, %s136
      %s151 = sphi 0, %s137
      %s155 = sphi 0, %s155
      %s157 = sphi 0, %s155
      %s158 = sphi 0, %s157
      %s172 = sphi 0, %s158
      %s178 = sphi 0, %s180
      %s181 = sphi 0, %s178
      %s182 = sphi 0, %s181
      %s198 = sphi 0, %s182
    $region4: #{tpu_custom_call.1} parent=1 // loop_header_branch
      %19 = sbr.rel (%p17) target = $region8
    $region5: #{tpu_custom_call.1} parent=1 // loop_body
      %s21 = ssub.s32 %s16, 1
      %s22 = ssub.s32 %s16, 2
      %s23 = sadd.s32 %s16, 1
      %s24 = ssub.s32 %s16, %s23
      %p25 = scmp.eq.s32.totalorder %s24, 0
      %s27 = sadd.s32 %s26, 1
      %s28 = scalar_select %p25, %s26, %s27
      %p31 = pneg %p25
      %p32 = scmp.eq.s32.totalorder %s16, 1
      %p33 = por %p31, %p32
      %p34 = scmp.ne.s32.totalorder %s26, %s29
      %p35 = scmp.eq.s32.totalorder %s16, 0
      %p36 = por %p34, %p35
      %p37 = scmp.ne.s32.totalorder %s26, %s29
      %p38 = scmp.eq.s32.totalorder %s21, 1
      %p39 = por %p37, %p38
      %p40 = scmp.ne.s32.totalorder %s29, %s30
      %p41 = scmp.eq.s32.totalorder %s21, 0
      %p42 = por %p40, %p41
      %p43 = scmp.ne.s32.totalorder %s29, %s30
      %p44 = scmp.eq.s32.totalorder %s22, 1
      %p45 = por %p43, %p44
      %p47 = scmp.ne.s32.totalorder %s30, %s46
      %p48 = scmp.eq.s32.totalorder %s22, 0
      %p49 = por %p47, %p48
      %s51 = sadd.s32 %s50, 1
      %p54 = scmp.eq.s32.totalorder %s16, 1
      %p55 = scmp.ne.s32.totalorder %s50, %s52
      %p56 = scmp.eq.s32.totalorder %s16, 0
      %p57 = por %p55, %p56
      %p58 = scmp.ne.s32.totalorder %s50, %s52
      %p59 = scmp.eq.s32.totalorder %s21, 1
      %p60 = por %p58, %p59
      %p61 = scmp.ne.s32.totalorder %s52, %s53
      %p62 = scmp.eq.s32.totalorder %s21, 0
      %p63 = por %p61, %p62
      %p64 = scmp.ne.s32.totalorder %s52, %s53
      %p65 = scmp.eq.s32.totalorder %s22, 1
      %p66 = por %p64, %p65
      %p68 = scmp.ne.s32.totalorder %s53, %s67
      %p69 = scmp.eq.s32.totalorder %s22, 0
      %p70 = por %p68, %p69
      %s72 = sadd.s32 %s71, 1
      %p75 = scmp.eq.s32.totalorder %s16, 1
      %p76 = scmp.ne.s32.totalorder %s71, %s73
      %p77 = scmp.eq.s32.totalorder %s16, 0
      %p78 = por %p76, %p77
      %p79 = scmp.ne.s32.totalorder %s71, %s73
      %p80 = scmp.eq.s32.totalorder %s21, 1
      %p81 = por %p79, %p80
      %p82 = scmp.ne.s32.totalorder %s73, %s74
      %p83 = scmp.eq.s32.totalorder %s21, 0
      %p84 = por %p82, %p83
      %p85 = scmp.ne.s32.totalorder %s73, %s74
      %p86 = scmp.eq.s32.totalorder %s22, 1
      %p87 = por %p85, %p86
      %p89 = scmp.ne.s32.totalorder %s74, %s88
      %p90 = scmp.eq.s32.totalorder %s22, 0
      %p91 = por %p89, %p90
      %s93 = sadd.s32 %s92, 1
      %p96 = scmp.eq.s32.totalorder %s16, 1
      %p97 = scmp.ne.s32.totalorder %s92, %s94
      %p98 = scmp.eq.s32.totalorder %s16, 0
      %p99 = por %p97, %p98
      %p100 = scmp.ne.s32.totalorder %s92, %s94
      %p101 = scmp.eq.s32.totalorder %s21, 1
      %p102 = por %p100, %p101
      %p103 = scmp.ne.s32.totalorder %s94, %s95
      %p104 = scmp.eq.s32.totalorder %s21, 0
      %p105 = por %p103, %p104
      %p106 = scmp.ne.s32.totalorder %s94, %s95
      %p107 = scmp.eq.s32.totalorder %s22, 1
      %p108 = por %p106, %p107
      %p110 = scmp.ne.s32.totalorder %s95, %s109
      %p111 = scmp.eq.s32.totalorder %s22, 0
      %p112 = por %p110, %p111
      %s114 = sadd.s32 %s113, 1
      %p117 = scmp.eq.s32.totalorder %s16, 1
      %p118 = scmp.ne.s32.totalorder %s113, %s115
      %p119 = scmp.eq.s32.totalorder %s16, 0
      %p120 = por %p118, %p119
      %p121 = scmp.ne.s32.totalorder %s113, %s115
      %p122 = scmp.eq.s32.totalorder %s21, 1
      %p123 = por %p121, %p122
      %p124 = scmp.ne.s32.totalorder %s115, %s116
      %p125 = scmp.eq.s32.totalorder %s21, 0
      %p126 = por %p124, %p125
      %p127 = scmp.ne.s32.totalorder %s115, %s116
      %p128 = scmp.eq.s32.totalorder %s22, 1
      %p129 = por %p127, %p128
      %p131 = scmp.ne.s32.totalorder %s116, %s130
      %p132 = scmp.eq.s32.totalorder %s22, 0
      %p133 = por %p131, %p132
      %s135 = sadd.s32 %s134, 1
      %p138 = scmp.eq.s32.totalorder %s16, 1
      %p139 = scmp.ne.s32.totalorder %s134, %s136
      %p140 = scmp.eq.s32.totalorder %s16, 0
      %p141 = por %p139, %p140
      %p142 = scmp.ne.s32.totalorder %s134, %s136
      %p143 = scmp.eq.s32.totalorder %s21, 1
      %p144 = por %p142, %p143
      %p145 = scmp.ne.s32.totalorder %s136, %s137
      %p146 = scmp.eq.s32.totalorder %s21, 0
      %p147 = por %p145, %p146
      %p148 = scmp.ne.s32.totalorder %s136, %s137
      %p149 = scmp.eq.s32.totalorder %s22, 1
      %p150 = por %p148, %p149
      %p152 = scmp.ne.s32.totalorder %s137, %s151
      %p153 = scmp.eq.s32.totalorder %s22, 0
      %p154 = por %p152, %p153
      %s156 = sadd.s32 %s155, 1
      %p159 = scmp.eq.s32.totalorder %s16, 1
      %p160 = scmp.ne.s32.totalorder %s155, %s157
      %p161 = scmp.eq.s32.totalorder %s16, 0
      %p162 = por %p160, %p161
      %p163 = scmp.ne.s32.totalorder %s155, %s157
      %p164 = scmp.eq.s32.totalorder %s21, 1
      %p165 = por %p163, %p164
      %p166 = scmp.ne.s32.totalorder %s157, %s158
      %p167 = scmp.eq.s32.totalorder %s21, 0
      %p168 = por %p166, %p167
      %p169 = scmp.ne.s32.totalorder %s157, %s158
      %p170 = scmp.eq.s32.totalorder %s22, 1
      %p171 = por %p169, %p170
      %p173 = scmp.ne.s32.totalorder %s158, %s172
      %p174 = scmp.eq.s32.totalorder %s22, 0
      %p175 = por %p173, %p174
      %s176 = ssub.s32 %s16, %s23
      %p177 = scmp.eq.s32.totalorder %s176, 0
      %s179 = sadd.s32 %s178, 1
      %s180 = scalar_select %p177, %s178, %s179
      %p183 = pneg %p177
      %p184 = scmp.eq.s32.totalorder %s16, 1
      %p185 = por %p183, %p184
      %p186 = scmp.ne.s32.totalorder %s178, %s181
      %p187 = scmp.eq.s32.totalorder %s16, 0
      %p188 = por %p186, %p187
      %p189 = scmp.ne.s32.totalorder %s178, %s181
      %p190 = scmp.eq.s32.totalorder %s21, 1
      %p191 = por %p189, %p190
      %p192 = scmp.ne.s32.totalorder %s181, %s182
      %p193 = scmp.eq.s32.totalorder %s21, 0
      %p194 = por %p192, %p193
      %p195 = scmp.ne.s32.totalorder %s181, %s182
      %p196 = scmp.eq.s32.totalorder %s22, 1
      %p197 = por %p195, %p196
      %p199 = scmp.ne.s32.totalorder %s182, %s198
      %p200 = scmp.eq.s32.totalorder %s22, 0
      %p201 = por %p199, %p200
      %p202 = scmp.le.s32.totalorder 1, %s16
      %p203 = scmp.lt.s32.totalorder %s16, 3
      %p204 = pnand %p202, %p203
      %p205 = pneg %p204
      // Predicated region
      $region9: #{tpu_custom_call.1} parent=5 // pred_check
        _
      $region10: #{tpu_custom_call.1} parent=5 // pred_check_branch
        %207 = sbr.rel (%p204) target = $region12
      $region11: #{tpu_custom_call.1} parent=5 // pred_region
        %s208 = ssub.s32 %s16, 1
        // Predicated region
        $region13: #{tpu_custom_call.1} parent=11 // pred_check
          %p209 = pneg %p63
        $region14: #{tpu_custom_call.1} parent=11 // pred_check_branch
          %211 = sbr.rel (%p209) target = $region16
        $region15: #{tpu_custom_call.1} parent=11 // pred_region
          _
        $region16: #{tpu_custom_call.1} parent=11 // pred_fallthru
          _
        // Predicated region
        $region17: #{tpu_custom_call.1} parent=11 // pred_check
          %p212 = pneg %p84
        $region18: #{tpu_custom_call.1} parent=11 // pred_check_branch
          %214 = sbr.rel (%p212) target = $region20
        $region19: #{tpu_custom_call.1} parent=11 // pred_region
          _
        $region20: #{tpu_custom_call.1} parent=11 // pred_fallthru
          _
        // Predicated region
        $region21: #{tpu_custom_call.1} parent=11 // pred_check
          %p215 = pneg %p105
        $region22: #{tpu_custom_call.1} parent=11 // pred_check_branch
          %217 = sbr.rel (%p215) target = $region24
        $region23: #{tpu_custom_call.1} parent=11 // pred_region
          _
        $region24: #{tpu_custom_call.1} parent=11 // pred_fallthru
          _
        // Predicated region
        $region25: #{tpu_custom_call.1} parent=11 // pred_check
          %p218 = pneg %p126
        $region26: #{tpu_custom_call.1} parent=11 // pred_check_branch
          %220 = sbr.rel (%p218) target = $region28
        $region27: #{tpu_custom_call.1} parent=11 // pred_region
          _
        $region28: #{tpu_custom_call.1} parent=11 // pred_fallthru
          _
        // Predicated region
        $region29: #{tpu_custom_call.1} parent=11 // pred_check
          %p221 = pneg %p147
        $region30: #{tpu_custom_call.1} parent=11 // pred_check_branch
          %223 = sbr.rel (%p221) target = $region32
        $region31: #{tpu_custom_call.1} parent=11 // pred_region
          _
        $region32: #{tpu_custom_call.1} parent=11 // pred_fallthru
          _
        // Predicated region
        $region33: #{tpu_custom_call.1} parent=11 // pred_check
          %p224 = pneg %p168
        $region34: #{tpu_custom_call.1} parent=11 // pred_check_branch
          %226 = sbr.rel (%p224) target = $region36
        $region35: #{tpu_custom_call.1} parent=11 // pred_region
          _
        $region36: #{tpu_custom_call.1} parent=11 // pred_fallthru
          _
      $region12: #{tpu_custom_call.1} parent=5 // pred_fallthru
        _
      %p227 = scmp.lt.s32.totalorder %s16, 2
      // Predicated region
      $region37: #{tpu_custom_call.1} parent=5 // pred_check
        %p228 = pneg %p227
      $region38: #{tpu_custom_call.1} parent=5 // pred_check_branch
        %230 = sbr.rel (%p228) target = $region40
      $region39: #{tpu_custom_call.1} parent=5 // pred_region
        // Predicated region
        $region41: #{tpu_custom_call.1} parent=39 // pred_check
          %p231 = pneg %p36
        $region42: #{tpu_custom_call.1} parent=39 // pred_check_branch
          %233 = sbr.rel (%p231) target = $region44
        $region43: #{tpu_custom_call.1} parent=39 // pred_region
          %p234 = scmp.lt.s32.totalorder %s16, 1
          %s235 = scalar_select %p234, %s16, 1
          %s236 = smul.addr %s235, 8
          %s237 = scalar_lea.vmem %s0, %s236
        $region44: #{tpu_custom_call.1} parent=39 // pred_fallthru
          _
      $region40: #{tpu_custom_call.1} parent=5 // pred_fallthru
        _
      %p238 = scmp.le.s32.totalorder 1, %s16
      %p239 = scmp.lt.s32.totalorder %s16, 3
      %p240 = pnand %p238, %p239
      %p241 = pneg %p240
      // Predicated region
      $region45: #{tpu_custom_call.1} parent=5 // pred_check
        _
      $region46: #{tpu_custom_call.1} parent=5 // pred_check_branch
        %243 = sbr.rel (%p240) target = $region48
      $region47: #{tpu_custom_call.1} parent=5 // pred_region
        %s244 = ssub.s32 %s16, 1
        %p245 = scmp.lt.s32.totalorder %s21, 1
        %s246 = scalar_select %p245, %s21, 1
        %s247 = smul.addr %s246, 8
        %s248 = scalar_lea.vmem %s0, %s247
        %p249 = pneg %p42
        %p250 = pneg %p39
        %p251 = pneg %p63
        %p252 = pneg %p60
        %p253 = pneg %p84
        %p254 = pneg %p81
        %p255 = pneg %p105
        %p256 = pneg %p102
        %p257 = pneg %p126
        %p258 = pneg %p123
        %p259 = pneg %p147
        %p260 = pneg %p144
        %p261 = pneg %p168
        %p262 = pneg %p165
        %p263 = pneg %p194
        %p264 = pneg %p191
        %s265 = sand.u32 %s181, 1
        %s266 = scalar_lea.sflag [#allocation3], %s265
        %s267 = sand.u32 %s181, 1
        %s268 = scalar_lea.vmem [#allocation2], %s267
        %p269 = scmp.lt.s32.totalorder %s21, 1
        %s270 = scalar_select %p269, %s21, 1
        %s271 = smul.addr %s270, 8
        %s272 = scalar_lea.vmem %s0, %s271
        %v273 = vld [vmem:[%s272] sm:$0xff]
        %s274 = scalar_lea.vmem %s1, 320
        %v275 = vld [vmem:[%s274] sm:$0xff]
        %v276 = vld [vmem:[%s274 + $0x8] sm:$0xff]
        %v277 = vld [vmem:[%s274 + $0x10] sm:$0xff]
        %v278 = vld [vmem:[%s274 + $0x18] sm:$0xff]
        %v279 = vld [vmem:[%s274 + $0x20] sm:$0xff]
        %v280 = vld [vmem:[%s274 + $0x28] sm:$0xff]
        %v281 = vld [vmem:[%s274 + $0x30] sm:$0xff]
        %v282 = vld [vmem:[%s274 + $0x38] sm:$0xff]
        %s283 = scalar_lea.vmem %s2, 320
        %v284 = vld [vmem:[%s283] sm:$0xff]
        %v285 = vld [vmem:[%s283 + $0x8] sm:$0xff]
        %v286 = vld [vmem:[%s283 + $0x10] sm:$0xff]
        %v287 = vld [vmem:[%s283 + $0x18] sm:$0xff]
        %v288 = vld [vmem:[%s283 + $0x20] sm:$0xff]
        %v289 = vld [vmem:[%s283 + $0x28] sm:$0xff]
        %v290 = vld [vmem:[%s283 + $0x30] sm:$0xff]
        %v291 = vld [vmem:[%s283 + $0x38] sm:$0xff]
        %293 = vset.pattern.permute.xlu0 0
        %294 = vperm.xlu0 %293, %v284
        %v295 = vpop.permute.xlu0 %294
        %298 = vset.pattern.permute.xlu0 0
        %299 = vperm.xlu0 %298, %v285
        %v300 = vpop.permute.xlu0 %299
        %303 = vset.pattern.permute.xlu0 0
        %304 = vperm.xlu0 %303, %v286
        %v305 = vpop.permute.xlu0 %304
        %308 = vset.pattern.permute.xlu0 0
        %309 = vperm.xlu0 %308, %v287
        %v310 = vpop.permute.xlu0 %309
        %313 = vset.pattern.permute.xlu0 0
        %314 = vperm.xlu0 %313, %v288
        %v315 = vpop.permute.xlu0 %314
        %318 = vset.pattern.permute.xlu0 0
        %319 = vperm.xlu0 %318, %v289
        %v320 = vpop.permute.xlu0 %319
        %323 = vset.pattern.permute.xlu0 0
        %324 = vperm.xlu0 %323, %v290
        %v325 = vpop.permute.xlu0 %324
        %328 = vset.pattern.permute.xlu0 0
        %329 = vperm.xlu0 %328, %v291
        %v330 = vpop.permute.xlu0 %329
        %vm332 = vcmask 64512
        %v334 = vsel %vm332, %v275, 0
        %v337 = vsel %vm332, %v276, 0
        %v340 = vsel %vm332, %v277, 0
        %v343 = vsel %vm332, %v278, 0
        %v346 = vsel %vm332, %v279, 0
        %v349 = vsel %vm332, %v280, 0
        %v352 = vsel %vm332, %v281, 0
        %v355 = vsel %vm332, %v282, 0
        %357 = vmatprep.subr.mxu0 0.0
        %358 = vmatpush1.msra.mxu0 %v273
        %359 = vmatprep.subr.mxu0 0.0
        %360 = vmatpush1.msra.mxu0 0.0
        %361 = vmatprep.subr.mxu0 0.0
        %362 = vmatpush1.msra.mxu0 0.0
        %363 = vmatprep.subr.mxu0 0.0
        %364 = vmatpush1.msra.mxu0 0.0
        %365 = vmatprep.subr.mxu0 0.0
        %366 = vmatpush1.msra.mxu0 0.0
        %367 = vmatprep.subr.mxu0 0.0
        %368 = vmatpush1.msra.mxu0 0.0
        %369 = vmatprep.subr.mxu0 0.0
        %370 = vmatpush1.msra.mxu0 0.0
        %371 = vmatprep.subr.mxu0 0.0
        %372 = vmatpush1.msra.mxu0 0.0
        %373 = vmatprep.subr.mxu0 0.0
        %374 = vmatpush1.msra.mxu0 0.0
        %375 = vmatprep.subr.mxu0 0.0
        %376 = vmatpush1.msra.mxu0 0.0
        %377 = vmatprep.subr.mxu0 0.0
        %378 = vmatpush1.msra.mxu0 0.0
        %379 = vmatprep.subr.mxu0 0.0
        %380 = vmatpush1.msra.mxu0 0.0
        %381 = vmatprep.subr.mxu0 0.0
        %382 = vmatpush1.msra.mxu0 0.0
        %383 = vmatprep.subr.mxu0 0.0
        %384 = vmatpush1.msra.mxu0 0.0
        %385 = vmatprep.subr.mxu0 0.0
        %386 = vmatpush1.msra.mxu0 0.0
        %387 = vmatprep.subr.mxu0 0.0
        %388 = vmatpush1.msra.mxu0 0.0
        %389 = vmatprep.subr.mxu0 0.0
        %390 = vmatpush1.msra.mxu0 0.0
        %391 = vmatprep.subr.mxu0 0.0
        %392 = vmatpush1.msra.mxu0 0.0
        %393 = vmatprep.subr.mxu0 0.0
        %394 = vmatpush1.msra.mxu0 0.0
        %395 = vmatprep.subr.mxu0 0.0
        %396 = vmatpush1.msra.mxu0 0.0
        %397 = vmatprep.subr.mxu0 0.0
        %398 = vmatpush1.msra.mxu0 0.0
        %399 = vmatprep.subr.mxu0 0.0
        %400 = vmatpush1.msra.mxu0 0.0
        %401 = vmatprep.subr.mxu0 0.0
        %402 = vmatpush1.msra.mxu0 0.0
        %403 = vmatprep.subr.mxu0 0.0
        %404 = vmatpush1.msra.mxu0 0.0
        %405 = vmatprep.subr.mxu0 0.0
        %406 = vmatpush1.msra.mxu0 0.0
        %407 = vmatprep.subr.mxu0 0.0
        %408 = vmatpush1.msra.mxu0 0.0
        %409 = vmatprep.subr.mxu0 0.0
        %410 = vmatpush1.msra.mxu0 0.0
        %411 = vmatprep.subr.mxu0 0.0
        %412 = vmatpush1.msra.mxu0 0.0
        %413 = vmatprep.subr.mxu0 0.0
        %414 = vmatpush1.msra.mxu0 0.0
        %415 = vmatprep.subr.mxu0 0.0
        %416 = vmatpush1.msra.mxu0 0.0
        %417 = vmatprep.subr.mxu0 0.0
        %418 = vmatpush1.msra.mxu0 0.0
        %419 = vmatprep.subr.mxu0 0.0
        %420 = vmatpush1.msra.mxu0 0.0
        %421 = vmatprep.mubr.f32.mxu0 0.0
        %422 = vmatmul.mubr.f32.gmra.mrb[0].mxu0 %v334
        %v423 = vpop.f32.mrb[0].mxu0
        %v424 = vadd.f32 %v295, %v423
        %v425 = vpop.f32.mrb[0].mxu0
        %426 = vmatprep.mubr.f32.mxu0 0.0
        %427 = vmatmul.mubr.f32.gmra.mrb[0].mxu0 %v337
        %v428 = vpop.f32.mrb[0].mxu0
        %v429 = vadd.f32 %v300, %v428
        %v430 = vpop.f32.mrb[0].mxu0
        %431 = vmatprep.mubr.f32.mxu0 0.0
        %432 = vmatmul.mubr.f32.gmra.mrb[0].mxu0 %v340
        %v433 = vpop.f32.mrb[0].mxu0
        %v434 = vadd.f32 %v305, %v433
        %v435 = vpop.f32.mrb[0].mxu0
        %436 = vmatprep.mubr.f32.mxu0 0.0
        %437 = vmatmul.mubr.f32.gmra.mrb[0].mxu0 %v343
        %v438 = vpop.f32.mrb[0].mxu0
        %v439 = vadd.f32 %v310, %v438
        %v440 = vpop.f32.mrb[0].mxu0
        %441 = vmatprep.mubr.f32.mxu0 0.0
        %442 = vmatmul.mubr.f32.gmra.mrb[0].mxu0 %v346
        %v443 = vpop.f32.mrb[0].mxu0
        %v444 = vadd.f32 %v315, %v443
        %v445 = vpop.f32.mrb[0].mxu0
        %446 = vmatprep.mubr.f32.mxu0 0.0
        %447 = vmatmul.mubr.f32.gmra.mrb[0].mxu0 %v349
        %v448 = vpop.f32.mrb[0].mxu0
        %v449 = vadd.f32 %v320, %v448
        %v450 = vpop.f32.mrb[0].mxu0
        %451 = vmatprep.mubr.f32.mxu0 0.0
        %452 = vmatmul.mubr.f32.gmra.mrb[0].mxu0 %v352
        %v453 = vpop.f32.mrb[0].mxu0
        %v454 = vadd.f32 %v325, %v453
        %v455 = vpop.f32.mrb[0].mxu0
        %456 = vmatprep.mubr.f32.mxu0 0.0
        %457 = vmatmul.mubr.f32.gmra.mrb[0].mxu0 %v355
        %v458 = vpop.f32.mrb[0].mxu0
        %v459 = vadd.f32 %v330, %v458
        %v460 = vpop.f32.mrb[0].mxu0
        %461 = vdwg.mxu0
        %v462 = vmul.f32 %v424, 0.01
        %v463 = vmul.f32 %v429, 0.01
        %v464 = vmul.f32 %v434, 0.01
        %v465 = vmul.f32 %v439, 0.01
        %v466 = vmul.f32 %v444, 0.01
        %v467 = vmul.f32 %v449, 0.01
        %v468 = vmul.f32 %v454, 0.01
        %v469 = vmul.f32 %v459, 0.01
        %v470 = vmax.f32 %v424, %v462
        %v471 = vmax.f32 %v429, %v463
        %v472 = vmax.f32 %v434, %v464
        %v473 = vmax.f32 %v439, %v465
        %v474 = vmax.f32 %v444, %v466
        %v475 = vmax.f32 %v449, %v467
        %v476 = vmax.f32 %v454, %v468
        %v477 = vmax.f32 %v459, %v469
        %s478 = scalar_lea.vmem %s3, 320
        %v479 = vld [vmem:[%s478] sm:$0xff]
        %v480 = vld [vmem:[%s478 + $0x8] sm:$0xff]
        %v481 = vld [vmem:[%s478 + $0x10] sm:$0xff]
        %v482 = vld [vmem:[%s478 + $0x18] sm:$0xff]
        %v483 = vld [vmem:[%s478 + $0x20] sm:$0xff]
        %v484 = vld [vmem:[%s478 + $0x28] sm:$0xff]
        %v485 = vld [vmem:[%s478 + $0x30] sm:$0xff]
        %v486 = vld [vmem:[%s478 + $0x38] sm:$0xff]
        %s487 = scalar_lea.vmem %s4, 320
        %v488 = vld [vmem:[%s487] sm:$0xff]
        %v489 = vld [vmem:[%s487 + $0x8] sm:$0xff]
        %v490 = vld [vmem:[%s487 + $0x10] sm:$0xff]
        %v491 = vld [vmem:[%s487 + $0x18] sm:$0xff]
        %v492 = vld [vmem:[%s487 + $0x20] sm:$0xff]
        %v493 = vld [vmem:[%s487 + $0x28] sm:$0xff]
        %v494 = vld [vmem:[%s487 + $0x30] sm:$0xff]
        %v495 = vld [vmem:[%s487 + $0x38] sm:$0xff]
        %497 = vset.pattern.permute.xlu0 0
        %498 = vperm.xlu0 %497, %v488
        %v499 = vpop.permute.xlu0 %498
        %502 = vset.pattern.permute.xlu0 0
        %503 = vperm.xlu0 %502, %v489
        %v504 = vpop.permute.xlu0 %503
        %507 = vset.pattern.permute.xlu0 0
        %508 = vperm.xlu0 %507, %v490
        %v509 = vpop.permute.xlu0 %508
        %512 = vset.pattern.permute.xlu0 0
        %513 = vperm.xlu0 %512, %v491
        %v514 = vpop.permute.xlu0 %513
        %517 = vset.pattern.permute.xlu0 0
        %518 = vperm.xlu0 %517, %v492
        %v519 = vpop.permute.xlu0 %518
        %522 = vset.pattern.permute.xlu0 0
        %523 = vperm.xlu0 %522, %v493
        %v524 = vpop.permute.xlu0 %523
        %527 = vset.pattern.permute.xlu0 0
        %528 = vperm.xlu0 %527, %v494
        %v529 = vpop.permute.xlu0 %528
        %532 = vset.pattern.permute.xlu0 0
        %533 = vperm.xlu0 %532, %v495
        %v534 = vpop.permute.xlu0 %533
        %vm536 = vcmask 523264
        %v538 = vsel %vm536, %v479, 0
        %v541 = vsel %vm536, %v480, 0
        %v544 = vsel %vm536, %v481, 0
        %v547 = vsel %vm536, %v482, 0
        %v550 = vsel %vm536, %v483, 0
        %v553 = vsel %vm536, %v484, 0
        %v556 = vsel %vm536, %v485, 0
        %v559 = vsel %vm536, %v486, 0
        %561 = vmatprep.subr.mxu0 0.0
        %562 = vmatpush1.msra.mxu0 %v470
        %563 = vmatprep.subr.mxu0 0.0
        %564 = vmatpush1.msra.mxu0 %v471
        %565 = vmatprep.subr.mxu0 0.0
        %566 = vmatpush1.msra.mxu0 %v472
        %567 = vmatprep.subr.mxu0 0.0
        %568 = vmatpush1.msra.mxu0 %v473
        %569 = vmatprep.subr.mxu0 0.0
        %570 = vmatpush1.msra.mxu0 %v474
        %571 = vmatprep.subr.mxu0 0.0
        %572 = vmatpush1.msra.mxu0 %v475
        %573 = vmatprep.subr.mxu0 0.0
        %574 = vmatpush1.msra.mxu0 %v476
        %575 = vmatprep.subr.mxu0 0.0
        %576 = vmatpush1.msra.mxu0 %v477
        %577 = vmatprep.subr.mxu0 0.0
        %578 = vmatpush1.msra.mxu0 0.0
        %579 = vmatprep.subr.mxu0 0.0
        %580 = vmatpush1.msra.mxu0 0.0
        %581 = vmatprep.subr.mxu0 0.0
        %582 = vmatpush1.msra.mxu0 0.0
        %583 = vmatprep.subr.mxu0 0.0
        %584 = vmatpush1.msra.mxu0 0.0
        %585 = vmatprep.subr.mxu0 0.0
        %586 = vmatpush1.msra.mxu0 0.0
        %587 = vmatprep.subr.mxu0 0.0
        %588 = vmatpush1.msra.mxu0 0.0
        %589 = vmatprep.subr.mxu0 0.0
        %590 = vmatpush1.msra.mxu0 0.0
        %591 = vmatprep.subr.mxu0 0.0
        %592 = vmatpush1.msra.mxu0 0.0
        %593 = vmatprep.subr.mxu0 0.0
        %594 = vmatpush1.msra.mxu0 0.0
        %595 = vmatprep.subr.mxu0 0.0
        %596 = vmatpush1.msra.mxu0 0.0
        %597 = vmatprep.subr.mxu0 0.0
        %598 = vmatpush1.msra.mxu0 0.0
        %599 = vmatprep.subr.mxu0 0.0
        %600 = vmatpush1.msra.mxu0 0.0
        %601 = vmatprep.subr.mxu0 0.0
        %602 = vmatpush1.msra.mxu0 0.0
        %603 = vmatprep.subr.mxu0 0.0
        %604 = vmatpush1.msra.mxu0 0.0
        %605 = vmatprep.subr.mxu0 0.0
        %606 = vmatpush1.msra.mxu0 0.0
        %607 = vmatprep.subr.mxu0 0.0
        %608 = vmatpush1.msra.mxu0 0.0
        %609 = vmatprep.subr.mxu0 0.0
        %610 = vmatpush1.msra.mxu0 0.0
        %611 = vmatprep.subr.mxu0 0.0
        %612 = vmatpush1.msra.mxu0 0.0
        %613 = vmatprep.subr.mxu0 0.0
        %614 = vmatpush1.msra.mxu0 0.0
        %615 = vmatprep.subr.mxu0 0.0
        %616 = vmatpush1.msra.mxu0 0.0
        %617 = vmatprep.subr.mxu0 0.0
        %618 = vmatpush1.msra.mxu0 0.0
        %619 = vmatprep.subr.mxu0 0.0
        %620 = vmatpush1.msra.mxu0 0.0
        %621 = vmatprep.subr.mxu0 0.0
        %622 = vmatpush1.msra.mxu0 0.0
        %623 = vmatprep.subr.mxu0 0.0
        %624 = vmatpush1.msra.mxu0 0.0
        %625 = vmatprep.mubr.f32.mxu0 0.0
        %626 = vmatmul.mubr.f32.gmra.mrb[0].mxu0 %v538
        %v627 = vpop.f32.mrb[0].mxu0
        %v628 = vadd.f32 %v499, %v627
        %v629 = vpop.f32.mrb[0].mxu0
        %630 = vmatprep.mubr.f32.mxu0 0.0
        %631 = vmatmul.mubr.f32.gmra.mrb[0].mxu0 %v541
        %v632 = vpop.f32.mrb[0].mxu0
        %v633 = vadd.f32 %v504, %v632
        %v634 = vpop.f32.mrb[0].mxu0
        %635 = vmatprep.mubr.f32.mxu0 0.0
        %636 = vmatmul.mubr.f32.gmra.mrb[0].mxu0 %v544
        %v637 = vpop.f32.mrb[0].mxu0
        %v638 = vadd.f32 %v509, %v637
        %v639 = vpop.f32.mrb[0].mxu0
        %640 = vmatprep.mubr.f32.mxu0 0.0
        %641 = vmatmul.mubr.f32.gmra.mrb[0].mxu0 %v547
        %v642 = vpop.f32.mrb[0].mxu0
        %v643 = vadd.f32 %v514, %v642
        %v644 = vpop.f32.mrb[0].mxu0
        %645 = vmatprep.mubr.f32.mxu0 0.0
        %646 = vmatmul.mubr.f32.gmra.mrb[0].mxu0 %v550
        %v647 = vpop.f32.mrb[0].mxu0
        %v648 = vadd.f32 %v519, %v647
        %v649 = vpop.f32.mrb[0].mxu0
        %650 = vmatprep.mubr.f32.mxu0 0.0
        %651 = vmatmul.mubr.f32.gmra.mrb[0].mxu0 %v553
        %v652 = vpop.f32.mrb[0].mxu0
        %v653 = vadd.f32 %v524, %v652
        %v654 = vpop.f32.mrb[0].mxu0
        %655 = vmatprep.mubr.f32.mxu0 0.0
        %656 = vmatmul.mubr.f32.gmra.mrb[0].mxu0 %v556
        %v657 = vpop.f32.mrb[0].mxu0
        %v658 = vadd.f32 %v529, %v657
        %v659 = vpop.f32.mrb[0].mxu0
        %660 = vmatprep.mubr.f32.mxu0 0.0
        %661 = vmatmul.mubr.f32.gmra.mrb[0].mxu0 %v559
        %v662 = vpop.f32.mrb[0].mxu0
        %v663 = vadd.f32 %v534, %v662
        %v664 = vpop.f32.mrb[0].mxu0
        %665 = vdwg.mxu0
        %v666 = vmul.f32 %v628, 0.01
        %v667 = vmul.f32 %v633, 0.01
        %v668 = vmul.f32 %v638, 0.01
        %v669 = vmul.f32 %v643, 0.01
        %v670 = vmul.f32 %v648, 0.01
        %v671 = vmul.f32 %v653, 0.01
        %v672 = vmul.f32 %v658, 0.01
        %v673 = vmul.f32 %v663, 0.01
        %v674 = vmax.f32 %v628, %v666
        %v675 = vmax.f32 %v633, %v667
        %v676 = vmax.f32 %v638, %v668
        %v677 = vmax.f32 %v643, %v669
        %v678 = vmax.f32 %v648, %v670
        %v679 = vmax.f32 %v653, %v671
        %v680 = vmax.f32 %v658, %v672
        %v681 = vmax.f32 %v663, %v673
        %s682 = scalar_lea.vmem %s5, 80
        %v683 = vld [vmem:[%s682] sm:$0xff]
        %v684 = vld [vmem:[%s682 + $0x8] sm:$0xff]
        %s685 = scalar_lea.vmem %s6, 80
        %v686 = vld [vmem:[%s685] sm:$0xff]
        %v687 = vld [vmem:[%s685 + $0x8] sm:$0xff]
        %689 = vset.pattern.permute.xlu0 0
        %690 = vperm.xlu0 %689, %v686
        %v691 = vpop.permute.xlu0 %690
        %694 = vset.pattern.permute.xlu0 0
        %695 = vperm.xlu0 %694, %v687
        %v696 = vpop.permute.xlu0 %695
        %v699 = vsel %vm536, %v683, 0
        %v702 = vsel %vm536, %v684, 0
        %704 = vmatprep.subr.mxu0 0.0
        %705 = vmatpush1.msra.mxu0 %v674
        %706 = vmatprep.subr.mxu0 0.0
        %707 = vmatpush1.msra.mxu0 %v675
        %708 = vmatprep.subr.mxu0 0.0
        %709 = vmatpush1.msra.mxu0 %v676
        %710 = vmatprep.subr.mxu0 0.0
        %711 = vmatpush1.msra.mxu0 %v677
        %712 = vmatprep.subr.mxu0 0.0
        %713 = vmatpush1.msra.mxu0 %v678
        %714 = vmatprep.subr.mxu0 0.0
        %715 = vmatpush1.msra.mxu0 %v679
        %716 = vmatprep.subr.mxu0 0.0
        %717 = vmatpush1.msra.mxu0 %v680
        %718 = vmatprep.subr.mxu0 0.0
        %719 = vmatpush1.msra.mxu0 %v681
        %720 = vmatprep.subr.mxu0 0.0
        %721 = vmatpush1.msra.mxu0 0.0
        %722 = vmatprep.subr.mxu0 0.0
        %723 = vmatpush1.msra.mxu0 0.0
        %724 = vmatprep.subr.mxu0 0.0
        %725 = vmatpush1.msra.mxu0 0.0
        %726 = vmatprep.subr.mxu0 0.0
        %727 = vmatpush1.msra.mxu0 0.0
        %728 = vmatprep.subr.mxu0 0.0
        %729 = vmatpush1.msra.mxu0 0.0
        %730 = vmatprep.subr.mxu0 0.0
        %731 = vmatpush1.msra.mxu0 0.0
        %732 = vmatprep.subr.mxu0 0.0
        %733 = vmatpush1.msra.mxu0 0.0
        %734 = vmatprep.subr.mxu0 0.0
        %735 = vmatpush1.msra.mxu0 0.0
        %736 = vmatprep.subr.mxu0 0.0
        %737 = vmatpush1.msra.mxu0 0.0
        %738 = vmatprep.subr.mxu0 0.0
        %739 = vmatpush1.msra.mxu0 0.0
        %740 = vmatprep.subr.mxu0 0.0
        %741 = vmatpush1.msra.mxu0 0.0
        %742 = vmatprep.subr.mxu0 0.0
        %743 = vmatpush1.msra.mxu0 0.0
        %744 = vmatprep.subr.mxu0 0.0
        %745 = vmatpush1.msra.mxu0 0.0
        %746 = vmatprep.subr.mxu0 0.0
        %747 = vmatpush1.msra.mxu0 0.0
        %748 = vmatprep.subr.mxu0 0.0
        %749 = vmatpush1.msra.mxu0 0.0
        %750 = vmatprep.subr.mxu0 0.0
        %751 = vmatpush1.msra.mxu0 0.0
        %752 = vmatprep.subr.mxu0 0.0
        %753 = vmatpush1.msra.mxu0 0.0
        %754 = vmatprep.subr.mxu0 0.0
        %755 = vmatpush1.msra.mxu0 0.0
        %756 = vmatprep.subr.mxu0 0.0
        %757 = vmatpush1.msra.mxu0 0.0
        %758 = vmatprep.subr.mxu0 0.0
        %759 = vmatpush1.msra.mxu0 0.0
        %760 = vmatprep.subr.mxu0 0.0
        %761 = vmatpush1.msra.mxu0 0.0
        %762 = vmatprep.subr.mxu0 0.0
        %763 = vmatpush1.msra.mxu0 0.0
        %764 = vmatprep.subr.mxu0 0.0
        %765 = vmatpush1.msra.mxu0 0.0
        %766 = vmatprep.subr.mxu0 0.0
        %767 = vmatpush1.msra.mxu0 0.0
        %768 = vmatprep.mubr.f32.mxu0 0.0
        %769 = vmatmul.mubr.f32.gmra.mrb[0].mxu0 %v699
        %v770 = vpop.f32.mrb[0].mxu0
        %v771 = vadd.f32 %v691, %v770
        %v772 = vpop.f32.mrb[0].mxu0
        %773 = vmatprep.mubr.f32.mxu0 0.0
        %774 = vmatmul.mubr.f32.gmra.mrb[0].mxu0 %v702
        %v775 = vpop.f32.mrb[0].mxu0
        %v776 = vadd.f32 %v696, %v775
        %v777 = vpop.f32.mrb[0].mxu0
        %778 = vdwg.mxu0
        %v779 = vtanh.pop %v771
        %v780 = vsub.f32 %v273, %v776
        %v781 = vsub.f32 0.0, %v779
        %v782 = vmul.f32 %v781, 1.442695
        %v783 = vpow.pop %v782
        %v784 = vmul.f32 %v780, %v783
        %v785 = vrot.slane %v779, 4
        %v786 = vadd.f32 %v779, %v785
        %v787 = vrot.slane %v786, 2
        %v788 = vadd.f32 %v786, %v787
        %v789 = vrot.slane %v788, 1
        %v790 = vadd.f32 %v788, %v789
        %v791 = vsub.f32 0.0, %v790
        %s792 = scalar_lea.vmem %s1, 256
        %v793 = vld [vmem:[%s792] sm:$0xff]
        %v794 = vld [vmem:[%s792 + $0x8] sm:$0xff]
        %v795 = vld [vmem:[%s792 + $0x10] sm:$0xff]
        %v796 = vld [vmem:[%s792 + $0x18] sm:$0xff]
        %v797 = vld [vmem:[%s792 + $0x20] sm:$0xff]
        %v798 = vld [vmem:[%s792 + $0x28] sm:$0xff]
        %v799 = vld [vmem:[%s792 + $0x30] sm:$0xff]
        %v800 = vld [vmem:[%s792 + $0x38] sm:$0xff]
        %s801 = scalar_lea.vmem %s2, 256
        %v802 = vld [vmem:[%s801] sm:$0xff]
        %v803 = vld [vmem:[%s801 + $0x8] sm:$0xff]
        %v804 = vld [vmem:[%s801 + $0x10] sm:$0xff]
        %v805 = vld [vmem:[%s801 + $0x18] sm:$0xff]
        %v806 = vld [vmem:[%s801 + $0x20] sm:$0xff]
        %v807 = vld [vmem:[%s801 + $0x28] sm:$0xff]
        %v808 = vld [vmem:[%s801 + $0x30] sm:$0xff]
        %v809 = vld [vmem:[%s801 + $0x38] sm:$0xff]
        %811 = vset.pattern.permute.xlu0 0
        %812 = vperm.xlu0 %811, %v802
        %v813 = vpop.permute.xlu0 %812
        %816 = vset.pattern.permute.xlu0 0
        %817 = vperm.xlu0 %816, %v803
        %v818 = vpop.permute.xlu0 %817
        %821 = vset.pattern.permute.xlu0 0
        %822 = vperm.xlu0 %821, %v804
        %v823 = vpop.permute.xlu0 %822
        %826 = vset.pattern.permute.xlu0 0
        %827 = vperm.xlu0 %826, %v805
        %v828 = vpop.permute.xlu0 %827
        %831 = vset.pattern.permute.xlu0 0
        %832 = vperm.xlu0 %831, %v806
        %v833 = vpop.permute.xlu0 %832
        %836 = vset.pattern.permute.xlu0 0
        %837 = vperm.xlu0 %836, %v807
        %v838 = vpop.permute.xlu0 %837
        %841 = vset.pattern.permute.xlu0 0
        %842 = vperm.xlu0 %841, %v808
        %v843 = vpop.permute.xlu0 %842
        %846 = vset.pattern.permute.xlu0 0
        %847 = vperm.xlu0 %846, %v809
        %v848 = vpop.permute.xlu0 %847
        %v851 = vsel %vm332, %v793, 0
        %v854 = vsel %vm332, %v794, 0
        %v857 = vsel %vm332, %v795, 0
        %v860 = vsel %vm332, %v796, 0
        %v863 = vsel %vm332, %v797, 0
        %v866 = vsel %vm332, %v798, 0
        %v869 = vsel %vm332, %v799, 0
        %v872 = vsel %vm332, %v800, 0
        %874 = vmatprep.subr.mxu0 0.0
        %875 = vmatpush1.msra.mxu0 %v784
        %876 = vmatprep.subr.mxu0 0.0
        %877 = vmatpush1.msra.mxu0 0.0
        %878 = vmatprep.subr.mxu0 0.0
        %879 = vmatpush1.msra.mxu0 0.0
        %880 = vmatprep.subr.mxu0 0.0
        %881 = vmatpush1.msra.mxu0 0.0
        %882 = vmatprep.subr.mxu0 0.0
        %883 = vmatpush1.msra.mxu0 0.0
        %884 = vmatprep.subr.mxu0 0.0
        %885 = vmatpush1.msra.mxu0 0.0
        %886 = vmatprep.subr.mxu0 0.0
        %887 = vmatpush1.msra.mxu0 0.0
        %888 = vmatprep.subr.mxu0 0.0
        %889 = vmatpush1.msra.mxu0 0.0
        %890 = vmatprep.subr.mxu0 0.0
        %891 = vmatpush1.msra.mxu0 0.0
        %892 = vmatprep.subr.mxu0 0.0
        %893 = vmatpush1.msra.mxu0 0.0
        %894 = vmatprep.subr.mxu0 0.0
        %895 = vmatpush1.msra.mxu0 0.0
        %896 = vmatprep.subr.mxu0 0.0
        %897 = vmatpush1.msra.mxu0 0.0
        %898 = vmatprep.subr.mxu0 0.0
        %899 = vmatpush1.msra.mxu0 0.0
        %900 = vmatprep.subr.mxu0 0.0
        %901 = vmatpush1.msra.mxu0 0.0
        %902 = vmatprep.subr.mxu0 0.0
        %903 = vmatpush1.msra.mxu0 0.0
        %904 = vmatprep.subr.mxu0 0.0
        %905 = vmatpush1.msra.mxu0 0.0
        %906 = vmatprep.subr.mxu0 0.0
        %907 = vmatpush1.msra.mxu0 0.0
        %908 = vmatprep.subr.mxu0 0.0
        %909 = vmatpush1.msra.mxu0 0.0
        %910 = vmatprep.subr.mxu0 0.0
        %911 = vmatpush1.msra.mxu0 0.0
        %912 = vmatprep.subr.mxu0 0.0
        %913 = vmatpush1.msra.mxu0 0.0
        %914 = vmatprep.subr.mxu0 0.0
        %915 = vmatpush1.msra.mxu0 0.0
        %916 = vmatprep.subr.mxu0 0.0
        %917 = vmatpush1.msra.mxu0 0.0
        %918 = vmatprep.subr.mxu0 0.0
        %919 = vmatpush1.msra.mxu0 0.0
        %920 = vmatprep.subr.mxu0 0.0
        %921 = vmatpush1.msra.mxu0 0.0
        %922 = vmatprep.subr.mxu0 0.0
        %923 = vmatpush1.msra.mxu0 0.0
        %924 = vmatprep.subr.mxu0 0.0
        %925 = vmatpush1.msra.mxu0 0.0
        %926 = vmatprep.subr.mxu0 0.0
        %927 = vmatpush1.msra.mxu0 0.0
        %928 = vmatprep.subr.mxu0 0.0
        %929 = vmatpush1.msra.mxu0 0.0
        %930 = vmatprep.subr.mxu0 0.0
        %931 = vmatpush1.msra.mxu0 0.0
        %932 = vmatprep.subr.mxu0 0.0
        %933 = vmatpush1.msra.mxu0 0.0
        %934 = vmatprep.subr.mxu0 0.0
        %935 = vmatpush1.msra.mxu0 0.0
        %936 = vmatprep.subr.mxu0 0.0
        %937 = vmatpush1.msra.mxu0 0.0
        %938 = vmatprep.mubr.f32.mxu0 0.0
        %939 = vmatmul.mubr.f32.gmra.mrb[0].mxu0 %v851
        %v940 = vpop.f32.mrb[0].mxu0
        %v941 = vadd.f32 %v813, %v940
        %v942 = vpop.f32.mrb[0].mxu0
        %943 = vmatprep.mubr.f32.mxu0 0.0
        %944 = vmatmul.mubr.f32.gmra.mrb[0].mxu0 %v854
        %v945 = vpop.f32.mrb[0].mxu0
        %v946 = vadd.f32 %v818, %v945
        %v947 = vpop.f32.mrb[0].mxu0
        %948 = vmatprep.mubr.f32.mxu0 0.0
        %949 = vmatmul.mubr.f32.gmra.mrb[0].mxu0 %v857
        %v950 = vpop.f32.mrb[0].mxu0
        %v951 = vadd.f32 %v823, %v950
        %v952 = vpop.f32.mrb[0].mxu0
        %953 = vmatprep.mubr.f32.mxu0 0.0
        %954 = vmatmul.mubr.f32.gmra.mrb[0].mxu0 %v860
        %v955 = vpop.f32.mrb[0].mxu0
        %v956 = vadd.f32 %v828, %v955
        %v957 = vpop.f32.mrb[0].mxu0
        %958 = vmatprep.mubr.f32.mxu0 0.0
        %959 = vmatmul.mubr.f32.gmra.mrb[0].mxu0 %v863
        %v960 = vpop.f32.mrb[0].mxu0
        %v961 = vadd.f32 %v833, %v960
        %v962 = vpop.f32.mrb[0].mxu0
        %963 = vmatprep.mubr.f32.mxu0 0.0
        %964 = vmatmul.mubr.f32.gmra.mrb[0].mxu0 %v866
        %v965 = vpop.f32.mrb[0].mxu0
        %v966 = vadd.f32 %v838, %v965
        %v967 = vpop.f32.mrb[0].mxu0
        %968 = vmatprep.mubr.f32.mxu0 0.0
        %969 = vmatmul.mubr.f32.gmra.mrb[0].mxu0 %v869
        %v970 = vpop.f32.mrb[0].mxu0
        %v971 = vadd.f32 %v843, %v970
        %v972 = vpop.f32.mrb[0].mxu0
        %973 = vmatprep.mubr.f32.mxu0 0.0
        %974 = vmatmul.mubr.f32.gmra.mrb[0].mxu0 %v872
        %v975 = vpop.f32.mrb[0].mxu0
        %v976 = vadd.f32 %v848, %v975
        %v977 = vpop.f32.mrb[0].mxu0
        %978 = vdwg.mxu0
        %v979 = vmul.f32 %v941, 0.01
        %v980 = vmul.f32 %v946, 0.01
        %v981 = vmul.f32 %v951, 0.01
        %v982 = vmul.f32 %v956, 0.01
        %v983 = vmul.f32 %v961, 0.01
        %v984 = vmul.f32 %v966, 0.01
        %v985 = vmul.f32 %v971, 0.01
        %v986 = vmul.f32 %v976, 0.01
        %v987 = vmax.f32 %v941, %v979
        %v988 = vmax.f32 %v946, %v980
        %v989 = vmax.f32 %v951, %v981
        %v990 = vmax.f32 %v956, %v982
        %v991 = vmax.f32 %v961, %v983
        %v992 = vmax.f32 %v966, %v984
        %v993 = vmax.f32 %v971, %v985
        %v994 = vmax.f32 %v976, %v986
        %s995 = scalar_lea.vmem %s3, 256
        %v996 = vld [vmem:[%s995] sm:$0xff]
        %v997 = vld [vmem:[%s995 + $0x8] sm:$0xff]
        %v998 = vld [vmem:[%s995 + $0x10] sm:$0xff]
        %v999 = vld [vmem:[%s995 + $0x18] sm:$0xff]
        %v1000 = vld [vmem:[%s995 + $0x20] sm:$0xff]
        %v1001 = vld [vmem:[%s995 + $0x28] sm:$0xff]
        %v1002 = vld [vmem:[%s995 + $0x30] sm:$0xff]
        %v1003 = vld [vmem:[%s995 + $0x38] sm:$0xff]
        %s1004 = scalar_lea.vmem %s4, 256
        %v1005 = vld [vmem:[%s1004] sm:$0xff]
        %v1006 = vld [vmem:[%s1004 + $0x8] sm:$0xff]
        %v1007 = vld [vmem:[%s1004 + $0x10] sm:$0xff]
        %v1008 = vld [vmem:[%s1004 + $0x18] sm:$0xff]
        %v1009 = vld [vmem:[%s1004 + $0x20] sm:$0xff]
        %v1010 = vld [vmem:[%s1004 + $0x28] sm:$0xff]
        %v1011 = vld [vmem:[%s1004 + $0x30] sm:$0xff]
        %v1012 = vld [vmem:[%s1004 + $0x38] sm:$0xff]
        %1014 = vset.pattern.permute.xlu0 0
        %1015 = vperm.xlu0 %1014, %v1005
        %v1016 = vpop.permute.xlu0 %1015
        %1019 = vset.pattern.permute.xlu0 0
        %1020 = vperm.xlu0 %1019, %v1006
        %v1021 = vpop.permute.xlu0 %1020
        %1024 = vset.pattern.permute.xlu0 0
        %1025 = vperm.xlu0 %1024, %v1007
        %v1026 = vpop.permute.xlu0 %1025
        %1029 = vset.pattern.permute.xlu0 0
        %1030 = vperm.xlu0 %1029, %v1008
        %v1031 = vpop.permute.xlu0 %1030
        %1034 = vset.pattern.permute.xlu0 0
        %1035 = vperm.xlu0 %1034, %v1009
        %v1036 = vpop.permute.xlu0 %1035
        %1039 = vset.pattern.permute.xlu0 0
        %1040 = vperm.xlu0 %1039, %v1010
        %v1041 = vpop.permute.xlu0 %1040
        %1044 = vset.pattern.permute.xlu0 0
        %1045 = vperm.xlu0 %1044, %v1011
        %v1046 = vpop.permute.xlu0 %1045
        %1049 = vset.pattern.permute.xlu0 0
        %1050 = vperm.xlu0 %1049, %v1012
        %v1051 = vpop.permute.xlu0 %1050
        %v1054 = vsel %vm536, %v996, 0
        %v1057 = vsel %vm536, %v997, 0
        %v1060 = vsel %vm536, %v998, 0
        %v1063 = vsel %vm536, %v999, 0
        %v1066 = vsel %vm536, %v1000, 0
        %v1069 = vsel %vm536, %v1001, 0
        %v1072 = vsel %vm536, %v1002, 0
        %v1075 = vsel %vm536, %v1003, 0
        %1077 = vmatprep.subr.mxu0 0.0
        %1078 = vmatpush1.msra.mxu0 %v987
        %1079 = vmatprep.subr.mxu0 0.0
        %1080 = vmatpush1.msra.mxu0 %v988
        %1081 = vmatprep.subr.mxu0 0.0
        %1082 = vmatpush1.msra.mxu0 %v989
        %1083 = vmatprep.subr.mxu0 0.0
        %1084 = vmatpush1.msra.mxu0 %v990
        %1085 = vmatprep.subr.mxu0 0.0
        %1086 = vmatpush1.msra.mxu0 %v991
        %1087 = vmatprep.subr.mxu0 0.0
        %1088 = vmatpush1.msra.mxu0 %v992
        %1089 = vmatprep.subr.mxu0 0.0
        %1090 = vmatpush1.msra.mxu0 %v993
        %1091 = vmatprep.subr.mxu0 0.0
        %1092 = vmatpush1.msra.mxu0 %v994
        %1093 = vmatprep.subr.mxu0 0.0
        %1094 = vmatpush1.msra.mxu0 0.0
        %1095 = vmatprep.subr.mxu0 0.0
        %1096 = vmatpush1.msra.mxu0 0.0
        %1097 = vmatprep.subr.mxu0 0.0
        %1098 = vmatpush1.msra.mxu0 0.0
        %1099 = vmatprep.subr.mxu0 0.0
        %1100 = vmatpush1.msra.mxu0 0.0
        %1101 = vmatprep.subr.mxu0 0.0
        %1102 = vmatpush1.msra.mxu0 0.0
        %1103 = vmatprep.subr.mxu0 0.0
        %1104 = vmatpush1.msra.mxu0 0.0
        %1105 = vmatprep.subr.mxu0 0.0
        %1106 = vmatpush1.msra.mxu0 0.0
        %1107 = vmatprep.subr.mxu0 0.0
        %1108 = vmatpush1.msra.mxu0 0.0
        %1109 = vmatprep.subr.mxu0 0.0
        %1110 = vmatpush1.msra.mxu0 0.0
        %1111 = vmatprep.subr.mxu0 0.0
        %1112 = vmatpush1.msra.mxu0 0.0
        %1113 = vmatprep.subr.mxu0 0.0
        %1114 = vmatpush1.msra.mxu0 0.0
        %1115 = vmatprep.subr.mxu0 0.0
        %1116 = vmatpush1.msra.mxu0 0.0
        %1117 = vmatprep.subr.mxu0 0.0
        %1118 = vmatpush1.msra.mxu0 0.0
        %1119 = vmatprep.subr.mxu0 0.0
        %1120 = vmatpush1.msra.mxu0 0.0
        %1121 = vmatprep.subr.mxu0 0.0
        %1122 = vmatpush1.msra.mxu0 0.0
        %1123 = vmatprep.subr.mxu0 0.0
        %1124 = vmatpush1.msra.mxu0 0.0
        %1125 = vmatprep.subr.mxu0 0.0
        %1126 = vmatpush1.msra.mxu0 0.0
        %1127 = vmatprep.subr.mxu0 0.0
        %1128 = vmatpush1.msra.mxu0 0.0
        %1129 = vmatprep.subr.mxu0 0.0
        %1130 = vmatpush1.msra.mxu0 0.0
        %1131 = vmatprep.subr.mxu0 0.0
        %1132 = vmatpush1.msra.mxu0 0.0
        %1133 = vmatprep.subr.mxu0 0.0
        %1134 = vmatpush1.msra.mxu0 0.0
        %1135 = vmatprep.subr.mxu0 0.0
        %1136 = vmatpush1.msra.mxu0 0.0
        %1137 = vmatprep.subr.mxu0 0.0
        %1138 = vmatpush1.msra.mxu0 0.0
        %1139 = vmatprep.subr.mxu0 0.0
        %1140 = vmatpush1.msra.mxu0 0.0
        %1141 = vmatprep.mubr.f32.mxu0 0.0
        %1142 = vmatmul.mubr.f32.gmra.mrb[0].mxu0 %v1054
        %v1143 = vpop.f32.mrb[0].mxu0
        %v1144 = vadd.f32 %v1016, %v1143
        %v1145 = vpop.f32.mrb[0].mxu0
        %1146 = vmatprep.mubr.f32.mxu0 0.0
        %1147 = vmatmul.mubr.f32.gmra.mrb[0].mxu0 %v1057
        %v1148 = vpop.f32.mrb[0].mxu0
        %v1149 = vadd.f32 %v1021, %v1148
        %v1150 = vpop.f32.mrb[0].mxu0
        %1151 = vmatprep.mubr.f32.mxu0 0.0
        %1152 = vmatmul.mubr.f32.gmra.mrb[0].mxu0 %v1060
        %v1153 = vpop.f32.mrb[0].mxu0
        %v1154 = vadd.f32 %v1026, %v1153
        %v1155 = vpop.f32.mrb[0].mxu0
        %1156 = vmatprep.mubr.f32.mxu0 0.0
        %1157 = vmatmul.mubr.f32.gmra.mrb[0].mxu0 %v1063
        %v1158 = vpop.f32.mrb[0].mxu0
        %v1159 = vadd.f32 %v1031, %v1158
        %v1160 = vpop.f32.mrb[0].mxu0
        %1161 = vmatprep.mubr.f32.mxu0 0.0
        %1162 = vmatmul.mubr.f32.gmra.mrb[0].mxu0 %v1066
        %v1163 = vpop.f32.mrb[0].mxu0
        %v1164 = vadd.f32 %v1036, %v1163
        %v1165 = vpop.f32.mrb[0].mxu0
        %1166 = vmatprep.mubr.f32.mxu0 0.0
        %1167 = vmatmul.mubr.f32.gmra.mrb[0].mxu0 %v1069
        %v1168 = vpop.f32.mrb[0].mxu0
        %v1169 = vadd.f32 %v1041, %v1168
        %v1170 = vpop.f32.mrb[0].mxu0
        %1171 = vmatprep.mubr.f32.mxu0 0.0
        %1172 = vmatmul.mubr.f32.gmra.mrb[0].mxu0 %v1072
        %v1173 = vpop.f32.mrb[0].mxu0
        %v1174 = vadd.f32 %v1046, %v1173
        %v1175 = vpop.f32.mrb[0].mxu0
        %1176 = vmatprep.mubr.f32.mxu0 0.0
        %1177 = vmatmul.mubr.f32.gmra.mrb[0].mxu0 %v1075
        %v1178 = vpop.f32.mrb[0].mxu0
        %v1179 = vadd.f32 %v1051, %v1178
        %v1180 = vpop.f32.mrb[0].mxu0
        %1181 = vdwg.mxu0
        %v1182 = vmul.f32 %v1144, 0.01
        %v1183 = vmul.f32 %v1149, 0.01
        %v1184 = vmul.f32 %v1154, 0.01
        %v1185 = vmul.f32 %v1159, 0.01
        %v1186 = vmul.f32 %v1164, 0.01
        %v1187 = vmul.f32 %v1169, 0.01
        %v1188 = vmul.f32 %v1174, 0.01
        %v1189 = vmul.f32 %v1179, 0.01
        %v1190 = vmax.f32 %v1144, %v1182
        %v1191 = vmax.f32 %v1149, %v1183
        %v1192 = vmax.f32 %v1154, %v1184
        %v1193 = vmax.f32 %v1159, %v1185
        %v1194 = vmax.f32 %v1164, %v1186
        %v1195 = vmax.f32 %v1169, %v1187
        %v1196 = vmax.f32 %v1174, %v1188
        %v1197 = vmax.f32 %v1179, %v1189
        %s1198 = scalar_lea.vmem %s5, 64
        %v1199 = vld [vmem:[%s1198] sm:$0xff]
        %v1200 = vld [vmem:[%s1198 + $0x8] sm:$0xff]
        %s1201 = scalar_lea.vmem %s6, 64
        %v1202 = vld [vmem:[%s1201] sm:$0xff]
        %v1203 = vld [vmem:[%s1201 + $0x8] sm:$0xff]
        %1205 = vset.pattern.permute.xlu0 0
        %1206 = vperm.xlu0 %1205, %v1202
        %v1207 = vpop.permute.xlu0 %1206
        %1210 = vset.pattern.permute.xlu0 0
        %1211 = vperm.xlu0 %1210, %v1203
        %v1212 = vpop.permute.xlu0 %1211
        %v1215 = vsel %vm536, %v1199, 0
        %v1218 = vsel %vm536, %v1200, 0
        %1220 = vmatprep.subr.mxu0 0.0
        %1221 = vmatpush1.msra.mxu0 %v1190
        %1222 = vmatprep.subr.mxu0 0.0
        %1223 = vmatpush1.msra.mxu0 %v1191
        %1224 = vmatprep.subr.mxu0 0.0
        %1225 = vmatpush1.msra.mxu0 %v1192
        %1226 = vmatprep.subr.mxu0 0.0
        %1227 = vmatpush1.msra.mxu0 %v1193
        %1228 = vmatprep.subr.mxu0 0.0
        %1229 = vmatpush1.msra.mxu0 %v1194
        %1230 = vmatprep.subr.mxu0 0.0
        %1231 = vmatpush1.msra.mxu0 %v1195
        %1232 = vmatprep.subr.mxu0 0.0
        %1233 = vmatpush1.msra.mxu0 %v1196
        %1234 = vmatprep.subr.mxu0 0.0
        %1235 = vmatpush1.msra.mxu0 %v1197
        %1236 = vmatprep.subr.mxu0 0.0
        %1237 = vmatpush1.msra.mxu0 0.0
        %1238 = vmatprep.subr.mxu0 0.0
        %1239 = vmatpush1.msra.mxu0 0.0
        %1240 = vmatprep.subr.mxu0 0.0
        %1241 = vmatpush1.msra.mxu0 0.0
        %1242 = vmatprep.subr.mxu0 0.0
        %1243 = vmatpush1.msra.mxu0 0.0
        %1244 = vmatprep.subr.mxu0 0.0
        %1245 = vmatpush1.msra.mxu0 0.0
        %1246 = vmatprep.subr.mxu0 0.0
        %1247 = vmatpush1.msra.mxu0 0.0
        %1248 = vmatprep.subr.mxu0 0.0
        %1249 = vmatpush1.msra.mxu0 0.0
        %1250 = vmatprep.subr.mxu0 0.0
        %1251 = vmatpush1.msra.mxu0 0.0
        %1252 = vmatprep.subr.mxu0 0.0
        %1253 = vmatpush1.msra.mxu0 0.0
        %1254 = vmatprep.subr.mxu0 0.0
        %1255 = vmatpush1.msra.mxu0 0.0
        %1256 = vmatprep.subr.mxu0 0.0
        %1257 = vmatpush1.msra.mxu0 0.0
        %1258 = vmatprep.subr.mxu0 0.0
        %1259 = vmatpush1.msra.mxu0 0.0
        %1260 = vmatprep.subr.mxu0 0.0
        %1261 = vmatpush1.msra.mxu0 0.0
        %1262 = vmatprep.subr.mxu0 0.0
        %1263 = vmatpush1.msra.mxu0 0.0
        %1264 = vmatprep.subr.mxu0 0.0
        %1265 = vmatpush1.msra.mxu0 0.0
        %1266 = vmatprep.subr.mxu0 0.0
        %1267 = vmatpush1.msra.mxu0 0.0
        %1268 = vmatprep.subr.mxu0 0.0
        %1269 = vmatpush1.msra.mxu0 0.0
        %1270 = vmatprep.subr.mxu0 0.0
        %1271 = vmatpush1.msra.mxu0 0.0
        %1272 = vmatprep.subr.mxu0 0.0
        %1273 = vmatpush1.msra.mxu0 0.0
        %1274 = vmatprep.subr.mxu0 0.0
        %1275 = vmatpush1.msra.mxu0 0.0
        %1276 = vmatprep.subr.mxu0 0.0
        %1277 = vmatpush1.msra.mxu0 0.0
        %1278 = vmatprep.subr.mxu0 0.0
        %1279 = vmatpush1.msra.mxu0 0.0
        %1280 = vmatprep.subr.mxu0 0.0
        %1281 = vmatpush1.msra.mxu0 0.0
        %1282 = vmatprep.subr.mxu0 0.0
        %1283 = vmatpush1.msra.mxu0 0.0
        %1284 = vmatprep.mubr.f32.mxu0 0.0
        %1285 = vmatmul.mubr.f32.gmra.mrb[0].mxu0 %v1215
        %v1286 = vpop.f32.mrb[0].mxu0
        %v1287 = vadd.f32 %v1207, %v1286
        %v1288 = vpop.f32.mrb[0].mxu0
        %1289 = vmatprep.mubr.f32.mxu0 0.0
        %1290 = vmatmul.mubr.f32.gmra.mrb[0].mxu0 %v1218
        %v1291 = vpop.f32.mrb[0].mxu0
        %v1292 = vadd.f32 %v1212, %v1291
        %v1293 = vpop.f32.mrb[0].mxu0
        %1294 = vdwg.mxu0
        %v1295 = vtanh.pop %v1287
        %v1296 = vsub.f32 %v784, %v1292
        %v1297 = vsub.f32 0.0, %v1295
        %v1298 = vmul.f32 %v1297, 1.442695
        %v1299 = vpow.pop %v1298
        %v1300 = vmul.f32 %v1296, %v1299
        %v1301 = vrot.slane %v1295, 4
        %v1302 = vadd.f32 %v1295, %v1301
        %v1303 = vrot.slane %v1302, 2
        %v1304 = vadd.f32 %v1302, %v1303
        %v1305 = vrot.slane %v1304, 1
        %v1306 = vadd.f32 %v1304, %v1305
        %v1307 = vsub.f32 %v791, %v1306
        %s1308 = scalar_lea.vmem %s1, 192
        %v1309 = vld [vmem:[%s1308] sm:$0xff]
        %v1310 = vld [vmem:[%s1308 + $0x8] sm:$0xff]
        %v1311 = vld [vmem:[%s1308 + $0x10] sm:$0xff]
        %v1312 = vld [vmem:[%s1308 + $0x18] sm:$0xff]
        %v1313 = vld [vmem:[%s1308 + $0x20] sm:$0xff]
        %v1314 = vld [vmem:[%s1308 + $0x28] sm:$0xff]
        %v1315 = vld [vmem:[%s1308 + $0x30] sm:$0xff]
        %v1316 = vld [vmem:[%s1308 + $0x38] sm:$0xff]
        %s1317 = scalar_lea.vmem %s2, 192
        %v1318 = vld [vmem:[%s1317] sm:$0xff]
        %v1319 = vld [vmem:[%s1317 + $0x8] sm:$0xff]
        %v1320 = vld [vmem:[%s1317 + $0x10] sm:$0xff]
        %v1321 = vld [vmem:[%s1317 + $0x18] sm:$0xff]
        %v1322 = vld [vmem:[%s1317 + $0x20] sm:$0xff]
        %v1323 = vld [vmem:[%s1317 + $0x28] sm:$0xff]
        %v1324 = vld [vmem:[%s1317 + $0x30] sm:$0xff]
        %v1325 = vld [vmem:[%s1317 + $0x38] sm:$0xff]
        %1327 = vset.pattern.permute.xlu0 0
        %1328 = vperm.xlu0 %1327, %v1318
        %v1329 = vpop.permute.xlu0 %1328
        %1332 = vset.pattern.permute.xlu0 0
        %1333 = vperm.xlu0 %1332, %v1319
        %v1334 = vpop.permute.xlu0 %1333
        %1337 = vset.pattern.permute.xlu0 0
        %1338 = vperm.xlu0 %1337, %v1320
        %v1339 = vpop.permute.xlu0 %1338
        %1342 = vset.pattern.permute.xlu0 0
        %1343 = vperm.xlu0 %1342, %v1321
        %v1344 = vpop.permute.xlu0 %1343
        %1347 = vset.pattern.permute.xlu0 0
        %1348 = vperm.xlu0 %1347, %v1322
        %v1349 = vpop.permute.xlu0 %1348
        %1352 = vset.pattern.permute.xlu0 0
        %1353 = vperm.xlu0 %1352, %v1323
        %v1354 = vpop.permute.xlu0 %1353
        %1357 = vset.pattern.permute.xlu0 0
        %1358 = vperm.xlu0 %1357, %v1324
        %v1359 = vpop.permute.xlu0 %1358
        %1362 = vset.pattern.permute.xlu0 0
        %1363 = vperm.xlu0 %1362, %v1325
        %v1364 = vpop.permute.xlu0 %1363
        %v1367 = vsel %vm332, %v1309, 0
        %v1370 = vsel %vm332, %v1310, 0
        %v1373 = vsel %vm332, %v1311, 0
        %v1376 = vsel %vm332, %v1312, 0
        %v1379 = vsel %vm332, %v1313, 0
        %v1382 = vsel %vm332, %v1314, 0
        %v1385 = vsel %vm332, %v1315, 0
        %v1388 = vsel %vm332, %v1316, 0
        %1390 = vmatprep.subr.mxu0 0.0
        %1391 = vmatpush1.msra.mxu0 %v1300
        %1392 = vmatprep.subr.mxu0 0.0
        %1393 = vmatpush1.msra.mxu0 0.0
        %1394 = vmatprep.subr.mxu0 0.0
        %1395 = vmatpush1.msra.mxu0 0.0
        %1396 = vmatprep.subr.mxu0 0.0
        %1397 = vmatpush1.msra.mxu0 0.0
        %1398 = vmatprep.subr.mxu0 0.0
        %1399 = vmatpush1.msra.mxu0 0.0
        %1400 = vmatprep.subr.mxu0 0.0
        %1401 = vmatpush1.msra.mxu0 0.0
        %1402 = vmatprep.subr.mxu0 0.0
        %1403 = vmatpush1.msra.mxu0 0.0
        %1404 = vmatprep.subr.mxu0 0.0
        %1405 = vmatpush1.msra.mxu0 0.0
        %1406 = vmatprep.subr.mxu0 0.0
        %1407 = vmatpush1.msra.mxu0 0.0
        %1408 = vmatprep.subr.mxu0 0.0
        %1409 = vmatpush1.msra.mxu0 0.0
        %1410 = vmatprep.subr.mxu0 0.0
        %1411 = vmatpush1.msra.mxu0 0.0
        %1412 = vmatprep.subr.mxu0 0.0
        %1413 = vmatpush1.msra.mxu0 0.0
        %1414 = vmatprep.subr.mxu0 0.0
        %1415 = vmatpush1.msra.mxu0 0.0
        %1416 = vmatprep.subr.mxu0 0.0
        %1417 = vmatpush1.msra.mxu0 0.0
        %1418 = vmatprep.subr.mxu0 0.0
        %1419 = vmatpush1.msra.mxu0 0.0
        %1420 = vmatprep.subr.mxu0 0.0
        %1421 = vmatpush1.msra.mxu0 0.0
        %1422 = vmatprep.subr.mxu0 0.0
        %1423 = vmatpush1.msra.mxu0 0.0
        %1424 = vmatprep.subr.mxu0 0.0
        %1425 = vmatpush1.msra.mxu0 0.0
        %1426 = vmatprep.subr.mxu0 0.0
        %1427 = vmatpush1.msra.mxu0 0.0
        %1428 = vmatprep.subr.mxu0 0.0
        %1429 = vmatpush1.msra.mxu0 0.0
        %1430 = vmatprep.subr.mxu0 0.0
        %1431 = vmatpush1.msra.mxu0 0.0
        %1432 = vmatprep.subr.mxu0 0.0
        %1433 = vmatpush1.msra.mxu0 0.0
        %1434 = vmatprep.subr.mxu0 0.0
        %1435 = vmatpush1.msra.mxu0 0.0
        %1436 = vmatprep.subr.mxu0 0.0
        %1437 = vmatpush1.msra.mxu0 0.0
        %1438 = vmatprep.subr.mxu0 0.0
        %1439 = vmatpush1.msra.mxu0 0.0
        %1440 = vmatprep.subr.mxu0 0.0
        %1441 = vmatpush1.msra.mxu0 0.0
        %1442 = vmatprep.subr.mxu0 0.0
        %1443 = vmatpush1.msra.mxu0 0.0
        %1444 = vmatprep.subr.mxu0 0.0
        %1445 = vmatpush1.msra.mxu0 0.0
        %1446 = vmatprep.subr.mxu0 0.0
        %1447 = vmatpush1.msra.mxu0 0.0
        %1448 = vmatprep.subr.mxu0 0.0
        %1449 = vmatpush1.msra.mxu0 0.0
        %1450 = vmatprep.subr.mxu0 0.0
        %1451 = vmatpush1.msra.mxu0 0.0
        %1452 = vmatprep.subr.mxu0 0.0
        %1453 = vmatpush1.msra.mxu0 0.0
        %1454 = vmatprep.mubr.f32.mxu0 0.0
        %1455 = vmatmul.mubr.f32.gmra.mrb[0].mxu0 %v1367
        %v1456 = vpop.f32.mrb[0].mxu0
        %v1457 = vadd.f32 %v1329, %v1456
        %v1458 = vpop.f32.mrb[0].mxu0
        %1459 = vmatprep.mubr.f32.mxu0 0.0
        %1460 = vmatmul.mubr.f32.gmra.mrb[0].mxu0 %v1370
        %v1461 = vpop.f32.mrb[0].mxu0
        %v1462 = vadd.f32 %v1334, %v1461
        %v1463 = vpop.f32.mrb[0].mxu0
        %1464 = vmatprep.mubr.f32.mxu0 0.0
        %1465 = vmatmul.mubr.f32.gmra.mrb[0].mxu0 %v1373
        %v1466 = vpop.f32.mrb[0].mxu0
        %v1467 = vadd.f32 %v1339, %v1466
        %v1468 = vpop.f32.mrb[0].mxu0
        %1469 = vmatprep.mubr.f32.mxu0 0.0
        %1470 = vmatmul.mubr.f32.gmra.mrb[0].mxu0 %v1376
        %v1471 = vpop.f32.mrb[0].mxu0
        %v1472 = vadd.f32 %v1344, %v1471
        %v1473 = vpop.f32.mrb[0].mxu0
        %1474 = vmatprep.mubr.f32.mxu0 0.0
        %1475 = vmatmul.mubr.f32.gmra.mrb[0].mxu0 %v1379
        %v1476 = vpop.f32.mrb[0].mxu0
        %v1477 = vadd.f32 %v1349, %v1476
        %v1478 = vpop.f32.mrb[0].mxu0
        %1479 = vmatprep.mubr.f32.mxu0 0.0
        %1480 = vmatmul.mubr.f32.gmra.mrb[0].mxu0 %v1382
        %v1481 = vpop.f32.mrb[0].mxu0
        %v1482 = vadd.f32 %v1354, %v1481
        %v1483 = vpop.f32.mrb[0].mxu0
        %1484 = vmatprep.mubr.f32.mxu0 0.0
        %1485 = vmatmul.mubr.f32.gmra.mrb[0].mxu0 %v1385
        %v1486 = vpop.f32.mrb[0].mxu0
        %v1487 = vadd.f32 %v1359, %v1486
        %v1488 = vpop.f32.mrb[0].mxu0
        %1489 = vmatprep.mubr.f32.mxu0 0.0
        %1490 = vmatmul.mubr.f32.gmra.mrb[0].mxu0 %v1388
        %v1491 = vpop.f32.mrb[0].mxu0
        %v1492 = vadd.f32 %v1364, %v1491
        %v1493 = vpop.f32.mrb[0].mxu0
        %1494 = vdwg.mxu0
        %v1495 = vmul.f32 %v1457, 0.01
        %v1496 = vmul.f32 %v1462, 0.01
        %v1497 = vmul.f32 %v1467, 0.01
        %v1498 = vmul.f32 %v1472, 0.01
        %v1499 = vmul.f32 %v1477, 0.01
        %v1500 = vmul.f32 %v1482, 0.01
        %v1501 = vmul.f32 %v1487, 0.01
        %v1502 = vmul.f32 %v1492, 0.01
        %v1503 = vmax.f32 %v1457, %v1495
        %v1504 = vmax.f32 %v1462, %v1496
        %v1505 = vmax.f32 %v1467, %v1497
        %v1506 = vmax.f32 %v1472, %v1498
        %v1507 = vmax.f32 %v1477, %v1499
        %v1508 = vmax.f32 %v1482, %v1500
        %v1509 = vmax.f32 %v1487, %v1501
        %v1510 = vmax.f32 %v1492, %v1502
        %s1511 = scalar_lea.vmem %s3, 192
        %v1512 = vld [vmem:[%s1511] sm:$0xff]
        %v1513 = vld [vmem:[%s1511 + $0x8] sm:$0xff]
        %v1514 = vld [vmem:[%s1511 + $0x10] sm:$0xff]
        %v1515 = vld [vmem:[%s1511 + $0x18] sm:$0xff]
        %v1516 = vld [vmem:[%s1511 + $0x20] sm:$0xff]
        %v1517 = vld [vmem:[%s1511 + $0x28] sm:$0xff]
        %v1518 = vld [vmem:[%s1511 + $0x30] sm:$0xff]
        %v1519 = vld [vmem:[%s1511 + $0x38] sm:$0xff]
        %s1520 = scalar_lea.vmem %s4, 192
        %v1521 = vld [vmem:[%s1520] sm:$0xff]
        %v1522 = vld [vmem:[%s1520 + $0x8] sm:$0xff]
        %v1523 = vld [vmem:[%s1520 + $0x10] sm:$0xff]
        %v1524 = vld [vmem:[%s1520 + $0x18] sm:$0xff]
        %v1525 = vld [vmem:[%s1520 + $0x20] sm:$0xff]
        %v1526 = vld [vmem:[%s1520 + $0x28] sm:$0xff]
        %v1527 = vld [vmem:[%s1520 + $0x30] sm:$0xff]
        %v1528 = vld [vmem:[%s1520 + $0x38] sm:$0xff]
        %1530 = vset.pattern.permute.xlu0 0
        %1531 = vperm.xlu0 %1530, %v1521
        %v1532 = vpop.permute.xlu0 %1531
        %1535 = vset.pattern.permute.xlu0 0
        %1536 = vperm.xlu0 %1535, %v1522
        %v1537 = vpop.permute.xlu0 %1536
        %1540 = vset.pattern.permute.xlu0 0
        %1541 = vperm.xlu0 %1540, %v1523
        %v1542 = vpop.permute.xlu0 %1541
        %1545 = vset.pattern.permute.xlu0 0
        %1546 = vperm.xlu0 %1545, %v1524
        %v1547 = vpop.permute.xlu0 %1546
        %1550 = vset.pattern.permute.xlu0 0
        %1551 = vperm.xlu0 %1550, %v1525
        %v1552 = vpop.permute.xlu0 %1551
        %1555 = vset.pattern.permute.xlu0 0
        %1556 = vperm.xlu0 %1555, %v1526
        %v1557 = vpop.permute.xlu0 %1556
        %1560 = vset.pattern.permute.xlu0 0
        %1561 = vperm.xlu0 %1560, %v1527
        %v1562 = vpop.permute.xlu0 %1561
        %1565 = vset.pattern.permute.xlu0 0
        %1566 = vperm.xlu0 %1565, %v1528
        %v1567 = vpop.permute.xlu0 %1566
        %v1570 = vsel %vm536, %v1512, 0
        %v1573 = vsel %vm536, %v1513, 0
        %v1576 = vsel %vm536, %v1514, 0
        %v1579 = vsel %vm536, %v1515, 0
        %v1582 = vsel %vm536, %v1516, 0
        %v1585 = vsel %vm536, %v1517, 0
        %v1588 = vsel %vm536, %v1518, 0
        %v1591 = vsel %vm536, %v1519, 0
        %1593 = vmatprep.subr.mxu0 0.0
        %1594 = vmatpush1.msra.mxu0 %v1503
        %1595 = vmatprep.subr.mxu0 0.0
        %1596 = vmatpush1.msra.mxu0 %v1504
        %1597 = vmatprep.subr.mxu0 0.0
        %1598 = vmatpush1.msra.mxu0 %v1505
        %1599 = vmatprep.subr.mxu0 0.0
        %1600 = vmatpush1.msra.mxu0 %v1506
        %1601 = vmatprep.subr.mxu0 0.0
        %1602 = vmatpush1.msra.mxu0 %v1507
        %1603 = vmatprep.subr.mxu0 0.0
        %1604 = vmatpush1.msra.mxu0 %v1508
        %1605 = vmatprep.subr.mxu0 0.0
        %1606 = vmatpush1.msra.mxu0 %v1509
        %1607 = vmatprep.subr.mxu0 0.0
        %1608 = vmatpush1.msra.mxu0 %v1510
        %1609 = vmatprep.subr.mxu0 0.0
        %1610 = vmatpush1.msra.mxu0 0.0
        %1611 = vmatprep.subr.mxu0 0.0
        %1612 = vmatpush1.msra.mxu0 0.0
        %1613 = vmatprep.subr.mxu0 0.0
        %1614 = vmatpush1.msra.mxu0 0.0
        %1615 = vmatprep.subr.mxu0 0.0
        %1616 = vmatpush1.msra.mxu0 0.0
        %1617 = vmatprep.subr.mxu0 0.0
        %1618 = vmatpush1.msra.mxu0 0.0
        %1619 = vmatprep.subr.mxu0 0.0
        %1620 = vmatpush1.msra.mxu0 0.0
        %1621 = vmatprep.subr.mxu0 0.0
        %1622 = vmatpush1.msra.mxu0 0.0
        %1623 = vmatprep.subr.mxu0 0.0
        %1624 = vmatpush1.msra.mxu0 0.0
        %1625 = vmatprep.subr.mxu0 0.0
        %1626 = vmatpush1.msra.mxu0 0.0
        %1627 = vmatprep.subr.mxu0 0.0
        %1628 = vmatpush1.msra.mxu0 0.0
        %1629 = vmatprep.subr.mxu0 0.0
        %1630 = vmatpush1.msra.mxu0 0.0
        %1631 = vmatprep.subr.mxu0 0.0
        %1632 = vmatpush1.msra.mxu0 0.0
        %1633 = vmatprep.subr.mxu0 0.0
        %1634 = vmatpush1.msra.mxu0 0.0
        %1635 = vmatprep.subr.mxu0 0.0
        %1636 = vmatpush1.msra.mxu0 0.0
        %1637 = vmatprep.subr.mxu0 0.0
        %1638 = vmatpush1.msra.mxu0 0.0
        %1639 = vmatprep.subr.mxu0 0.0
        %1640 = vmatpush1.msra.mxu0 0.0
        %1641 = vmatprep.subr.mxu0 0.0
        %1642 = vmatpush1.msra.mxu0 0.0
        %1643 = vmatprep.subr.mxu0 0.0
        %1644 = vmatpush1.msra.mxu0 0.0
        %1645 = vmatprep.subr.mxu0 0.0
        %1646 = vmatpush1.msra.mxu0 0.0
        %1647 = vmatprep.subr.mxu0 0.0
        %1648 = vmatpush1.msra.mxu0 0.0
        %1649 = vmatprep.subr.mxu0 0.0
        %1650 = vmatpush1.msra.mxu0 0.0
        %1651 = vmatprep.subr.mxu0 0.0
        %1652 = vmatpush1.msra.mxu0 0.0
        %1653 = vmatprep.subr.mxu0 0.0
        %1654 = vmatpush1.msra.mxu0 0.0
        %1655 = vmatprep.subr.mxu0 0.0
        %1656 = vmatpush1.msra.mxu0 0.0
        %1657 = vmatprep.mubr.f32.mxu0 0.0
        %1658 = vmatmul.mubr.f32.gmra.mrb[0].mxu0 %v1570
        %v1659 = vpop.f32.mrb[0].mxu0
        %v1660 = vadd.f32 %v1532, %v1659
        %v1661 = vpop.f32.mrb[0].mxu0
        %1662 = vmatprep.mubr.f32.mxu0 0.0
        %1663 = vmatmul.mubr.f32.gmra.mrb[0].mxu0 %v1573
        %v1664 = vpop.f32.mrb[0].mxu0
        %v1665 = vadd.f32 %v1537, %v1664
        %v1666 = vpop.f32.mrb[0].mxu0
        %1667 = vmatprep.mubr.f32.mxu0 0.0
        %1668 = vmatmul.mubr.f32.gmra.mrb[0].mxu0 %v1576
        %v1669 = vpop.f32.mrb[0].mxu0
        %v1670 = vadd.f32 %v1542, %v1669
        %v1671 = vpop.f32.mrb[0].mxu0
        %1672 = vmatprep.mubr.f32.mxu0 0.0
        %1673 = vmatmul.mubr.f32.gmra.mrb[0].mxu0 %v1579
        %v1674 = vpop.f32.mrb[0].mxu0
        %v1675 = vadd.f32 %v1547, %v1674
        %v1676 = vpop.f32.mrb[0].mxu0
        %1677 = vmatprep.mubr.f32.mxu0 0.0
        %1678 = vmatmul.mubr.f32.gmra.mrb[0].mxu0 %v1582
        %v1679 = vpop.f32.mrb[0].mxu0
        %v1680 = vadd.f32 %v1552, %v1679
        %v1681 = vpop.f32.mrb[0].mxu0
        %1682 = vmatprep.mubr.f32.mxu0 0.0
        %1683 = vmatmul.mubr.f32.gmra.mrb[0].mxu0 %v1585
        %v1684 = vpop.f32.mrb[0].mxu0
        %v1685 = vadd.f32 %v1557, %v1684
        %v1686 = vpop.f32.mrb[0].mxu0
        %1687 = vmatprep.mubr.f32.mxu0 0.0
        %1688 = vmatmul.mubr.f32.gmra.mrb[0].mxu0 %v1588
        %v1689 = vpop.f32.mrb[0].mxu0
        %v1690 = vadd.f32 %v1562, %v1689
        %v1691 = vpop.f32.mrb[0].mxu0
        %1692 = vmatprep.mubr.f32.mxu0 0.0
        %1693 = vmatmul.mubr.f32.gmra.mrb[0].mxu0 %v1591
        %v1694 = vpop.f32.mrb[0].mxu0
        %v1695 = vadd.f32 %v1567, %v1694
        %v1696 = vpop.f32.mrb[0].mxu0
        %1697 = vdwg.mxu0
        %v1698 = vmul.f32 %v1660, 0.01
        %v1699 = vmul.f32 %v1665, 0.01
        %v1700 = vmul.f32 %v1670, 0.01
        %v1701 = vmul.f32 %v1675, 0.01
        %v1702 = vmul.f32 %v1680, 0.01
        %v1703 = vmul.f32 %v1685, 0.01
        %v1704 = vmul.f32 %v1690, 0.01
        %v1705 = vmul.f32 %v1695, 0.01
        %v1706 = vmax.f32 %v1660, %v1698
        %v1707 = vmax.f32 %v1665, %v1699
        %v1708 = vmax.f32 %v1670, %v1700
        %v1709 = vmax.f32 %v1675, %v1701
        %v1710 = vmax.f32 %v1680, %v1702
        %v1711 = vmax.f32 %v1685, %v1703
        %v1712 = vmax.f32 %v1690, %v1704
        %v1713 = vmax.f32 %v1695, %v1705
        %s1714 = scalar_lea.vmem %s5, 48
        %v1715 = vld [vmem:[%s1714] sm:$0xff]
        %v1716 = vld [vmem:[%s1714 + $0x8] sm:$0xff]
        %s1717 = scalar_lea.vmem %s6, 48
        %v1718 = vld [vmem:[%s1717] sm:$0xff]
        %v1719 = vld [vmem:[%s1717 + $0x8] sm:$0xff]
        %1721 = vset.pattern.permute.xlu0 0
        %1722 = vperm.xlu0 %1721, %v1718
        %v1723 = vpop.permute.xlu0 %1722
        %1726 = vset.pattern.permute.xlu0 0
        %1727 = vperm.xlu0 %1726, %v1719
        %v1728 = vpop.permute.xlu0 %1727
        %v1731 = vsel %vm536, %v1715, 0
        %v1734 = vsel %vm536, %v1716, 0
        %1736 = vmatprep.subr.mxu0 0.0
        %1737 = vmatpush1.msra.mxu0 %v1706
        %1738 = vmatprep.subr.mxu0 0.0
        %1739 = vmatpush1.msra.mxu0 %v1707
        %1740 = vmatprep.subr.mxu0 0.0
        %1741 = vmatpush1.msra.mxu0 %v1708
        %1742 = vmatprep.subr.mxu0 0.0
        %1743 = vmatpush1.msra.mxu0 %v1709
        %1744 = vmatprep.subr.mxu0 0.0
        %1745 = vmatpush1.msra.mxu0 %v1710
        %1746 = vmatprep.subr.mxu0 0.0
        %1747 = vmatpush1.msra.mxu0 %v1711
        %1748 = vmatprep.subr.mxu0 0.0
        %1749 = vmatpush1.msra.mxu0 %v1712
        %1750 = vmatprep.subr.mxu0 0.0
        %1751 = vmatpush1.msra.mxu0 %v1713
        %1752 = vmatprep.subr.mxu0 0.0
        %1753 = vmatpush1.msra.mxu0 0.0
        %1754 = vmatprep.subr.mxu0 0.0
        %1755 = vmatpush1.msra.mxu0 0.0
        %1756 = vmatprep.subr.mxu0 0.0
        %1757 = vmatpush1.msra.mxu0 0.0
        %1758 = vmatprep.subr.mxu0 0.0
        %1759 = vmatpush1.msra.mxu0 0.0
        %1760 = vmatprep.subr.mxu0 0.0
        %1761 = vmatpush1.msra.mxu0 0.0
        %1762 = vmatprep.subr.mxu0 0.0
        %1763 = vmatpush1.msra.mxu0 0.0
        %1764 = vmatprep.subr.mxu0 0.0
        %1765 = vmatpush1.msra.mxu0 0.0
        %1766 = vmatprep.subr.mxu0 0.0
        %1767 = vmatpush1.msra.mxu0 0.0
        %1768 = vmatprep.subr.mxu0 0.0
        %1769 = vmatpush1.msra.mxu0 0.0
        %1770 = vmatprep.subr.mxu0 0.0
        %1771 = vmatpush1.msra.mxu0 0.0
        %1772 = vmatprep.subr.mxu0 0.0
        %1773 = vmatpush1.msra.mxu0 0.0
        %1774 = vmatprep.subr.mxu0 0.0
        %1775 = vmatpush1.msra.mxu0 0.0
        %1776 = vmatprep.subr.mxu0 0.0
        %1777 = vmatpush1.msra.mxu0 0.0
        %1778 = vmatprep.subr.mxu0 0.0
        %1779 = vmatpush1.msra.mxu0 0.0
        %1780 = vmatprep.subr.mxu0 0.0
        %1781 = vmatpush1.msra.mxu0 0.0
        %1782 = vmatprep.subr.mxu0 0.0
        %1783 = vmatpush1.msra.mxu0 0.0
        %1784 = vmatprep.subr.mxu0 0.0
        %1785 = vmatpush1.msra.mxu0 0.0
        %1786 = vmatprep.subr.mxu0 0.0
        %1787 = vmatpush1.msra.mxu0 0.0
        %1788 = vmatprep.subr.mxu0 0.0
        %1789 = vmatpush1.msra.mxu0 0.0
        %1790 = vmatprep.subr.mxu0 0.0
        %1791 = vmatpush1.msra.mxu0 0.0
        %1792 = vmatprep.subr.mxu0 0.0
        %1793 = vmatpush1.msra.mxu0 0.0
        %1794 = vmatprep.subr.mxu0 0.0
        %1795 = vmatpush1.msra.mxu0 0.0
        %1796 = vmatprep.subr.mxu0 0.0
        %1797 = vmatpush1.msra.mxu0 0.0
        %1798 = vmatprep.subr.mxu0 0.0
        %1799 = vmatpush1.msra.mxu0 0.0
        %1800 = vmatprep.mubr.f32.mxu0 0.0
        %1801 = vmatmul.mubr.f32.gmra.mrb[0].mxu0 %v1731
        %v1802 = vpop.f32.mrb[0].mxu0
        %v1803 = vadd.f32 %v1723, %v1802
        %v1804 = vpop.f32.mrb[0].mxu0
        %1805 = vmatprep.mubr.f32.mxu0 0.0
        %1806 = vmatmul.mubr.f32.gmra.mrb[0].mxu0 %v1734
        %v1807 = vpop.f32.mrb[0].mxu0
        %v1808 = vadd.f32 %v1728, %v1807
        %v1809 = vpop.f32.mrb[0].mxu0
        %1810 = vdwg.mxu0
        %v1811 = vtanh.pop %v1803
        %v1812 = vsub.f32 %v1300, %v1808
        %v1813 = vsub.f32 0.0, %v1811
        %v1814 = vmul.f32 %v1813, 1.442695
        %v1815 = vpow.pop %v1814
        %v1816 = vmul.f32 %v1812, %v1815
        %v1817 = vrot.slane %v1811, 4
        %v1818 = vadd.f32 %v1811, %v1817
        %v1819 = vrot.slane %v1818, 2
        %v1820 = vadd.f32 %v1818, %v1819
        %v1821 = vrot.slane %v1820, 1
        %v1822 = vadd.f32 %v1820, %v1821
        %v1823 = vsub.f32 %v1307, %v1822
        %s1824 = scalar_lea.vmem %s1, 128
        %v1825 = vld [vmem:[%s1824] sm:$0xff]
        %v1826 = vld [vmem:[%s1824 + $0x8] sm:$0xff]
        %v1827 = vld [vmem:[%s1824 + $0x10] sm:$0xff]
        %v1828 = vld [vmem:[%s1824 + $0x18] sm:$0xff]
        %v1829 = vld [vmem:[%s1824 + $0x20] sm:$0xff]
        %v1830 = vld [vmem:[%s1824 + $0x28] sm:$0xff]
        %v1831 = vld [vmem:[%s1824 + $0x30] sm:$0xff]
        %v1832 = vld [vmem:[%s1824 + $0x38] sm:$0xff]
        %s1833 = scalar_lea.vmem %s2, 128
        %v1834 = vld [vmem:[%s1833] sm:$0xff]
        %v1835 = vld [vmem:[%s1833 + $0x8] sm:$0xff]
        %v1836 = vld [vmem:[%s1833 + $0x10] sm:$0xff]
        %v1837 = vld [vmem:[%s1833 + $0x18] sm:$0xff]
        %v1838 = vld [vmem:[%s1833 + $0x20] sm:$0xff]
        %v1839 = vld [vmem:[%s1833 + $0x28] sm:$0xff]
        %v1840 = vld [vmem:[%s1833 + $0x30] sm:$0xff]
        %v1841 = vld [vmem:[%s1833 + $0x38] sm:$0xff]
        %1843 = vset.pattern.permute.xlu0 0
        %1844 = vperm.xlu0 %1843, %v1834
        %v1845 = vpop.permute.xlu0 %1844
        %1848 = vset.pattern.permute.xlu0 0
        %1849 = vperm.xlu0 %1848, %v1835
        %v1850 = vpop.permute.xlu0 %1849
        %1853 = vset.pattern.permute.xlu0 0
        %1854 = vperm.xlu0 %1853, %v1836
        %v1855 = vpop.permute.xlu0 %1854
        %1858 = vset.pattern.permute.xlu0 0
        %1859 = vperm.xlu0 %1858, %v1837
        %v1860 = vpop.permute.xlu0 %1859
        %1863 = vset.pattern.permute.xlu0 0
        %1864 = vperm.xlu0 %1863, %v1838
        %v1865 = vpop.permute.xlu0 %1864
        %1868 = vset.pattern.permute.xlu0 0
        %1869 = vperm.xlu0 %1868, %v1839
        %v1870 = vpop.permute.xlu0 %1869
        %1873 = vset.pattern.permute.xlu0 0
        %1874 = vperm.xlu0 %1873, %v1840
        %v1875 = vpop.permute.xlu0 %1874
        %1878 = vset.pattern.permute.xlu0 0
        %1879 = vperm.xlu0 %1878, %v1841
        %v1880 = vpop.permute.xlu0 %1879
        %v1883 = vsel %vm332, %v1825, 0
        %v1886 = vsel %vm332, %v1826, 0
        %v1889 = vsel %vm332, %v1827, 0
        %v1892 = vsel %vm332, %v1828, 0
        %v1895 = vsel %vm332, %v1829, 0
        %v1898 = vsel %vm332, %v1830, 0
        %v1901 = vsel %vm332, %v1831, 0
        %v1904 = vsel %vm332, %v1832, 0
        %1906 = vmatprep.subr.mxu0 0.0
        %1907 = vmatpush1.msra.mxu0 %v1816
        %1908 = vmatprep.subr.mxu0 0.0
        %1909 = vmatpush1.msra.mxu0 0.0
        %1910 = vmatprep.subr.mxu0 0.0
        %1911 = vmatpush1.msra.mxu0 0.0
        %1912 = vmatprep.subr.mxu0 0.0
        %1913 = vmatpush1.msra.mxu0 0.0
        %1914 = vmatprep.subr.mxu0 0.0
        %1915 = vmatpush1.msra.mxu0 0.0
        %1916 = vmatprep.subr.mxu0 0.0
        %1917 = vmatpush1.msra.mxu0 0.0
        %1918 = vmatprep.subr.mxu0 0.0
        %1919 = vmatpush1.msra.mxu0 0.0
        %1920 = vmatprep.subr.mxu0 0.0
        %1921 = vmatpush1.msra.mxu0 0.0
        %1922 = vmatprep.subr.mxu0 0.0
        %1923 = vmatpush1.msra.mxu0 0.0
        %1924 = vmatprep.subr.mxu0 0.0
        %1925 = vmatpush1.msra.mxu0 0.0
        %1926 = vmatprep.subr.mxu0 0.0
        %1927 = vmatpush1.msra.mxu0 0.0
        %1928 = vmatprep.subr.mxu0 0.0
        %1929 = vmatpush1.msra.mxu0 0.0
        %1930 = vmatprep.subr.mxu0 0.0
        %1931 = vmatpush1.msra.mxu0 0.0
        %1932 = vmatprep.subr.mxu0 0.0
        %1933 = vmatpush1.msra.mxu0 0.0
        %1934 = vmatprep.subr.mxu0 0.0
        %1935 = vmatpush1.msra.mxu0 0.0
        %1936 = vmatprep.subr.mxu0 0.0
        %1937 = vmatpush1.msra.mxu0 0.0
        %1938 = vmatprep.subr.mxu0 0.0
        %1939 = vmatpush1.msra.mxu0 0.0
        %1940 = vmatprep.subr.mxu0 0.0
        %1941 = vmatpush1.msra.mxu0 0.0
        %1942 = vmatprep.subr.mxu0 0.0
        %1943 = vmatpush1.msra.mxu0 0.0
        %1944 = vmatprep.subr.mxu0 0.0
        %1945 = vmatpush1.msra.mxu0 0.0
        %1946 = vmatprep.subr.mxu0 0.0
        %1947 = vmatpush1.msra.mxu0 0.0
        %1948 = vmatprep.subr.mxu0 0.0
        %1949 = vmatpush1.msra.mxu0 0.0
        %1950 = vmatprep.subr.mxu0 0.0
        %1951 = vmatpush1.msra.mxu0 0.0
        %1952 = vmatprep.subr.mxu0 0.0
        %1953 = vmatpush1.msra.mxu0 0.0
        %1954 = vmatprep.subr.mxu0 0.0
        %1955 = vmatpush1.msra.mxu0 0.0
        %1956 = vmatprep.subr.mxu0 0.0
        %1957 = vmatpush1.msra.mxu0 0.0
        %1958 = vmatprep.subr.mxu0 0.0
        %1959 = vmatpush1.msra.mxu0 0.0
        %1960 = vmatprep.subr.mxu0 0.0
        %1961 = vmatpush1.msra.mxu0 0.0
        %1962 = vmatprep.subr.mxu0 0.0
        %1963 = vmatpush1.msra.mxu0 0.0
        %1964 = vmatprep.subr.mxu0 0.0
        %1965 = vmatpush1.msra.mxu0 0.0
        %1966 = vmatprep.subr.mxu0 0.0
        %1967 = vmatpush1.msra.mxu0 0.0
        %1968 = vmatprep.subr.mxu0 0.0
        %1969 = vmatpush1.msra.mxu0 0.0
        %1970 = vmatprep.mubr.f32.mxu0 0.0
        %1971 = vmatmul.mubr.f32.gmra.mrb[0].mxu0 %v1883
        %v1972 = vpop.f32.mrb[0].mxu0
        %v1973 = vadd.f32 %v1845, %v1972
        %v1974 = vpop.f32.mrb[0].mxu0
        %1975 = vmatprep.mubr.f32.mxu0 0.0
        %1976 = vmatmul.mubr.f32.gmra.mrb[0].mxu0 %v1886
        %v1977 = vpop.f32.mrb[0].mxu0
        %v1978 = vadd.f32 %v1850, %v1977
        %v1979 = vpop.f32.mrb[0].mxu0
        %1980 = vmatprep.mubr.f32.mxu0 0.0
        %1981 = vmatmul.mubr.f32.gmra.mrb[0].mxu0 %v1889
        %v1982 = vpop.f32.mrb[0].mxu0
        %v1983 = vadd.f32 %v1855, %v1982
        %v1984 = vpop.f32.mrb[0].mxu0
        %1985 = vmatprep.mubr.f32.mxu0 0.0
        %1986 = vmatmul.mubr.f32.gmra.mrb[0].mxu0 %v1892
        %v1987 = vpop.f32.mrb[0].mxu0
        %v1988 = vadd.f32 %v1860, %v1987
        %v1989 = vpop.f32.mrb[0].mxu0
        %1990 = vmatprep.mubr.f32.mxu0 0.0
        %1991 = vmatmul.mubr.f32.gmra.mrb[0].mxu0 %v1895
        %v1992 = vpop.f32.mrb[0].mxu0
        %v1993 = vadd.f32 %v1865, %v1992
        %v1994 = vpop.f32.mrb[0].mxu0
        %1995 = vmatprep.mubr.f32.mxu0 0.0
        %1996 = vmatmul.mubr.f32.gmra.mrb[0].mxu0 %v1898
        %v1997 = vpop.f32.mrb[0].mxu0
        %v1998 = vadd.f32 %v1870, %v1997
        %v1999 = vpop.f32.mrb[0].mxu0
        %2000 = vmatprep.mubr.f32.mxu0 0.0
        %2001 = vmatmul.mubr.f32.gmra.mrb[0].mxu0 %v1901
        %v2002 = vpop.f32.mrb[0].mxu0
        %v2003 = vadd.f32 %v1875, %v2002
        %v2004 = vpop.f32.mrb[0].mxu0
        %2005 = vmatprep.mubr.f32.mxu0 0.0
        %2006 = vmatmul.mubr.f32.gmra.mrb[0].mxu0 %v1904
        %v2007 = vpop.f32.mrb[0].mxu0
        %v2008 = vadd.f32 %v1880, %v2007
        %v2009 = vpop.f32.mrb[0].mxu0
        %2010 = vdwg.mxu0
        %v2011 = vmul.f32 %v1973, 0.01
        %v2012 = vmul.f32 %v1978, 0.01
        %v2013 = vmul.f32 %v1983, 0.01
        %v2014 = vmul.f32 %v1988, 0.01
        %v2015 = vmul.f32 %v1993, 0.01
        %v2016 = vmul.f32 %v1998, 0.01
        %v2017 = vmul.f32 %v2003, 0.01
        %v2018 = vmul.f32 %v2008, 0.01
        %v2019 = vmax.f32 %v1973, %v2011
        %v2020 = vmax.f32 %v1978, %v2012
        %v2021 = vmax.f32 %v1983, %v2013
        %v2022 = vmax.f32 %v1988, %v2014
        %v2023 = vmax.f32 %v1993, %v2015
        %v2024 = vmax.f32 %v1998, %v2016
        %v2025 = vmax.f32 %v2003, %v2017
        %v2026 = vmax.f32 %v2008, %v2018
        %s2027 = scalar_lea.vmem %s3, 128
        %v2028 = vld [vmem:[%s2027] sm:$0xff]
        %v2029 = vld [vmem:[%s2027 + $0x8] sm:$0xff]
        %v2030 = vld [vmem:[%s2027 + $0x10] sm:$0xff]
        %v2031 = vld [vmem:[%s2027 + $0x18] sm:$0xff]
        %v2032 = vld [vmem:[%s2027 + $0x20] sm:$0xff]
        %v2033 = vld [vmem:[%s2027 + $0x28] sm:$0xff]
        %v2034 = vld [vmem:[%s2027 + $0x30] sm:$0xff]
        %v2035 = vld [vmem:[%s2027 + $0x38] sm:$0xff]
        %s2036 = scalar_lea.vmem %s4, 128
        %v2037 = vld [vmem:[%s2036] sm:$0xff]
        %v2038 = vld [vmem:[%s2036 + $0x8] sm:$0xff]
        %v2039 = vld [vmem:[%s2036 + $0x10] sm:$0xff]
        %v2040 = vld [vmem:[%s2036 + $0x18] sm:$0xff]
        %v2041 = vld [vmem:[%s2036 + $0x20] sm:$0xff]
        %v2042 = vld [vmem:[%s2036 + $0x28] sm:$0xff]
        %v2043 = vld [vmem:[%s2036 + $0x30] sm:$0xff]
        %v2044 = vld [vmem:[%s2036 + $0x38] sm:$0xff]
        %2046 = vset.pattern.permute.xlu0 0
        %2047 = vperm.xlu0 %2046, %v2037
        %v2048 = vpop.permute.xlu0 %2047
        %2051 = vset.pattern.permute.xlu0 0
        %2052 = vperm.xlu0 %2051, %v2038
        %v2053 = vpop.permute.xlu0 %2052
        %2056 = vset.pattern.permute.xlu0 0
        %2057 = vperm.xlu0 %2056, %v2039
        %v2058 = vpop.permute.xlu0 %2057
        %2061 = vset.pattern.permute.xlu0 0
        %2062 = vperm.xlu0 %2061, %v2040
        %v2063 = vpop.permute.xlu0 %2062
        %2066 = vset.pattern.permute.xlu0 0
        %2067 = vperm.xlu0 %2066, %v2041
        %v2068 = vpop.permute.xlu0 %2067
        %2071 = vset.pattern.permute.xlu0 0
        %2072 = vperm.xlu0 %2071, %v2042
        %v2073 = vpop.permute.xlu0 %2072
        %2076 = vset.pattern.permute.xlu0 0
        %2077 = vperm.xlu0 %2076, %v2043
        %v2078 = vpop.permute.xlu0 %2077
        %2081 = vset.pattern.permute.xlu0 0
        %2082 = vperm.xlu0 %2081, %v2044
        %v2083 = vpop.permute.xlu0 %2082
        %v2086 = vsel %vm536, %v2028, 0
        %v2089 = vsel %vm536, %v2029, 0
        %v2092 = vsel %vm536, %v2030, 0
        %v2095 = vsel %vm536, %v2031, 0
        %v2098 = vsel %vm536, %v2032, 0
        %v2101 = vsel %vm536, %v2033, 0
        %v2104 = vsel %vm536, %v2034, 0
        %v2107 = vsel %vm536, %v2035, 0
        %2109 = vmatprep.subr.mxu0 0.0
        %2110 = vmatpush1.msra.mxu0 %v2019
        %2111 = vmatprep.subr.mxu0 0.0
        %2112 = vmatpush1.msra.mxu0 %v2020
        %2113 = vmatprep.subr.mxu0 0.0
        %2114 = vmatpush1.msra.mxu0 %v2021
        %2115 = vmatprep.subr.mxu0 0.0
        %2116 = vmatpush1.msra.mxu0 %v2022
        %2117 = vmatprep.subr.mxu0 0.0
        %2118 = vmatpush1.msra.mxu0 %v2023
        %2119 = vmatprep.subr.mxu0 0.0
        %2120 = vmatpush1.msra.mxu0 %v2024
        %2121 = vmatprep.subr.mxu0 0.0
        %2122 = vmatpush1.msra.mxu0 %v2025
        %2123 = vmatprep.subr.mxu0 0.0
        %2124 = vmatpush1.msra.mxu0 %v2026
        %2125 = vmatprep.subr.mxu0 0.0
        %2126 = vmatpush1.msra.mxu0 0.0
        %2127 = vmatprep.subr.mxu0 0.0
        %2128 = vmatpush1.msra.mxu0 0.0
        %2129 = vmatprep.subr.mxu0 0.0
        %2130 = vmatpush1.msra.mxu0 0.0
        %2131 = vmatprep.subr.mxu0 0.0
        %2132 = vmatpush1.msra.mxu0 0.0
        %2133 = vmatprep.subr.mxu0 0.0
        %2134 = vmatpush1.msra.mxu0 0.0
        %2135 = vmatprep.subr.mxu0 0.0
        %2136 = vmatpush1.msra.mxu0 0.0
        %2137 = vmatprep.subr.mxu0 0.0
        %2138 = vmatpush1.msra.mxu0 0.0
        %2139 = vmatprep.subr.mxu0 0.0
        %2140 = vmatpush1.msra.mxu0 0.0
        %2141 = vmatprep.subr.mxu0 0.0
        %2142 = vmatpush1.msra.mxu0 0.0
        %2143 = vmatprep.subr.mxu0 0.0
        %2144 = vmatpush1.msra.mxu0 0.0
        %2145 = vmatprep.subr.mxu0 0.0
        %2146 = vmatpush1.msra.mxu0 0.0
        %2147 = vmatprep.subr.mxu0 0.0
        %2148 = vmatpush1.msra.mxu0 0.0
        %2149 = vmatprep.subr.mxu0 0.0
        %2150 = vmatpush1.msra.mxu0 0.0
        %2151 = vmatprep.subr.mxu0 0.0
        %2152 = vmatpush1.msra.mxu0 0.0
        %2153 = vmatprep.subr.mxu0 0.0
        %2154 = vmatpush1.msra.mxu0 0.0
        %2155 = vmatprep.subr.mxu0 0.0
        %2156 = vmatpush1.msra.mxu0 0.0
        %2157 = vmatprep.subr.mxu0 0.0
        %2158 = vmatpush1.msra.mxu0 0.0
        %2159 = vmatprep.subr.mxu0 0.0
        %2160 = vmatpush1.msra.mxu0 0.0
        %2161 = vmatprep.subr.mxu0 0.0
        %2162 = vmatpush1.msra.mxu0 0.0
        %2163 = vmatprep.subr.mxu0 0.0
        %2164 = vmatpush1.msra.mxu0 0.0
        %2165 = vmatprep.subr.mxu0 0.0
        %2166 = vmatpush1.msra.mxu0 0.0
        %2167 = vmatprep.subr.mxu0 0.0
        %2168 = vmatpush1.msra.mxu0 0.0
        %2169 = vmatprep.subr.mxu0 0.0
        %2170 = vmatpush1.msra.mxu0 0.0
        %2171 = vmatprep.subr.mxu0 0.0
        %2172 = vmatpush1.msra.mxu0 0.0
        %2173 = vmatprep.mubr.f32.mxu0 0.0
        %2174 = vmatmul.mubr.f32.gmra.mrb[0].mxu0 %v2086
        %v2175 = vpop.f32.mrb[0].mxu0
        %v2176 = vadd.f32 %v2048, %v2175
        %v2177 = vpop.f32.mrb[0].mxu0
        %2178 = vmatprep.mubr.f32.mxu0 0.0
        %2179 = vmatmul.mubr.f32.gmra.mrb[0].mxu0 %v2089
        %v2180 = vpop.f32.mrb[0].mxu0
        %v2181 = vadd.f32 %v2053, %v2180
        %v2182 = vpop.f32.mrb[0].mxu0
        %2183 = vmatprep.mubr.f32.mxu0 0.0
        %2184 = vmatmul.mubr.f32.gmra.mrb[0].mxu0 %v2092
        %v2185 = vpop.f32.mrb[0].mxu0
        %v2186 = vadd.f32 %v2058, %v2185
        %v2187 = vpop.f32.mrb[0].mxu0
        %2188 = vmatprep.mubr.f32.mxu0 0.0
        %2189 = vmatmul.mubr.f32.gmra.mrb[0].mxu0 %v2095
        %v2190 = vpop.f32.mrb[0].mxu0
        %v2191 = vadd.f32 %v2063, %v2190
        %v2192 = vpop.f32.mrb[0].mxu0
        %2193 = vmatprep.mubr.f32.mxu0 0.0
        %2194 = vmatmul.mubr.f32.gmra.mrb[0].mxu0 %v2098
        %v2195 = vpop.f32.mrb[0].mxu0
        %v2196 = vadd.f32 %v2068, %v2195
        %v2197 = vpop.f32.mrb[0].mxu0
        %2198 = vmatprep.mubr.f32.mxu0 0.0
        %2199 = vmatmul.mubr.f32.gmra.mrb[0].mxu0 %v2101
        %v2200 = vpop.f32.mrb[0].mxu0
        %v2201 = vadd.f32 %v2073, %v2200
        %v2202 = vpop.f32.mrb[0].mxu0
        %2203 = vmatprep.mubr.f32.mxu0 0.0
        %2204 = vmatmul.mubr.f32.gmra.mrb[0].mxu0 %v2104
        %v2205 = vpop.f32.mrb[0].mxu0
        %v2206 = vadd.f32 %v2078, %v2205
        %v2207 = vpop.f32.mrb[0].mxu0
        %2208 = vmatprep.mubr.f32.mxu0 0.0
        %2209 = vmatmul.mubr.f32.gmra.mrb[0].mxu0 %v2107
        %v2210 = vpop.f32.mrb[0].mxu0
        %v2211 = vadd.f32 %v2083, %v2210
        %v2212 = vpop.f32.mrb[0].mxu0
        %2213 = vdwg.mxu0
        %v2214 = vmul.f32 %v2176, 0.01
        %v2215 = vmul.f32 %v2181, 0.01
        %v2216 = vmul.f32 %v2186, 0.01
        %v2217 = vmul.f32 %v2191, 0.01
        %v2218 = vmul.f32 %v2196, 0.01
        %v2219 = vmul.f32 %v2201, 0.01
        %v2220 = vmul.f32 %v2206, 0.01
        %v2221 = vmul.f32 %v2211, 0.01
        %v2222 = vmax.f32 %v2176, %v2214
        %v2223 = vmax.f32 %v2181, %v2215
        %v2224 = vmax.f32 %v2186, %v2216
        %v2225 = vmax.f32 %v2191, %v2217
        %v2226 = vmax.f32 %v2196, %v2218
        %v2227 = vmax.f32 %v2201, %v2219
        %v2228 = vmax.f32 %v2206, %v2220
        %v2229 = vmax.f32 %v2211, %v2221
        %s2230 = scalar_lea.vmem %s5, 32
        %v2231 = vld [vmem:[%s2230] sm:$0xff]
        %v2232 = vld [vmem:[%s2230 + $0x8] sm:$0xff]
        %s2233 = scalar_lea.vmem %s6, 32
        %v2234 = vld [vmem:[%s2233] sm:$0xff]
        %v2235 = vld [vmem:[%s2233 + $0x8] sm:$0xff]
        %2237 = vset.pattern.permute.xlu0 0
        %2238 = vperm.xlu0 %2237, %v2234
        %v2239 = vpop.permute.xlu0 %2238
        %2242 = vset.pattern.permute.xlu0 0
        %2243 = vperm.xlu0 %2242, %v2235
        %v2244 = vpop.permute.xlu0 %2243
        %v2247 = vsel %vm536, %v2231, 0
        %v2250 = vsel %vm536, %v2232, 0
        %2252 = vmatprep.subr.mxu0 0.0
        %2253 = vmatpush1.msra.mxu0 %v2222
        %2254 = vmatprep.subr.mxu0 0.0
        %2255 = vmatpush1.msra.mxu0 %v2223
        %2256 = vmatprep.subr.mxu0 0.0
        %2257 = vmatpush1.msra.mxu0 %v2224
        %2258 = vmatprep.subr.mxu0 0.0
        %2259 = vmatpush1.msra.mxu0 %v2225
        %2260 = vmatprep.subr.mxu0 0.0
        %2261 = vmatpush1.msra.mxu0 %v2226
        %2262 = vmatprep.subr.mxu0 0.0
        %2263 = vmatpush1.msra.mxu0 %v2227
        %2264 = vmatprep.subr.mxu0 0.0
        %2265 = vmatpush1.msra.mxu0 %v2228
        %2266 = vmatprep.subr.mxu0 0.0
        %2267 = vmatpush1.msra.mxu0 %v2229
        %2268 = vmatprep.subr.mxu0 0.0
        %2269 = vmatpush1.msra.mxu0 0.0
        %2270 = vmatprep.subr.mxu0 0.0
        %2271 = vmatpush1.msra.mxu0 0.0
        %2272 = vmatprep.subr.mxu0 0.0
        %2273 = vmatpush1.msra.mxu0 0.0
        %2274 = vmatprep.subr.mxu0 0.0
        %2275 = vmatpush1.msra.mxu0 0.0
        %2276 = vmatprep.subr.mxu0 0.0
        %2277 = vmatpush1.msra.mxu0 0.0
        %2278 = vmatprep.subr.mxu0 0.0
        %2279 = vmatpush1.msra.mxu0 0.0
        %2280 = vmatprep.subr.mxu0 0.0
        %2281 = vmatpush1.msra.mxu0 0.0
        %2282 = vmatprep.subr.mxu0 0.0
        %2283 = vmatpush1.msra.mxu0 0.0
        %2284 = vmatprep.subr.mxu0 0.0
        %2285 = vmatpush1.msra.mxu0 0.0
        %2286 = vmatprep.subr.mxu0 0.0
        %2287 = vmatpush1.msra.mxu0 0.0
        %2288 = vmatprep.subr.mxu0 0.0
        %2289 = vmatpush1.msra.mxu0 0.0
        %2290 = vmatprep.subr.mxu0 0.0
        %2291 = vmatpush1.msra.mxu0 0.0
        %2292 = vmatprep.subr.mxu0 0.0
        %2293 = vmatpush1.msra.mxu0 0.0
        %2294 = vmatprep.subr.mxu0 0.0
        %2295 = vmatpush1.msra.mxu0 0.0
        %2296 = vmatprep.subr.mxu0 0.0
        %2297 = vmatpush1.msra.mxu0 0.0
        %2298 = vmatprep.subr.mxu0 0.0
        %2299 = vmatpush1.msra.mxu0 0.0
        %2300 = vmatprep.subr.mxu0 0.0
        %2301 = vmatpush1.msra.mxu0 0.0
        %2302 = vmatprep.subr.mxu0 0.0
        %2303 = vmatpush1.msra.mxu0 0.0
        %2304 = vmatprep.subr.mxu0 0.0
        %2305 = vmatpush1.msra.mxu0 0.0
        %2306 = vmatprep.subr.mxu0 0.0
        %2307 = vmatpush1.msra.mxu0 0.0
        %2308 = vmatprep.subr.mxu0 0.0
        %2309 = vmatpush1.msra.mxu0 0.0
        %2310 = vmatprep.subr.mxu0 0.0
        %2311 = vmatpush1.msra.mxu0 0.0
        %2312 = vmatprep.subr.mxu0 0.0
        %2313 = vmatpush1.msra.mxu0 0.0
        %2314 = vmatprep.subr.mxu0 0.0
        %2315 = vmatpush1.msra.mxu0 0.0
        %2316 = vmatprep.mubr.f32.mxu0 0.0
        %2317 = vmatmul.mubr.f32.gmra.mrb[0].mxu0 %v2247
        %v2318 = vpop.f32.mrb[0].mxu0
        %v2319 = vadd.f32 %v2239, %v2318
        %v2320 = vpop.f32.mrb[0].mxu0
        %2321 = vmatprep.mubr.f32.mxu0 0.0
        %2322 = vmatmul.mubr.f32.gmra.mrb[0].mxu0 %v2250
        %v2323 = vpop.f32.mrb[0].mxu0
        %v2324 = vadd.f32 %v2244, %v2323
        %v2325 = vpop.f32.mrb[0].mxu0
        %2326 = vdwg.mxu0
        %v2327 = vtanh.pop %v2319
        %v2328 = vsub.f32 %v1816, %v2324
        %v2329 = vsub.f32 0.0, %v2327
        %v2330 = vmul.f32 %v2329, 1.442695
        %v2331 = vpow.pop %v2330
        %v2332 = vmul.f32 %v2328, %v2331
        %v2333 = vrot.slane %v2327, 4
        %v2334 = vadd.f32 %v2327, %v2333
        %v2335 = vrot.slane %v2334, 2
        %v2336 = vadd.f32 %v2334, %v2335
        %v2337 = vrot.slane %v2336, 1
        %v2338 = vadd.f32 %v2336, %v2337
        %v2339 = vsub.f32 %v1823, %v2338
        %s2340 = scalar_lea.vmem %s1, 64
        %v2341 = vld [vmem:[%s2340] sm:$0xff]
        %v2342 = vld [vmem:[%s2340 + $0x8] sm:$0xff]
        %v2343 = vld [vmem:[%s2340 + $0x10] sm:$0xff]
        %v2344 = vld [vmem:[%s2340 + $0x18] sm:$0xff]
        %v2345 = vld [vmem:[%s2340 + $0x20] sm:$0xff]
        %v2346 = vld [vmem:[%s2340 + $0x28] sm:$0xff]
        %v2347 = vld [vmem:[%s2340 + $0x30] sm:$0xff]
        %v2348 = vld [vmem:[%s2340 + $0x38] sm:$0xff]
        %s2349 = scalar_lea.vmem %s2, 64
        %v2350 = vld [vmem:[%s2349] sm:$0xff]
        %v2351 = vld [vmem:[%s2349 + $0x8] sm:$0xff]
        %v2352 = vld [vmem:[%s2349 + $0x10] sm:$0xff]
        %v2353 = vld [vmem:[%s2349 + $0x18] sm:$0xff]
        %v2354 = vld [vmem:[%s2349 + $0x20] sm:$0xff]
        %v2355 = vld [vmem:[%s2349 + $0x28] sm:$0xff]
        %v2356 = vld [vmem:[%s2349 + $0x30] sm:$0xff]
        %v2357 = vld [vmem:[%s2349 + $0x38] sm:$0xff]
        %2359 = vset.pattern.permute.xlu0 0
        %2360 = vperm.xlu0 %2359, %v2350
        %v2361 = vpop.permute.xlu0 %2360
        %2364 = vset.pattern.permute.xlu0 0
        %2365 = vperm.xlu0 %2364, %v2351
        %v2366 = vpop.permute.xlu0 %2365
        %2369 = vset.pattern.permute.xlu0 0
        %2370 = vperm.xlu0 %2369, %v2352
        %v2371 = vpop.permute.xlu0 %2370
        %2374 = vset.pattern.permute.xlu0 0
        %2375 = vperm.xlu0 %2374, %v2353
        %v2376 = vpop.permute.xlu0 %2375
        %2379 = vset.pattern.permute.xlu0 0
        %2380 = vperm.xlu0 %2379, %v2354
        %v2381 = vpop.permute.xlu0 %2380
        %2384 = vset.pattern.permute.xlu0 0
        %2385 = vperm.xlu0 %2384, %v2355
        %v2386 = vpop.permute.xlu0 %2385
        %2389 = vset.pattern.permute.xlu0 0
        %2390 = vperm.xlu0 %2389, %v2356
        %v2391 = vpop.permute.xlu0 %2390
        %2394 = vset.pattern.permute.xlu0 0
        %2395 = vperm.xlu0 %2394, %v2357
        %v2396 = vpop.permute.xlu0 %2395
        %v2399 = vsel %vm332, %v2341, 0
        %v2402 = vsel %vm332, %v2342, 0
        %v2405 = vsel %vm332, %v2343, 0
        %v2408 = vsel %vm332, %v2344, 0
        %v2411 = vsel %vm332, %v2345, 0
        %v2414 = vsel %vm332, %v2346, 0
        %v2417 = vsel %vm332, %v2347, 0
        %v2420 = vsel %vm332, %v2348, 0
        %2422 = vmatprep.subr.mxu0 0.0
        %2423 = vmatpush1.msra.mxu0 %v2332
        %2424 = vmatprep.subr.mxu0 0.0
        %2425 = vmatpush1.msra.mxu0 0.0
        %2426 = vmatprep.subr.mxu0 0.0
        %2427 = vmatpush1.msra.mxu0 0.0
        %2428 = vmatprep.subr.mxu0 0.0
        %2429 = vmatpush1.msra.mxu0 0.0
        %2430 = vmatprep.subr.mxu0 0.0
        %2431 = vmatpush1.msra.mxu0 0.0
        %2432 = vmatprep.subr.mxu0 0.0
        %2433 = vmatpush1.msra.mxu0 0.0
        %2434 = vmatprep.subr.mxu0 0.0
        %2435 = vmatpush1.msra.mxu0 0.0
        %2436 = vmatprep.subr.mxu0 0.0
        %2437 = vmatpush1.msra.mxu0 0.0
        %2438 = vmatprep.subr.mxu0 0.0
        %2439 = vmatpush1.msra.mxu0 0.0
        %2440 = vmatprep.subr.mxu0 0.0
        %2441 = vmatpush1.msra.mxu0 0.0
        %2442 = vmatprep.subr.mxu0 0.0
        %2443 = vmatpush1.msra.mxu0 0.0
        %2444 = vmatprep.subr.mxu0 0.0
        %2445 = vmatpush1.msra.mxu0 0.0
        %2446 = vmatprep.subr.mxu0 0.0
        %2447 = vmatpush1.msra.mxu0 0.0
        %2448 = vmatprep.subr.mxu0 0.0
        %2449 = vmatpush1.msra.mxu0 0.0
        %2450 = vmatprep.subr.mxu0 0.0
        %2451 = vmatpush1.msra.mxu0 0.0
        %2452 = vmatprep.subr.mxu0 0.0
        %2453 = vmatpush1.msra.mxu0 0.0
        %2454 = vmatprep.subr.mxu0 0.0
        %2455 = vmatpush1.msra.mxu0 0.0
        %2456 = vmatprep.subr.mxu0 0.0
        %2457 = vmatpush1.msra.mxu0 0.0
        %2458 = vmatprep.subr.mxu0 0.0
        %2459 = vmatpush1.msra.mxu0 0.0
        %2460 = vmatprep.subr.mxu0 0.0
        %2461 = vmatpush1.msra.mxu0 0.0
        %2462 = vmatprep.subr.mxu0 0.0
        %2463 = vmatpush1.msra.mxu0 0.0
        %2464 = vmatprep.subr.mxu0 0.0
        %2465 = vmatpush1.msra.mxu0 0.0
        %2466 = vmatprep.subr.mxu0 0.0
        %2467 = vmatpush1.msra.mxu0 0.0
        %2468 = vmatprep.subr.mxu0 0.0
        %2469 = vmatpush1.msra.mxu0 0.0
        %2470 = vmatprep.subr.mxu0 0.0
        %2471 = vmatpush1.msra.mxu0 0.0
        %2472 = vmatprep.subr.mxu0 0.0
        %2473 = vmatpush1.msra.mxu0 0.0
        %2474 = vmatprep.subr.mxu0 0.0
        %2475 = vmatpush1.msra.mxu0 0.0
        %2476 = vmatprep.subr.mxu0 0.0
        %2477 = vmatpush1.msra.mxu0 0.0
        %2478 = vmatprep.subr.mxu0 0.0
        %2479 = vmatpush1.msra.mxu0 0.0
        %2480 = vmatprep.subr.mxu0 0.0
        %2481 = vmatpush1.msra.mxu0 0.0
        %2482 = vmatprep.subr.mxu0 0.0
        %2483 = vmatpush1.msra.mxu0 0.0
        %2484 = vmatprep.subr.mxu0 0.0
        %2485 = vmatpush1.msra.mxu0 0.0
        %2486 = vmatprep.mubr.f32.mxu0 0.0
        %2487 = vmatmul.mubr.f32.gmra.mrb[0].mxu0 %v2399
        %v2488 = vpop.f32.mrb[0].mxu0
        %v2489 = vadd.f32 %v2361, %v2488
        %v2490 = vpop.f32.mrb[0].mxu0
        %2491 = vmatprep.mubr.f32.mxu0 0.0
        %2492 = vmatmul.mubr.f32.gmra.mrb[0].mxu0 %v2402
        %v2493 = vpop.f32.mrb[0].mxu0
        %v2494 = vadd.f32 %v2366, %v2493
        %v2495 = vpop.f32.mrb[0].mxu0
        %2496 = vmatprep.mubr.f32.mxu0 0.0
        %2497 = vmatmul.mubr.f32.gmra.mrb[0].mxu0 %v2405
        %v2498 = vpop.f32.mrb[0].mxu0
        %v2499 = vadd.f32 %v2371, %v2498
        %v2500 = vpop.f32.mrb[0].mxu0
        %2501 = vmatprep.mubr.f32.mxu0 0.0
        %2502 = vmatmul.mubr.f32.gmra.mrb[0].mxu0 %v2408
        %v2503 = vpop.f32.mrb[0].mxu0
        %v2504 = vadd.f32 %v2376, %v2503
        %v2505 = vpop.f32.mrb[0].mxu0
        %2506 = vmatprep.mubr.f32.mxu0 0.0
        %2507 = vmatmul.mubr.f32.gmra.mrb[0].mxu0 %v2411
        %v2508 = vpop.f32.mrb[0].mxu0
        %v2509 = vadd.f32 %v2381, %v2508
        %v2510 = vpop.f32.mrb[0].mxu0
        %2511 = vmatprep.mubr.f32.mxu0 0.0
        %2512 = vmatmul.mubr.f32.gmra.mrb[0].mxu0 %v2414
        %v2513 = vpop.f32.mrb[0].mxu0
        %v2514 = vadd.f32 %v2386, %v2513
        %v2515 = vpop.f32.mrb[0].mxu0
        %2516 = vmatprep.mubr.f32.mxu0 0.0
        %2517 = vmatmul.mubr.f32.gmra.mrb[0].mxu0 %v2417
        %v2518 = vpop.f32.mrb[0].mxu0
        %v2519 = vadd.f32 %v2391, %v2518
        %v2520 = vpop.f32.mrb[0].mxu0
        %2521 = vmatprep.mubr.f32.mxu0 0.0
        %2522 = vmatmul.mubr.f32.gmra.mrb[0].mxu0 %v2420
        %v2523 = vpop.f32.mrb[0].mxu0
        %v2524 = vadd.f32 %v2396, %v2523
        %v2525 = vpop.f32.mrb[0].mxu0
        %2526 = vdwg.mxu0
        %v2527 = vmul.f32 %v2489, 0.01
        %v2528 = vmul.f32 %v2494, 0.01
        %v2529 = vmul.f32 %v2499, 0.01
        %v2530 = vmul.f32 %v2504, 0.01
        %v2531 = vmul.f32 %v2509, 0.01
        %v2532 = vmul.f32 %v2514, 0.01
        %v2533 = vmul.f32 %v2519, 0.01
        %v2534 = vmul.f32 %v2524, 0.01
        %v2535 = vmax.f32 %v2489, %v2527
        %v2536 = vmax.f32 %v2494, %v2528
        %v2537 = vmax.f32 %v2499, %v2529
        %v2538 = vmax.f32 %v2504, %v2530
        %v2539 = vmax.f32 %v2509, %v2531
        %v2540 = vmax.f32 %v2514, %v2532
        %v2541 = vmax.f32 %v2519, %v2533
        %v2542 = vmax.f32 %v2524, %v2534
        %s2543 = scalar_lea.vmem %s3, 64
        %v2544 = vld [vmem:[%s2543] sm:$0xff]
        %v2545 = vld [vmem:[%s2543 + $0x8] sm:$0xff]
        %v2546 = vld [vmem:[%s2543 + $0x10] sm:$0xff]
        %v2547 = vld [vmem:[%s2543 + $0x18] sm:$0xff]
        %v2548 = vld [vmem:[%s2543 + $0x20] sm:$0xff]
        %v2549 = vld [vmem:[%s2543 + $0x28] sm:$0xff]
        %v2550 = vld [vmem:[%s2543 + $0x30] sm:$0xff]
        %v2551 = vld [vmem:[%s2543 + $0x38] sm:$0xff]
        %s2552 = scalar_lea.vmem %s4, 64
        %v2553 = vld [vmem:[%s2552] sm:$0xff]
        %v2554 = vld [vmem:[%s2552 + $0x8] sm:$0xff]
        %v2555 = vld [vmem:[%s2552 + $0x10] sm:$0xff]
        %v2556 = vld [vmem:[%s2552 + $0x18] sm:$0xff]
        %v2557 = vld [vmem:[%s2552 + $0x20] sm:$0xff]
        %v2558 = vld [vmem:[%s2552 + $0x28] sm:$0xff]
        %v2559 = vld [vmem:[%s2552 + $0x30] sm:$0xff]
        %v2560 = vld [vmem:[%s2552 + $0x38] sm:$0xff]
        %2562 = vset.pattern.permute.xlu0 0
        %2563 = vperm.xlu0 %2562, %v2553
        %v2564 = vpop.permute.xlu0 %2563
        %2567 = vset.pattern.permute.xlu0 0
        %2568 = vperm.xlu0 %2567, %v2554
        %v2569 = vpop.permute.xlu0 %2568
        %2572 = vset.pattern.permute.xlu0 0
        %2573 = vperm.xlu0 %2572, %v2555
        %v2574 = vpop.permute.xlu0 %2573
        %2577 = vset.pattern.permute.xlu0 0
        %2578 = vperm.xlu0 %2577, %v2556
        %v2579 = vpop.permute.xlu0 %2578
        %2582 = vset.pattern.permute.xlu0 0
        %2583 = vperm.xlu0 %2582, %v2557
        %v2584 = vpop.permute.xlu0 %2583
        %2587 = vset.pattern.permute.xlu0 0
        %2588 = vperm.xlu0 %2587, %v2558
        %v2589 = vpop.permute.xlu0 %2588
        %2592 = vset.pattern.permute.xlu0 0
        %2593 = vperm.xlu0 %2592, %v2559
        %v2594 = vpop.permute.xlu0 %2593
        %2597 = vset.pattern.permute.xlu0 0
        %2598 = vperm.xlu0 %2597, %v2560
        %v2599 = vpop.permute.xlu0 %2598
        %v2602 = vsel %vm536, %v2544, 0
        %v2605 = vsel %vm536, %v2545, 0
        %v2608 = vsel %vm536, %v2546, 0
        %v2611 = vsel %vm536, %v2547, 0
        %v2614 = vsel %vm536, %v2548, 0
        %v2617 = vsel %vm536, %v2549, 0
        %v2620 = vsel %vm536, %v2550, 0
        %v2623 = vsel %vm536, %v2551, 0
        %2625 = vmatprep.subr.mxu0 0.0
        %2626 = vmatpush1.msra.mxu0 %v2535
        %2627 = vmatprep.subr.mxu0 0.0
        %2628 = vmatpush1.msra.mxu0 %v2536
        %2629 = vmatprep.subr.mxu0 0.0
        %2630 = vmatpush1.msra.mxu0 %v2537
        %2631 = vmatprep.subr.mxu0 0.0
        %2632 = vmatpush1.msra.mxu0 %v2538
        %2633 = vmatprep.subr.mxu0 0.0
        %2634 = vmatpush1.msra.mxu0 %v2539
        %2635 = vmatprep.subr.mxu0 0.0
        %2636 = vmatpush1.msra.mxu0 %v2540
        %2637 = vmatprep.subr.mxu0 0.0
        %2638 = vmatpush1.msra.mxu0 %v2541
        %2639 = vmatprep.subr.mxu0 0.0
        %2640 = vmatpush1.msra.mxu0 %v2542
        %2641 = vmatprep.subr.mxu0 0.0
        %2642 = vmatpush1.msra.mxu0 0.0
        %2643 = vmatprep.subr.mxu0 0.0
        %2644 = vmatpush1.msra.mxu0 0.0
        %2645 = vmatprep.subr.mxu0 0.0
        %2646 = vmatpush1.msra.mxu0 0.0
        %2647 = vmatprep.subr.mxu0 0.0
        %2648 = vmatpush1.msra.mxu0 0.0
        %2649 = vmatprep.subr.mxu0 0.0
        %2650 = vmatpush1.msra.mxu0 0.0
        %2651 = vmatprep.subr.mxu0 0.0
        %2652 = vmatpush1.msra.mxu0 0.0
        %2653 = vmatprep.subr.mxu0 0.0
        %2654 = vmatpush1.msra.mxu0 0.0
        %2655 = vmatprep.subr.mxu0 0.0
        %2656 = vmatpush1.msra.mxu0 0.0
        %2657 = vmatprep.subr.mxu0 0.0
        %2658 = vmatpush1.msra.mxu0 0.0
        %2659 = vmatprep.subr.mxu0 0.0
        %2660 = vmatpush1.msra.mxu0 0.0
        %2661 = vmatprep.subr.mxu0 0.0
        %2662 = vmatpush1.msra.mxu0 0.0
        %2663 = vmatprep.subr.mxu0 0.0
        %2664 = vmatpush1.msra.mxu0 0.0
        %2665 = vmatprep.subr.mxu0 0.0
        %2666 = vmatpush1.msra.mxu0 0.0
        %2667 = vmatprep.subr.mxu0 0.0
        %2668 = vmatpush1.msra.mxu0 0.0
        %2669 = vmatprep.subr.mxu0 0.0
        %2670 = vmatpush1.msra.mxu0 0.0
        %2671 = vmatprep.subr.mxu0 0.0
        %2672 = vmatpush1.msra.mxu0 0.0
        %2673 = vmatprep.subr.mxu0 0.0
        %2674 = vmatpush1.msra.mxu0 0.0
        %2675 = vmatprep.subr.mxu0 0.0
        %2676 = vmatpush1.msra.mxu0 0.0
        %2677 = vmatprep.subr.mxu0 0.0
        %2678 = vmatpush1.msra.mxu0 0.0
        %2679 = vmatprep.subr.mxu0 0.0
        %2680 = vmatpush1.msra.mxu0 0.0
        %2681 = vmatprep.subr.mxu0 0.0
        %2682 = vmatpush1.msra.mxu0 0.0
        %2683 = vmatprep.subr.mxu0 0.0
        %2684 = vmatpush1.msra.mxu0 0.0
        %2685 = vmatprep.subr.mxu0 0.0
        %2686 = vmatpush1.msra.mxu0 0.0
        %2687 = vmatprep.subr.mxu0 0.0
        %2688 = vmatpush1.msra.mxu0 0.0
        %2689 = vmatprep.mubr.f32.mxu0 0.0
        %2690 = vmatmul.mubr.f32.gmra.mrb[0].mxu0 %v2602
        %v2691 = vpop.f32.mrb[0].mxu0
        %v2692 = vadd.f32 %v2564, %v2691
        %v2693 = vpop.f32.mrb[0].mxu0
        %2694 = vmatprep.mubr.f32.mxu0 0.0
        %2695 = vmatmul.mubr.f32.gmra.mrb[0].mxu0 %v2605
        %v2696 = vpop.f32.mrb[0].mxu0
        %v2697 = vadd.f32 %v2569, %v2696
        %v2698 = vpop.f32.mrb[0].mxu0
        %2699 = vmatprep.mubr.f32.mxu0 0.0
        %2700 = vmatmul.mubr.f32.gmra.mrb[0].mxu0 %v2608
        %v2701 = vpop.f32.mrb[0].mxu0
        %v2702 = vadd.f32 %v2574, %v2701
        %v2703 = vpop.f32.mrb[0].mxu0
        %2704 = vmatprep.mubr.f32.mxu0 0.0
        %2705 = vmatmul.mubr.f32.gmra.mrb[0].mxu0 %v2611
        %v2706 = vpop.f32.mrb[0].mxu0
        %v2707 = vadd.f32 %v2579, %v2706
        %v2708 = vpop.f32.mrb[0].mxu0
        %2709 = vmatprep.mubr.f32.mxu0 0.0
        %2710 = vmatmul.mubr.f32.gmra.mrb[0].mxu0 %v2614
        %v2711 = vpop.f32.mrb[0].mxu0
        %v2712 = vadd.f32 %v2584, %v2711
        %v2713 = vpop.f32.mrb[0].mxu0
        %2714 = vmatprep.mubr.f32.mxu0 0.0
        %2715 = vmatmul.mubr.f32.gmra.mrb[0].mxu0 %v2617
        %v2716 = vpop.f32.mrb[0].mxu0
        %v2717 = vadd.f32 %v2589, %v2716
        %v2718 = vpop.f32.mrb[0].mxu0
        %2719 = vmatprep.mubr.f32.mxu0 0.0
        %2720 = vmatmul.mubr.f32.gmra.mrb[0].mxu0 %v2620
        %v2721 = vpop.f32.mrb[0].mxu0
        %v2722 = vadd.f32 %v2594, %v2721
        %v2723 = vpop.f32.mrb[0].mxu0
        %2724 = vmatprep.mubr.f32.mxu0 0.0
        %2725 = vmatmul.mubr.f32.gmra.mrb[0].mxu0 %v2623
        %v2726 = vpop.f32.mrb[0].mxu0
        %v2727 = vadd.f32 %v2599, %v2726
        %v2728 = vpop.f32.mrb[0].mxu0
        %2729 = vdwg.mxu0
        %v2730 = vmul.f32 %v2692, 0.01
        %v2731 = vmul.f32 %v2697, 0.01
        %v2732 = vmul.f32 %v2702, 0.01
        %v2733 = vmul.f32 %v2707, 0.01
        %v2734 = vmul.f32 %v2712, 0.01
        %v2735 = vmul.f32 %v2717, 0.01
        %v2736 = vmul.f32 %v2722, 0.01
        %v2737 = vmul.f32 %v2727, 0.01
        %v2738 = vmax.f32 %v2692, %v2730
        %v2739 = vmax.f32 %v2697, %v2731
        %v2740 = vmax.f32 %v2702, %v2732
        %v2741 = vmax.f32 %v2707, %v2733
        %v2742 = vmax.f32 %v2712, %v2734
        %v2743 = vmax.f32 %v2717, %v2735
        %v2744 = vmax.f32 %v2722, %v2736
        %v2745 = vmax.f32 %v2727, %v2737
        %s2746 = scalar_lea.vmem %s5, 16
        %v2747 = vld [vmem:[%s2746] sm:$0xff]
        %v2748 = vld [vmem:[%s2746 + $0x8] sm:$0xff]
        %s2749 = scalar_lea.vmem %s6, 16
        %v2750 = vld [vmem:[%s2749] sm:$0xff]
        %v2751 = vld [vmem:[%s2749 + $0x8] sm:$0xff]
        %2753 = vset.pattern.permute.xlu0 0
        %2754 = vperm.xlu0 %2753, %v2750
        %v2755 = vpop.permute.xlu0 %2754
        %2758 = vset.pattern.permute.xlu0 0
        %2759 = vperm.xlu0 %2758, %v2751
        %v2760 = vpop.permute.xlu0 %2759
        %v2763 = vsel %vm536, %v2747, 0
        %v2766 = vsel %vm536, %v2748, 0
        %2768 = vmatprep.subr.mxu0 0.0
        %2769 = vmatpush1.msra.mxu0 %v2738
        %2770 = vmatprep.subr.mxu0 0.0
        %2771 = vmatpush1.msra.mxu0 %v2739
        %2772 = vmatprep.subr.mxu0 0.0
        %2773 = vmatpush1.msra.mxu0 %v2740
        %2774 = vmatprep.subr.mxu0 0.0
        %2775 = vmatpush1.msra.mxu0 %v2741
        %2776 = vmatprep.subr.mxu0 0.0
        %2777 = vmatpush1.msra.mxu0 %v2742
        %2778 = vmatprep.subr.mxu0 0.0
        %2779 = vmatpush1.msra.mxu0 %v2743
        %2780 = vmatprep.subr.mxu0 0.0
        %2781 = vmatpush1.msra.mxu0 %v2744
        %2782 = vmatprep.subr.mxu0 0.0
        %2783 = vmatpush1.msra.mxu0 %v2745
        %2784 = vmatprep.subr.mxu0 0.0
        %2785 = vmatpush1.msra.mxu0 0.0
        %2786 = vmatprep.subr.mxu0 0.0
        %2787 = vmatpush1.msra.mxu0 0.0
        %2788 = vmatprep.subr.mxu0 0.0
        %2789 = vmatpush1.msra.mxu0 0.0
        %2790 = vmatprep.subr.mxu0 0.0
        %2791 = vmatpush1.msra.mxu0 0.0
        %2792 = vmatprep.subr.mxu0 0.0
        %2793 = vmatpush1.msra.mxu0 0.0
        %2794 = vmatprep.subr.mxu0 0.0
        %2795 = vmatpush1.msra.mxu0 0.0
        %2796 = vmatprep.subr.mxu0 0.0
        %2797 = vmatpush1.msra.mxu0 0.0
        %2798 = vmatprep.subr.mxu0 0.0
        %2799 = vmatpush1.msra.mxu0 0.0
        %2800 = vmatprep.subr.mxu0 0.0
        %2801 = vmatpush1.msra.mxu0 0.0
        %2802 = vmatprep.subr.mxu0 0.0
        %2803 = vmatpush1.msra.mxu0 0.0
        %2804 = vmatprep.subr.mxu0 0.0
        %2805 = vmatpush1.msra.mxu0 0.0
        %2806 = vmatprep.subr.mxu0 0.0
        %2807 = vmatpush1.msra.mxu0 0.0
        %2808 = vmatprep.subr.mxu0 0.0
        %2809 = vmatpush1.msra.mxu0 0.0
        %2810 = vmatprep.subr.mxu0 0.0
        %2811 = vmatpush1.msra.mxu0 0.0
        %2812 = vmatprep.subr.mxu0 0.0
        %2813 = vmatpush1.msra.mxu0 0.0
        %2814 = vmatprep.subr.mxu0 0.0
        %2815 = vmatpush1.msra.mxu0 0.0
        %2816 = vmatprep.subr.mxu0 0.0
        %2817 = vmatpush1.msra.mxu0 0.0
        %2818 = vmatprep.subr.mxu0 0.0
        %2819 = vmatpush1.msra.mxu0 0.0
        %2820 = vmatprep.subr.mxu0 0.0
        %2821 = vmatpush1.msra.mxu0 0.0
        %2822 = vmatprep.subr.mxu0 0.0
        %2823 = vmatpush1.msra.mxu0 0.0
        %2824 = vmatprep.subr.mxu0 0.0
        %2825 = vmatpush1.msra.mxu0 0.0
        %2826 = vmatprep.subr.mxu0 0.0
        %2827 = vmatpush1.msra.mxu0 0.0
        %2828 = vmatprep.subr.mxu0 0.0
        %2829 = vmatpush1.msra.mxu0 0.0
        %2830 = vmatprep.subr.mxu0 0.0
        %2831 = vmatpush1.msra.mxu0 0.0
        %2832 = vmatprep.mubr.f32.mxu0 0.0
        %2833 = vmatmul.mubr.f32.gmra.mrb[0].mxu0 %v2763
        %v2834 = vpop.f32.mrb[0].mxu0
        %v2835 = vadd.f32 %v2755, %v2834
        %v2836 = vpop.f32.mrb[0].mxu0
        %2837 = vmatprep.mubr.f32.mxu0 0.0
        %2838 = vmatmul.mubr.f32.gmra.mrb[0].mxu0 %v2766
        %v2839 = vpop.f32.mrb[0].mxu0
        %v2840 = vadd.f32 %v2760, %v2839
        %v2841 = vpop.f32.mrb[0].mxu0
        %2842 = vdwg.mxu0
        %v2843 = vtanh.pop %v2835
        %v2844 = vsub.f32 %v2332, %v2840
        %v2845 = vsub.f32 0.0, %v2843
        %v2846 = vmul.f32 %v2845, 1.442695
        %v2847 = vpow.pop %v2846
        %v2848 = vmul.f32 %v2844, %v2847
        %v2849 = vrot.slane %v2843, 4
        %v2850 = vadd.f32 %v2843, %v2849
        %v2851 = vrot.slane %v2850, 2
        %v2852 = vadd.f32 %v2850, %v2851
        %v2853 = vrot.slane %v2852, 1
        %v2854 = vadd.f32 %v2852, %v2853
        %v2855 = vsub.f32 %v2339, %v2854
        %v2856 = vld [vmem:[%s1] sm:$0xff]
        %v2857 = vld [vmem:[%s1 + $0x8] sm:$0xff]
        %v2858 = vld [vmem:[%s1 + $0x10] sm:$0xff]
        %v2859 = vld [vmem:[%s1 + $0x18] sm:$0xff]
        %v2860 = vld [vmem:[%s1 + $0x20] sm:$0xff]
        %v2861 = vld [vmem:[%s1 + $0x28] sm:$0xff]
        %v2862 = vld [vmem:[%s1 + $0x30] sm:$0xff]
        %v2863 = vld [vmem:[%s1 + $0x38] sm:$0xff]
        %v2864 = vld [vmem:[%s2] sm:$0xff]
        %v2865 = vld [vmem:[%s2 + $0x8] sm:$0xff]
        %v2866 = vld [vmem:[%s2 + $0x10] sm:$0xff]
        %v2867 = vld [vmem:[%s2 + $0x18] sm:$0xff]
        %v2868 = vld [vmem:[%s2 + $0x20] sm:$0xff]
        %v2869 = vld [vmem:[%s2 + $0x28] sm:$0xff]
        %v2870 = vld [vmem:[%s2 + $0x30] sm:$0xff]
        %v2871 = vld [vmem:[%s2 + $0x38] sm:$0xff]
        %2873 = vset.pattern.permute.xlu0 0
        %2874 = vperm.xlu0 %2873, %v2864
        %v2875 = vpop.permute.xlu0 %2874
        %2878 = vset.pattern.permute.xlu0 0
        %2879 = vperm.xlu0 %2878, %v2865
        %v2880 = vpop.permute.xlu0 %2879
        %2883 = vset.pattern.permute.xlu0 0
        %2884 = vperm.xlu0 %2883, %v2866
        %v2885 = vpop.permute.xlu0 %2884
        %2888 = vset.pattern.permute.xlu0 0
        %2889 = vperm.xlu0 %2888, %v2867
        %v2890 = vpop.permute.xlu0 %2889
        %2893 = vset.pattern.permute.xlu0 0
        %2894 = vperm.xlu0 %2893, %v2868
        %v2895 = vpop.permute.xlu0 %2894
        %2898 = vset.pattern.permute.xlu0 0
        %2899 = vperm.xlu0 %2898, %v2869
        %v2900 = vpop.permute.xlu0 %2899
        %2903 = vset.pattern.permute.xlu0 0
        %2904 = vperm.xlu0 %2903, %v2870
        %v2905 = vpop.permute.xlu0 %2904
        %2908 = vset.pattern.permute.xlu0 0
        %2909 = vperm.xlu0 %2908, %v2871
        %v2910 = vpop.permute.xlu0 %2909
        %v2913 = vsel %vm332, %v2856, 0
        %v2916 = vsel %vm332, %v2857, 0
        %v2919 = vsel %vm332, %v2858, 0
        %v2922 = vsel %vm332, %v2859, 0
        %v2925 = vsel %vm332, %v2860, 0
        %v2928 = vsel %vm332, %v2861, 0
        %v2931 = vsel %vm332, %v2862, 0
        %v2934 = vsel %vm332, %v2863, 0
        %2936 = vmatprep.subr.mxu0 0.0
        %2937 = vmatpush1.msra.mxu0 %v2848
        %2938 = vmatprep.subr.mxu0 0.0
        %2939 = vmatpush1.msra.mxu0 0.0
        %2940 = vmatprep.subr.mxu0 0.0
        %2941 = vmatpush1.msra.mxu0 0.0
        %2942 = vmatprep.subr.mxu0 0.0
        %2943 = vmatpush1.msra.mxu0 0.0
        %2944 = vmatprep.subr.mxu0 0.0
        %2945 = vmatpush1.msra.mxu0 0.0
        %2946 = vmatprep.subr.mxu0 0.0
        %2947 = vmatpush1.msra.mxu0 0.0
        %2948 = vmatprep.subr.mxu0 0.0
        %2949 = vmatpush1.msra.mxu0 0.0
        %2950 = vmatprep.subr.mxu0 0.0
        %2951 = vmatpush1.msra.mxu0 0.0
        %2952 = vmatprep.subr.mxu0 0.0
        %2953 = vmatpush1.msra.mxu0 0.0
        %2954 = vmatprep.subr.mxu0 0.0
        %2955 = vmatpush1.msra.mxu0 0.0
        %2956 = vmatprep.subr.mxu0 0.0
        %2957 = vmatpush1.msra.mxu0 0.0
        %2958 = vmatprep.subr.mxu0 0.0
        %2959 = vmatpush1.msra.mxu0 0.0
        %2960 = vmatprep.subr.mxu0 0.0
        %2961 = vmatpush1.msra.mxu0 0.0
        %2962 = vmatprep.subr.mxu0 0.0
        %2963 = vmatpush1.msra.mxu0 0.0
        %2964 = vmatprep.subr.mxu0 0.0
        %2965 = vmatpush1.msra.mxu0 0.0
        %2966 = vmatprep.subr.mxu0 0.0
        %2967 = vmatpush1.msra.mxu0 0.0
        %2968 = vmatprep.subr.mxu0 0.0
        %2969 = vmatpush1.msra.mxu0 0.0
        %2970 = vmatprep.subr.mxu0 0.0
        %2971 = vmatpush1.msra.mxu0 0.0
        %2972 = vmatprep.subr.mxu0 0.0
        %2973 = vmatpush1.msra.mxu0 0.0
        %2974 = vmatprep.subr.mxu0 0.0
        %2975 = vmatpush1.msra.mxu0 0.0
        %2976 = vmatprep.subr.mxu0 0.0
        %2977 = vmatpush1.msra.mxu0 0.0
        %2978 = vmatprep.subr.mxu0 0.0
        %2979 = vmatpush1.msra.mxu0 0.0
        %2980 = vmatprep.subr.mxu0 0.0
        %2981 = vmatpush1.msra.mxu0 0.0
        %2982 = vmatprep.subr.mxu0 0.0
        %2983 = vmatpush1.msra.mxu0 0.0
        %2984 = vmatprep.subr.mxu0 0.0
        %2985 = vmatpush1.msra.mxu0 0.0
        %2986 = vmatprep.subr.mxu0 0.0
        %2987 = vmatpush1.msra.mxu0 0.0
        %2988 = vmatprep.subr.mxu0 0.0
        %2989 = vmatpush1.msra.mxu0 0.0
        %2990 = vmatprep.subr.mxu0 0.0
        %2991 = vmatpush1.msra.mxu0 0.0
        %2992 = vmatprep.subr.mxu0 0.0
        %2993 = vmatpush1.msra.mxu0 0.0
        %2994 = vmatprep.subr.mxu0 0.0
        %2995 = vmatpush1.msra.mxu0 0.0
        %2996 = vmatprep.subr.mxu0 0.0
        %2997 = vmatpush1.msra.mxu0 0.0
        %2998 = vmatprep.subr.mxu0 0.0
        %2999 = vmatpush1.msra.mxu0 0.0
        %3000 = vmatprep.mubr.f32.mxu0 0.0
        %3001 = vmatmul.mubr.f32.gmra.mrb[0].mxu0 %v2913
        %v3002 = vpop.f32.mrb[0].mxu0
        %v3003 = vadd.f32 %v2875, %v3002
        %v3004 = vpop.f32.mrb[0].mxu0
        %3005 = vmatprep.mubr.f32.mxu0 0.0
        %3006 = vmatmul.mubr.f32.gmra.mrb[0].mxu0 %v2916
        %v3007 = vpop.f32.mrb[0].mxu0
        %v3008 = vadd.f32 %v2880, %v3007
        %v3009 = vpop.f32.mrb[0].mxu0
        %3010 = vmatprep.mubr.f32.mxu0 0.0
        %3011 = vmatmul.mubr.f32.gmra.mrb[0].mxu0 %v2919
        %v3012 = vpop.f32.mrb[0].mxu0
        %v3013 = vadd.f32 %v2885, %v3012
        %v3014 = vpop.f32.mrb[0].mxu0
        %3015 = vmatprep.mubr.f32.mxu0 0.0
        %3016 = vmatmul.mubr.f32.gmra.mrb[0].mxu0 %v2922
        %v3017 = vpop.f32.mrb[0].mxu0
        %v3018 = vadd.f32 %v2890, %v3017
        %v3019 = vpop.f32.mrb[0].mxu0
        %3020 = vmatprep.mubr.f32.mxu0 0.0
        %3021 = vmatmul.mubr.f32.gmra.mrb[0].mxu0 %v2925
        %v3022 = vpop.f32.mrb[0].mxu0
        %v3023 = vadd.f32 %v2895, %v3022
        %v3024 = vpop.f32.mrb[0].mxu0
        %3025 = vmatprep.mubr.f32.mxu0 0.0
        %3026 = vmatmul.mubr.f32.gmra.mrb[0].mxu0 %v2928
        %v3027 = vpop.f32.mrb[0].mxu0
        %v3028 = vadd.f32 %v2900, %v3027
        %v3029 = vpop.f32.mrb[0].mxu0
        %3030 = vmatprep.mubr.f32.mxu0 0.0
        %3031 = vmatmul.mubr.f32.gmra.mrb[0].mxu0 %v2931
        %v3032 = vpop.f32.mrb[0].mxu0
        %v3033 = vadd.f32 %v2905, %v3032
        %v3034 = vpop.f32.mrb[0].mxu0
        %3035 = vmatprep.mubr.f32.mxu0 0.0
        %3036 = vmatmul.mubr.f32.gmra.mrb[0].mxu0 %v2934
        %v3037 = vpop.f32.mrb[0].mxu0
        %v3038 = vadd.f32 %v2910, %v3037
        %v3039 = vpop.f32.mrb[0].mxu0
        %3040 = vdwg.mxu0
        %v3041 = vmul.f32 %v3003, 0.01
        %v3042 = vmul.f32 %v3008, 0.01
        %v3043 = vmul.f32 %v3013, 0.01
        %v3044 = vmul.f32 %v3018, 0.01
        %v3045 = vmul.f32 %v3023, 0.01
        %v3046 = vmul.f32 %v3028, 0.01
        %v3047 = vmul.f32 %v3033, 0.01
        %v3048 = vmul.f32 %v3038, 0.01
        %v3049 = vmax.f32 %v3003, %v3041
        %v3050 = vmax.f32 %v3008, %v3042
        %v3051 = vmax.f32 %v3013, %v3043
        %v3052 = vmax.f32 %v3018, %v3044
        %v3053 = vmax.f32 %v3023, %v3045
        %v3054 = vmax.f32 %v3028, %v3046
        %v3055 = vmax.f32 %v3033, %v3047
        %v3056 = vmax.f32 %v3038, %v3048
        %v3057 = vld [vmem:[%s3] sm:$0xff]
        %v3058 = vld [vmem:[%s3 + $0x8] sm:$0xff]
        %v3059 = vld [vmem:[%s3 + $0x10] sm:$0xff]
        %v3060 = vld [vmem:[%s3 + $0x18] sm:$0xff]
        %v3061 = vld [vmem:[%s3 + $0x20] sm:$0xff]
        %v3062 = vld [vmem:[%s3 + $0x28] sm:$0xff]
        %v3063 = vld [vmem:[%s3 + $0x30] sm:$0xff]
        %v3064 = vld [vmem:[%s3 + $0x38] sm:$0xff]
        %v3065 = vld [vmem:[%s4] sm:$0xff]
        %v3066 = vld [vmem:[%s4 + $0x8] sm:$0xff]
        %v3067 = vld [vmem:[%s4 + $0x10] sm:$0xff]
        %v3068 = vld [vmem:[%s4 + $0x18] sm:$0xff]
        %v3069 = vld [vmem:[%s4 + $0x20] sm:$0xff]
        %v3070 = vld [vmem:[%s4 + $0x28] sm:$0xff]
        %v3071 = vld [vmem:[%s4 + $0x30] sm:$0xff]
        %v3072 = vld [vmem:[%s4 + $0x38] sm:$0xff]
        %3074 = vset.pattern.permute.xlu0 0
        %3075 = vperm.xlu0 %3074, %v3065
        %v3076 = vpop.permute.xlu0 %3075
        %3079 = vset.pattern.permute.xlu0 0
        %3080 = vperm.xlu0 %3079, %v3066
        %v3081 = vpop.permute.xlu0 %3080
        %3084 = vset.pattern.permute.xlu0 0
        %3085 = vperm.xlu0 %3084, %v3067
        %v3086 = vpop.permute.xlu0 %3085
        %3089 = vset.pattern.permute.xlu0 0
        %3090 = vperm.xlu0 %3089, %v3068
        %v3091 = vpop.permute.xlu0 %3090
        %3094 = vset.pattern.permute.xlu0 0
        %3095 = vperm.xlu0 %3094, %v3069
        %v3096 = vpop.permute.xlu0 %3095
        %3099 = vset.pattern.permute.xlu0 0
        %3100 = vperm.xlu0 %3099, %v3070
        %v3101 = vpop.permute.xlu0 %3100
        %3104 = vset.pattern.permute.xlu0 0
        %3105 = vperm.xlu0 %3104, %v3071
        %v3106 = vpop.permute.xlu0 %3105
        %3109 = vset.pattern.permute.xlu0 0
        %3110 = vperm.xlu0 %3109, %v3072
        %v3111 = vpop.permute.xlu0 %3110
        %v3114 = vsel %vm536, %v3057, 0
        %v3117 = vsel %vm536, %v3058, 0
        %v3120 = vsel %vm536, %v3059, 0
        %v3123 = vsel %vm536, %v3060, 0
        %v3126 = vsel %vm536, %v3061, 0
        %v3129 = vsel %vm536, %v3062, 0
        %v3132 = vsel %vm536, %v3063, 0
        %v3135 = vsel %vm536, %v3064, 0
        %3137 = vmatprep.subr.mxu0 0.0
        %3138 = vmatpush1.msra.mxu0 %v3049
        %3139 = vmatprep.subr.mxu0 0.0
        %3140 = vmatpush1.msra.mxu0 %v3050
        %3141 = vmatprep.subr.mxu0 0.0
        %3142 = vmatpush1.msra.mxu0 %v3051
        %3143 = vmatprep.subr.mxu0 0.0
        %3144 = vmatpush1.msra.mxu0 %v3052
        %3145 = vmatprep.subr.mxu0 0.0
        %3146 = vmatpush1.msra.mxu0 %v3053
        %3147 = vmatprep.subr.mxu0 0.0
        %3148 = vmatpush1.msra.mxu0 %v3054
        %3149 = vmatprep.subr.mxu0 0.0
        %3150 = vmatpush1.msra.mxu0 %v3055
        %3151 = vmatprep.subr.mxu0 0.0
        %3152 = vmatpush1.msra.mxu0 %v3056
        %3153 = vmatprep.subr.mxu0 0.0
        %3154 = vmatpush1.msra.mxu0 0.0
        %3155 = vmatprep.subr.mxu0 0.0
        %3156 = vmatpush1.msra.mxu0 0.0
        %3157 = vmatprep.subr.mxu0 0.0
        %3158 = vmatpush1.msra.mxu0 0.0
        %3159 = vmatprep.subr.mxu0 0.0
        %3160 = vmatpush1.msra.mxu0 0.0
        %3161 = vmatprep.subr.mxu0 0.0
        %3162 = vmatpush1.msra.mxu0 0.0
        %3163 = vmatprep.subr.mxu0 0.0
        %3164 = vmatpush1.msra.mxu0 0.0
        %3165 = vmatprep.subr.mxu0 0.0
        %3166 = vmatpush1.msra.mxu0 0.0
        %3167 = vmatprep.subr.mxu0 0.0
        %3168 = vmatpush1.msra.mxu0 0.0
        %3169 = vmatprep.subr.mxu0 0.0
        %3170 = vmatpush1.msra.mxu0 0.0
        %3171 = vmatprep.subr.mxu0 0.0
        %3172 = vmatpush1.msra.mxu0 0.0
        %3173 = vmatprep.subr.mxu0 0.0
        %3174 = vmatpush1.msra.mxu0 0.0
        %3175 = vmatprep.subr.mxu0 0.0
        %3176 = vmatpush1.msra.mxu0 0.0
        %3177 = vmatprep.subr.mxu0 0.0
        %3178 = vmatpush1.msra.mxu0 0.0
        %3179 = vmatprep.subr.mxu0 0.0
        %3180 = vmatpush1.msra.mxu0 0.0
        %3181 = vmatprep.subr.mxu0 0.0
        %3182 = vmatpush1.msra.mxu0 0.0
        %3183 = vmatprep.subr.mxu0 0.0
        %3184 = vmatpush1.msra.mxu0 0.0
        %3185 = vmatprep.subr.mxu0 0.0
        %3186 = vmatpush1.msra.mxu0 0.0
        %3187 = vmatprep.subr.mxu0 0.0
        %3188 = vmatpush1.msra.mxu0 0.0
        %3189 = vmatprep.subr.mxu0 0.0
        %3190 = vmatpush1.msra.mxu0 0.0
        %3191 = vmatprep.subr.mxu0 0.0
        %3192 = vmatpush1.msra.mxu0 0.0
        %3193 = vmatprep.subr.mxu0 0.0
        %3194 = vmatpush1.msra.mxu0 0.0
        %3195 = vmatprep.subr.mxu0 0.0
        %3196 = vmatpush1.msra.mxu0 0.0
        %3197 = vmatprep.subr.mxu0 0.0
        %3198 = vmatpush1.msra.mxu0 0.0
        %3199 = vmatprep.subr.mxu0 0.0
        %3200 = vmatpush1.msra.mxu0 0.0
        %3201 = vmatprep.mubr.f32.mxu0 0.0
        %3202 = vmatmul.mubr.f32.gmra.mrb[0].mxu0 %v3114
        %v3203 = vpop.f32.mrb[0].mxu0
        %v3204 = vadd.f32 %v3076, %v3203
        %v3205 = vpop.f32.mrb[0].mxu0
        %3206 = vmatprep.mubr.f32.mxu0 0.0
        %3207 = vmatmul.mubr.f32.gmra.mrb[0].mxu0 %v3117
        %v3208 = vpop.f32.mrb[0].mxu0
        %v3209 = vadd.f32 %v3081, %v3208
        %v3210 = vpop.f32.mrb[0].mxu0
        %3211 = vmatprep.mubr.f32.mxu0 0.0
        %3212 = vmatmul.mubr.f32.gmra.mrb[0].mxu0 %v3120
        %v3213 = vpop.f32.mrb[0].mxu0
        %v3214 = vadd.f32 %v3086, %v3213
        %v3215 = vpop.f32.mrb[0].mxu0
        %3216 = vmatprep.mubr.f32.mxu0 0.0
        %3217 = vmatmul.mubr.f32.gmra.mrb[0].mxu0 %v3123
        %v3218 = vpop.f32.mrb[0].mxu0
        %v3219 = vadd.f32 %v3091, %v3218
        %v3220 = vpop.f32.mrb[0].mxu0
        %3221 = vmatprep.mubr.f32.mxu0 0.0
        %3222 = vmatmul.mubr.f32.gmra.mrb[0].mxu0 %v3126
        %v3223 = vpop.f32.mrb[0].mxu0
        %v3224 = vadd.f32 %v3096, %v3223
        %v3225 = vpop.f32.mrb[0].mxu0
        %3226 = vmatprep.mubr.f32.mxu0 0.0
        %3227 = vmatmul.mubr.f32.gmra.mrb[0].mxu0 %v3129
        %v3228 = vpop.f32.mrb[0].mxu0
        %v3229 = vadd.f32 %v3101, %v3228
        %v3230 = vpop.f32.mrb[0].mxu0
        %3231 = vmatprep.mubr.f32.mxu0 0.0
        %3232 = vmatmul.mubr.f32.gmra.mrb[0].mxu0 %v3132
        %v3233 = vpop.f32.mrb[0].mxu0
        %v3234 = vadd.f32 %v3106, %v3233
        %v3235 = vpop.f32.mrb[0].mxu0
        %3236 = vmatprep.mubr.f32.mxu0 0.0
        %3237 = vmatmul.mubr.f32.gmra.mrb[0].mxu0 %v3135
        %v3238 = vpop.f32.mrb[0].mxu0
        %v3239 = vadd.f32 %v3111, %v3238
        %v3240 = vpop.f32.mrb[0].mxu0
        %3241 = vdwg.mxu0
        %v3242 = vmul.f32 %v3204, 0.01
        %v3243 = vmul.f32 %v3209, 0.01
        %v3244 = vmul.f32 %v3214, 0.01
        %v3245 = vmul.f32 %v3219, 0.01
        %v3246 = vmul.f32 %v3224, 0.01
        %v3247 = vmul.f32 %v3229, 0.01
        %v3248 = vmul.f32 %v3234, 0.01
        %v3249 = vmul.f32 %v3239, 0.01
        %v3250 = vmax.f32 %v3204, %v3242
        %v3251 = vmax.f32 %v3209, %v3243
        %v3252 = vmax.f32 %v3214, %v3244
        %v3253 = vmax.f32 %v3219, %v3245
        %v3254 = vmax.f32 %v3224, %v3246
        %v3255 = vmax.f32 %v3229, %v3247
        %v3256 = vmax.f32 %v3234, %v3248
        %v3257 = vmax.f32 %v3239, %v3249
        %v3258 = vld [vmem:[%s5] sm:$0xff]
        %v3259 = vld [vmem:[%s5 + $0x8] sm:$0xff]
        %v3260 = vld [vmem:[%s6] sm:$0xff]
        %v3261 = vld [vmem:[%s6 + $0x8] sm:$0xff]
        %3263 = vset.pattern.permute.xlu0 0
        %3264 = vperm.xlu0 %3263, %v3260
        %v3265 = vpop.permute.xlu0 %3264
        %3268 = vset.pattern.permute.xlu0 0
        %3269 = vperm.xlu0 %3268, %v3261
        %v3270 = vpop.permute.xlu0 %3269
        %v3273 = vsel %vm536, %v3258, 0
        %v3276 = vsel %vm536, %v3259, 0
        %3278 = vmatprep.subr.mxu0 0.0
        %3279 = vmatpush1.msra.mxu0 %v3250
        %3280 = vmatprep.subr.mxu0 0.0
        %3281 = vmatpush1.msra.mxu0 %v3251
        %3282 = vmatprep.subr.mxu0 0.0
        %3283 = vmatpush1.msra.mxu0 %v3252
        %3284 = vmatprep.subr.mxu0 0.0
        %3285 = vmatpush1.msra.mxu0 %v3253
        %3286 = vmatprep.subr.mxu0 0.0
        %3287 = vmatpush1.msra.mxu0 %v3254
        %3288 = vmatprep.subr.mxu0 0.0
        %3289 = vmatpush1.msra.mxu0 %v3255
        %3290 = vmatprep.subr.mxu0 0.0
        %3291 = vmatpush1.msra.mxu0 %v3256
        %3292 = vmatprep.subr.mxu0 0.0
        %3293 = vmatpush1.msra.mxu0 %v3257
        %3294 = vmatprep.subr.mxu0 0.0
        %3295 = vmatpush1.msra.mxu0 0.0
        %3296 = vmatprep.subr.mxu0 0.0
        %3297 = vmatpush1.msra.mxu0 0.0
        %3298 = vmatprep.subr.mxu0 0.0
        %3299 = vmatpush1.msra.mxu0 0.0
        %3300 = vmatprep.subr.mxu0 0.0
        %3301 = vmatpush1.msra.mxu0 0.0
        %3302 = vmatprep.subr.mxu0 0.0
        %3303 = vmatpush1.msra.mxu0 0.0
        %3304 = vmatprep.subr.mxu0 0.0
        %3305 = vmatpush1.msra.mxu0 0.0
        %3306 = vmatprep.subr.mxu0 0.0
        %3307 = vmatpush1.msra.mxu0 0.0
        %3308 = vmatprep.subr.mxu0 0.0
        %3309 = vmatpush1.msra.mxu0 0.0
        %3310 = vmatprep.subr.mxu0 0.0
        %3311 = vmatpush1.msra.mxu0 0.0
        %3312 = vmatprep.subr.mxu0 0.0
        %3313 = vmatpush1.msra.mxu0 0.0
        %3314 = vmatprep.subr.mxu0 0.0
        %3315 = vmatpush1.msra.mxu0 0.0
        %3316 = vmatprep.subr.mxu0 0.0
        %3317 = vmatpush1.msra.mxu0 0.0
        %3318 = vmatprep.subr.mxu0 0.0
        %3319 = vmatpush1.msra.mxu0 0.0
        %3320 = vmatprep.subr.mxu0 0.0
        %3321 = vmatpush1.msra.mxu0 0.0
        %3322 = vmatprep.subr.mxu0 0.0
        %3323 = vmatpush1.msra.mxu0 0.0
        %3324 = vmatprep.subr.mxu0 0.0
        %3325 = vmatpush1.msra.mxu0 0.0
        %3326 = vmatprep.subr.mxu0 0.0
        %3327 = vmatpush1.msra.mxu0 0.0
        %3328 = vmatprep.subr.mxu0 0.0
        %3329 = vmatpush1.msra.mxu0 0.0
        %3330 = vmatprep.subr.mxu0 0.0
        %3331 = vmatpush1.msra.mxu0 0.0
        %3332 = vmatprep.subr.mxu0 0.0
        %3333 = vmatpush1.msra.mxu0 0.0
        %3334 = vmatprep.subr.mxu0 0.0
        %3335 = vmatpush1.msra.mxu0 0.0
        %3336 = vmatprep.subr.mxu0 0.0
        %3337 = vmatpush1.msra.mxu0 0.0
        %3338 = vmatprep.subr.mxu0 0.0
        %3339 = vmatpush1.msra.mxu0 0.0
        %3340 = vmatprep.subr.mxu0 0.0
        %3341 = vmatpush1.msra.mxu0 0.0
        %3342 = vmatprep.mubr.f32.mxu0 0.0
        %3343 = vmatmul.mubr.f32.gmra.mrb[0].mxu0 %v3273
        %v3344 = vpop.f32.mrb[0].mxu0
        %v3345 = vadd.f32 %v3265, %v3344
        %v3346 = vpop.f32.mrb[0].mxu0
        %3347 = vmatprep.mubr.f32.mxu0 0.0
        %3348 = vmatmul.mubr.f32.gmra.mrb[0].mxu0 %v3276
        %v3349 = vpop.f32.mrb[0].mxu0
        %v3350 = vadd.f32 %v3270, %v3349
        %v3351 = vpop.f32.mrb[0].mxu0
        %3352 = vdwg.mxu0
        %v3353 = vtanh.pop %v3345
        %v3354 = vsub.f32 %v2848, %v3350
        %v3355 = vsub.f32 0.0, %v3353
        %v3356 = vmul.f32 %v3355, 1.442695
        %v3357 = vpow.pop %v3356
        %v3358 = vmul.f32 %v3354, %v3357
        %v3359 = vrot.slane %v3353, 4
        %v3360 = vadd.f32 %v3353, %v3359
        %v3361 = vrot.slane %v3360, 2
        %v3362 = vadd.f32 %v3360, %v3361
        %v3363 = vrot.slane %v3362, 1
        %v3364 = vadd.f32 %v3362, %v3363
        %v3365 = vsub.f32 %v2855, %v3364
        %v3366 = vmul.f32 %v3358, %v3358
        %v3367 = vrot.slane %v3366, 4
        %v3368 = vadd.f32 %v3366, %v3367
        %v3369 = vrot.slane %v3368, 2
        %v3370 = vadd.f32 %v3368, %v3369
        %v3371 = vrot.slane %v3370, 1
        %v3372 = vadd.f32 %v3370, %v3371
        %v3373 = vmul.f32 %v3372, -0.5
        %v3374 = vsub.f32 %v3373, 7.351508
        %v3375 = vxor.u32 %v3374, 2147483648
        %v3376 = vmul.f32 %v3375, 1.442695
        %v3377 = vpow.pop %v3376
        %v3378 = vadd.f32 %v3377, 1.0
        %v3379 = vrcp.pop %v3378
        %v3380 = vmul.f32 1.0, %v3379
        %v3381 = vadd.f32 %v3380, %v3365
        %3382 = vst [vmem:[%s268] sm:$0x1] %v3381
        %s3383 = sand.u32 %s181, 1
        %s3384 = scalar_lea.sflag [#allocation3], %s3383
        %s3385 = sand.u32 %s181, 1
        %s3386 = scalar_lea.vmem [#allocation2], %s3385
        // Predicated region
        $region49: #{tpu_custom_call.1} parent=47 // pred_check
          %p3387 = pneg %p191
        $region50: #{tpu_custom_call.1} parent=47 // pred_check_branch
          %3389 = sbr.rel (%p3387) target = $region52
        $region51: #{tpu_custom_call.1} parent=47 // pred_region
          %s3391 = ssub.s32 16, 16
          %3392 = vsyncadd %s3384, %s3391
          %s3393 = smul.addr %s21, 16
          %s3394 = scalar_lea.hbm %s7, %s3393
          %s3396 = sshll.u32 %s3386, 4
          %s3397 = int_to_ptr.vmem [resolvable:$true] %s3396
          %3399 = dma.vmem_to_hbm [thread:$0]  %s3397, 16, %s3394, %s3384
        $region52: #{tpu_custom_call.1} parent=47 // pred_fallthru
          _
      $region48: #{tpu_custom_call.1} parent=5 // pred_fallthru
        _
      %p3400 = scmp.le.s32.totalorder 2, %s16
      // Predicated region
      $region53: #{tpu_custom_call.1} parent=5 // pred_check
        %p3401 = pneg %p3400
      $region54: #{tpu_custom_call.1} parent=5 // pred_check_branch
        %3403 = sbr.rel (%p3401) target = $region56
      $region55: #{tpu_custom_call.1} parent=5 // pred_region
        %s3404 = ssub.s32 %s16, 2
        // Predicated region
        $region57: #{tpu_custom_call.1} parent=55 // pred_check
          %p3405 = pneg %p197
        $region58: #{tpu_custom_call.1} parent=55 // pred_check_branch
          %3407 = sbr.rel (%p3405) target = $region60
        $region59: #{tpu_custom_call.1} parent=55 // pred_region
          %s3408 = sand.u32 %s182, 1
          %s3409 = scalar_lea.sflag [#allocation3], %s3408
          %s3410 = sand.u32 %s182, 1
          %s3411 = scalar_lea.vmem [#allocation2], %s3410
          %3412 = dma.done %s3409, 16
        $region60: #{tpu_custom_call.1} parent=55 // pred_fallthru
          _
      $region56: #{tpu_custom_call.1} parent=5 // pred_fallthru
        _
    $region6: #{tpu_custom_call.1} parent=1 // loop_footer
      %s20 = sadd.s32 1, %s16
    $region7: #{tpu_custom_call.1} parent=1 // loop_footer_branch
      %15 = sbr.rel target = $region3
    $region8: #{tpu_custom_call.1} parent=1 // loop_exit
      _
    %3413 = vsyncpa [#allocation3], 1
    %s3414 = scalar_lea.sflag [#allocation3], 1
    %3415 = vsyncpa %s3414, 1

</llo_original>
